<compile_context>
chip_gen: v7x
topology: tpu7x:2x2x1
jax: 0.10.0
libtpu: 0.0.40
codegen_flags: <defaults>
</compile_context>

<pallas_src>
import functools

import jax
import jax.numpy as jnp
from jax.experimental import pallas as pl
from jax.experimental.pallas import tpu as pltpu


# ----------------------------------------------------------------------------
# Helpers
# ----------------------------------------------------------------------------
def _round_up(x, m):
    return ((x + m - 1) // m) * m


def _sigmoid(x):
    # sigmoid(x) == 0.5*tanh(x/2) + 0.5 : a single EUP tanh instead of exp+recip.
    return 0.5 * jnp.tanh(0.5 * x) + 0.5


# ----------------------------------------------------------------------------
# Fused Pallas kernel
# ----------------------------------------------------------------------------
def _lstm_classifier_kernel(x_ref,            # (T, Bb, E)    matmul dtype
                            wih0_ref,         # (E,  4Hp)     matmul dtype
                            whh0_ref,         # (Hp, 4Hp)     matmul dtype
                            b0_ref,           # (1,  4Hp)     f32 (b_ih + b_hh)
                            wih1_ref,         # (Hp, 4Hp)     matmul dtype
                            whh1_ref,         # (Hp, 4Hp)     matmul dtype
                            b1_ref,           # (1,  4Hp)     f32
                            wfc_ref,          # (Hp, Op)      matmul dtype
                            bfc_ref,          # (1,  Op)      f32
                            out_ref,          # (Bb, Op)      f32 logits (padded)
                            gx_scr,           # (T, Bb, 4Hp)  matmul-dtype scratch
                            hseq_scr):        # (T, Bb, Hp)   matmul-dtype scratch
    T, Bb, E = x_ref.shape
    Hp = whh0_ref.shape[0]
    mm_dtype = wih0_ref.dtype
    # Full unroll for short sequences, partial unroll (LLO overlap) otherwise.
    unroll = T if T <= 32 else 4

    # ---- layer 0: hoisted input projection (one batched matmul, bias folded) ----
    x_flat = x_ref[...].reshape(T * Bb, E)
    gx0 = jnp.dot(x_flat, wih0_ref[...],
                  preferred_element_type=jnp.float32) + b0_ref[...]
    gx_scr[...] = gx0.reshape(T, Bb, 4 * Hp).astype(gx_scr.dtype)

    def make_step(whh_ref, write_hseq):
        def step(t, carry):
            h, c = carry                                           # f32 vreg carries
            gates = (gx_scr[t].astype(jnp.float32) +
                     jnp.dot(h.astype(mm_dtype), whh_ref[...],
                             preferred_element_type=jnp.float32))
            # PyTorch gate order [i, f, g, o]; Hp is a multiple of 128 -> lane-aligned.
            i_g = _sigmoid(gates[:, 0 * Hp:1 * Hp])
            f_g = _sigmoid(gates[:, 1 * Hp:2 * Hp])
            g_g = jnp.tanh(gates[:, 2 * Hp:3 * Hp])
            o_g = _sigmoid(gates[:, 3 * Hp:4 * Hp])
            c_new = f_g * c + i_g * g_g                            # keep f32
            h_new = o_g * jnp.tanh(c_new)
            if write_hseq:
                hseq_scr[t] = h_new.astype(hseq_scr.dtype)
            return h_new, c_new
        return step

    zeros = (jnp.zeros((Bb, Hp), jnp.float32),
             jnp.zeros((Bb, Hp), jnp.float32))

    # layer-0 recurrence (writes hidden sequence to VMEM scratch for layer 1)
    jax.lax.fori_loop(0, T, make_step(whh0_ref, True), zeros, unroll=unroll)

    # ---- layer 1: hoisted input projection over layer-0's hidden sequence ----
    h0_flat = hseq_scr[...].reshape(T * Bb, Hp)
    gx1 = jnp.dot(h0_flat, wih1_ref[...],
                  preferred_element_type=jnp.float32) + b1_ref[...]
    gx_scr[...] = gx1.reshape(T, Bb, 4 * Hp).astype(gx_scr.dtype)

    # layer-1 recurrence: only the final hidden state is needed (no seq writeback)
    h_last, _ = jax.lax.fori_loop(0, T, make_step(whh1_ref, False), zeros,
                                  unroll=unroll)

    # ---- FC head on the last timestep (dropout = identity in eval mode) ----
    logits = jnp.dot(h_last.astype(mm_dtype), wfc_ref[...],
                     preferred_element_type=jnp.float32) + bfc_ref[...]
    out_ref[...] = logits.astype(out_ref.dtype)


# ----------------------------------------------------------------------------
# Weight preparation (transpose to (in, out), lane-pad gates, combine biases)
# ----------------------------------------------------------------------------
def _pad_gate_cols(w2d, H, Hp):
    """w2d: (..., 4H) with gate layout [i|f|g|o]; pad each gate chunk to Hp."""
    parts = jnp.split(w2d, 4, axis=-1)
    return jnp.concatenate(
        [jnp.pad(p, ((0, 0), (0, Hp - H))) for p in parts], axis=-1)


def _prep_lstm_weights(w_ih, w_hh, b_ih, b_hh, H, Hp, mm_dtype, pad_in_to=None):
    wih = _pad_gate_cols(jnp.transpose(w_ih), H, Hp)                   # (in, 4Hp)
    if pad_in_to is not None:
        wih = jnp.pad(wih, ((0, pad_in_to - wih.shape[0]), (0, 0)))
    whh = _pad_gate_cols(jnp.transpose(w_hh), H, Hp)                   # (H, 4Hp)
    whh = jnp.pad(whh, ((0, Hp - H), (0, 0)))                          # (Hp, 4Hp)
    bias = _pad_gate_cols((b_ih + b_hh).reshape(1, 4 * H), H, Hp)      # (1, 4Hp)
    return wih.astype(mm_dtype), whh.astype(mm_dtype), bias.astype(jnp.float32)


# ----------------------------------------------------------------------------
# Config helpers (batch block sizing, per-generation VMEM ceiling)
# ----------------------------------------------------------------------------
def _pick_batch_block(B_pad):
    if B_pad >= 512:
        return 256                                # feed MXU M-dim, many parallel steps
    if B_pad >= 16:
        return _round_up(pl.cdiv(B_pad, 2), 8)    # >=2 parallel steps (v7x megacore)
    return B_pad                                  # tiny batch: single step


def _vmem_ceiling_bytes():
    cap = None
    try:
        cap = getattr(pltpu.get_tpu_info(), "vmem_capacity_bytes", None)
    except Exception:
        cap = None
    if cap is None:
        cap = 64 << 20                    # conservative default (v7x physical per-TC)
    if cap >= (96 << 20):                 # v5e / v6e: 128 MiB physical VMEM
        return int(cap) - (24 << 20)      # ~104 MiB usable
    return 48 << 20                       # v7x: headroom under the 64 MiB cap


# ----------------------------------------------------------------------------
# Forward wrapper
# ----------------------------------------------------------------------------
def lstm_classifier_forward(tokens, params, *, mm_dtype=jnp.bfloat16,
                            batch_block=None):
    """tokens: (B, T) int32.  Returns logits (B, output_dim) float32."""
    B, T = tokens.shape
    E = params["embedding"].shape[1]
    H = params["w_hh_l0"].shape[1]
    O = params["w_fc"].shape[0]
    Hp = _round_up(H, 128)
    Op = _round_up(O, 128)

    # Batch block: multiple of 8 (sublane constraint), pad B so the grid divides
    # evenly (no ragged edge blocks running the recurrence on junk rows).
    if batch_block is None:
        bb = _pick_batch_block(_round_up(B, 8))
    else:
        bb = max(8, _round_up(min(batch_block, B), 8))
    B_pad = _round_up(B, bb)
    grid = (B_pad // bb,)

    # Cast the table first so the gathered (T, B, E) tensor is produced in bf16;
    # time-major gather avoids a (B,T,E)->(T,B,E) transpose.
    emb = params["embedding"].astype(mm_dtype)
    x = jnp.take(emb, jnp.transpose(tokens), axis=0)                    # (T, B, E)
    if B_pad != B:
        x = jnp.pad(x, ((0, 0), (0, B_pad - B), (0, 0)))                # zero pad rows

    wih0, whh0, b0 = _prep_lstm_weights(params["w_ih_l0"], params["w_hh_l0"],
                                        params["b_ih_l0"], params["b_hh_l0"],
                                        H, Hp, mm_dtype)
    wih1, whh1, b1 = _prep_lstm_weights(params["w_ih_l1"], params["w_hh_l1"],
                                        params["b_ih_l1"], params["b_hh_l1"],
                                        H, Hp, mm_dtype, pad_in_to=Hp)
    wfc = jnp.pad(jnp.transpose(params["w_fc"]),
                  ((0, Hp - H), (0, Op - O))).astype(mm_dtype)          # (Hp, Op)
    bfc = jnp.pad(params["b_fc"].reshape(1, O),
                  ((0, 0), (0, Op - O))).astype(jnp.float32)            # (1, Op)

    # VMEM budget: double-buffered x/out, double-buffered weights, bf16 scratch,
    # f32 projection temp before the downcast store, plus margin; clamp per gen.
    def nbytes(a):
        return a.size * a.dtype.itemsize
    mm_itemsize = jnp.dtype(mm_dtype).itemsize
    est = (2 * (T * bb * E * mm_itemsize + bb * Op * 4)
           + 2 * sum(nbytes(w) for w in (wih0, whh0, b0, wih1, whh1, b1, wfc, bfc))
           + T * bb * 4 * Hp * mm_itemsize          # gx_scr
           + T * bb * Hp * mm_itemsize              # hseq_scr
           + T * bb * 4 * Hp * 4                    # f32 projection temp
           + (4 << 20))
    vmem_limit = int(min(max(est, 16 << 20), _vmem_ceiling_bytes()))

    def _full2d(a):
        return pl.BlockSpec(a.shape, lambda i: (0, 0))

    out = pl.pallas_call(
        _lstm_classifier_kernel,
        out_shape=jax.ShapeDtypeStruct((B_pad, Op), jnp.float32),
        grid=grid,
        in_specs=[
            pl.BlockSpec((T, bb, E), lambda i: (0, i, 0)),   # x, split over batch
            _full2d(wih0), _full2d(whh0), _full2d(b0),
            _full2d(wih1), _full2d(whh1), _full2d(b1),
            _full2d(wfc), _full2d(bfc),
        ],
        out_specs=pl.BlockSpec((bb, Op), lambda i: (i, 0)),
        scratch_shapes=[
            pltpu.VMEM((T, bb, 4 * Hp), mm_dtype),           # precomputed input gates
            pltpu.VMEM((T, bb, Hp), mm_dtype),               # layer-0 hidden sequence
        ],
        compiler_params=pltpu.CompilerParams(
            dimension_semantics=("parallel",),
            vmem_limit_bytes=vmem_limit,
        ),
    )(x, wih0, whh0, b0, wih1, whh1, b1, wfc, bfc)

    return out[:B, :O]


# ----------------------------------------------------------------------------
# Pure-JAX reference (for correctness check)
# ----------------------------------------------------------------------------
def _ref_lstm_layer(x_bte, w_ih, w_hh, b_ih, b_hh):
    B, T, _ = x_bte.shape
    H = w_hh.shape[1]
    h = jnp.zeros((B, H), jnp.float32)
    c = jnp.zeros((B, H), jnp.float32)
    outs = []
    for t in range(T):
        g = x_bte[:, t, :] @ w_ih.T + h @ w_hh.T + b_ih + b_hh
        i = jax.nn.sigmoid(g[:, 0 * H:1 * H])
        f = jax.nn.sigmoid(g[:, 1 * H:2 * H])
        gg = jnp.tanh(g[:, 2 * H:3 * H])
        o = jax.nn.sigmoid(g[:, 3 * H:4 * H])
        c = f * c + i * gg
        h = o * jnp.tanh(c)
        outs.append(h)
    return jnp.stack(outs, axis=1)


def _ref_forward(tokens, p):
    emb = jnp.take(p["embedding"], tokens, axis=0)
    h0 = _ref_lstm_layer(emb, p["w_ih_l0"], p["w_hh_l0"], p["b_ih_l0"], p["b_hh_l0"])
    h1 = _ref_lstm_layer(h0, p["w_ih_l1"], p["w_hh_l1"], p["b_ih_l1"], p["b_hh_l1"])
    return h1[:, -1, :] @ p["w_fc"].T + p["b_fc"]


# ----------------------------------------------------------------------------
# Main
# ----------------------------------------------------------------------------
if __name__ == "__main__":
    VOCAB, EMB, HID, OUT = 32, 16, 32, 4
    B, T = 2, 8

    key = jax.random.PRNGKey(0)
    keys = jax.random.split(key, 16)
    k = 1.0 / jnp.sqrt(HID)

    emb_tbl = jax.random.normal(keys[0], (VOCAB, EMB), jnp.float32)
    emb_tbl = emb_tbl.at[0].set(0.0)  # padding_idx=0 -> zero row

    def U(kk, shape):
        return jax.random.uniform(kk, shape, jnp.float32, -k, k)

    params = {
        "embedding": emb_tbl,
        # layer 0: input size EMB
        "w_ih_l0": U(keys[1], (4 * HID, EMB)),
        "w_hh_l0": U(keys[2], (4 * HID, HID)),
        "b_ih_l0": U(keys[3], (4 * HID,)),
        "b_hh_l0": U(keys[4], (4 * HID,)),
        # layer 1: input size HID
        "w_ih_l1": U(keys[5], (4 * HID, HID)),
        "w_hh_l1": U(keys[6], (4 * HID, HID)),
        "b_ih_l1": U(keys[7], (4 * HID,)),
        "b_hh_l1": U(keys[8], (4 * HID,)),
        # fc
        "w_fc": U(keys[9], (OUT, HID)),
        "b_fc": U(keys[10], (OUT,)),
    }

    tokens = jax.random.randint(keys[11], (B, T), 0, VOCAB, dtype=jnp.int32)

    ref = _ref_forward(tokens, params)

    # f32 matmul path: tight correctness check.
    fwd_f32 = jax.jit(functools.partial(lstm_classifier_forward,
                                        mm_dtype=jnp.float32))
    logits_f32 = jax.block_until_ready(fwd_f32(tokens, params))
    assert logits_f32.shape == (B, OUT)
    assert jnp.allclose(logits_f32, ref, atol=1e-4, rtol=1e-4), (
        f"f32 mismatch: {logits_f32} vs {ref}")

    # bf16 matmul path (f32 accumulation + f32 state math): looser tolerance.
    fwd_bf16 = jax.jit(functools.partial(lstm_classifier_forward,
                                         mm_dtype=jnp.bfloat16))
    logits_bf16 = jax.block_until_ready(fwd_bf16(tokens, params))
    assert logits_bf16.shape == (B, OUT)
    assert jnp.allclose(logits_bf16, ref, atol=1e-1, rtol=1e-1), (
        f"bf16 mismatch: {logits_bf16} vs {ref}")

    print("KERNEL_OK")
</pallas_src>

<mosaic_0001>
module attributes {stable_mosaic.version = 11 : i64} {
  func.func @_lstm_classifier_kernel(%arg0: i32, %arg1: memref<8x8x16xf32, #tpu.memory_space<vmem>>, %arg2: memref<16x512xf32, #tpu.memory_space<vmem>>, %arg3: memref<128x512xf32, #tpu.memory_space<vmem>>, %arg4: memref<1x512xf32, #tpu.memory_space<vmem>>, %arg5: memref<128x512xf32, #tpu.memory_space<vmem>>, %arg6: memref<128x512xf32, #tpu.memory_space<vmem>>, %arg7: memref<1x512xf32, #tpu.memory_space<vmem>>, %arg8: memref<128x128xf32, #tpu.memory_space<vmem>>, %arg9: memref<1x128xf32, #tpu.memory_space<vmem>>, %arg10: memref<8x128xf32, #tpu.memory_space<vmem>>, %arg11: memref<8x8x512xf32, #tpu.memory_space<vmem>>, %arg12: memref<8x8x128xf32, #tpu.memory_space<vmem>>) attributes {dimension_semantics = [#tpu.dimension_semantics<parallel>], iteration_bounds = array<i64: 1>, scalar_prefetch = 0 : i64, scratch_operands = 2 : i64, tpu.core_type = #tpu.core_type<tc>, window_params = [{transform_indices = @transform_0, window_bounds = array<i64: 8, 8, 16>}, {pipeline_mode = #tpu.pipeline_mode<synchronous>, transform_indices = @transform_1, window_bounds = array<i64: 16, 512>}, {pipeline_mode = #tpu.pipeline_mode<synchronous>, transform_indices = @transform_2, window_bounds = array<i64: 128, 512>}, {pipeline_mode = #tpu.pipeline_mode<synchronous>, transform_indices = @transform_3, window_bounds = array<i64: 1, 512>}, {pipeline_mode = #tpu.pipeline_mode<synchronous>, transform_indices = @transform_4, window_bounds = array<i64: 128, 512>}, {pipeline_mode = #tpu.pipeline_mode<synchronous>, transform_indices = @transform_5, window_bounds = array<i64: 128, 512>}, {pipeline_mode = #tpu.pipeline_mode<synchronous>, transform_indices = @transform_6, window_bounds = array<i64: 1, 512>}, {pipeline_mode = #tpu.pipeline_mode<synchronous>, transform_indices = @transform_7, window_bounds = array<i64: 128, 128>}, {pipeline_mode = #tpu.pipeline_mode<synchronous>, transform_indices = @transform_8, window_bounds = array<i64: 1, 128>}, {transform_indices = @transform_9, window_bounds = array<i64: 8, 128>}]} {
    %c0 = arith.constant 0 : index
    %c0_0 = arith.constant 0 : index
    %c0_1 = arith.constant 0 : index
    %0 = vector.load %arg1[%c0, %c0_0, %c0_1] : memref<8x8x16xf32, #tpu.memory_space<vmem>>, vector<8x8x16xf32>
    %1 = vector.shape_cast %0 : vector<8x8x16xf32> to vector<64x16xf32>
    %c0_2 = arith.constant 0 : index
    %c0_3 = arith.constant 0 : index
    %2 = vector.load %arg2[%c0_2, %c0_3] : memref<16x512xf32, #tpu.memory_space<vmem>>, vector<16x512xf32>
    %cst = arith.constant dense<0.000000e+00> : vector<64x512xf32>
    %3 = tpu.matmul %1, %2, %cst {dimension_numbers = #tpu.dot_dimension_numbers<[1], [0], [0], [1], [0, 0, 1, 1], [], []>} : vector<64x16xf32>, vector<16x512xf32>, vector<64x512xf32> -> vector<64x512xf32>
    %c0_4 = arith.constant 0 : index
    %c0_5 = arith.constant 0 : index
    %4 = vector.load %arg4[%c0_4, %c0_5] : memref<1x512xf32, #tpu.memory_space<vmem>>, vector<1x512xf32>
    %5 = vector.broadcast %4 : vector<1x512xf32> to vector<64x512xf32>
    %6 = arith.addf %3, %5 : vector<64x512xf32>
    %7 = vector.shape_cast %6 : vector<64x512xf32> to vector<8x8x512xf32>
    %c0_6 = arith.constant 0 : index
    %c0_7 = arith.constant 0 : index
    %c0_8 = arith.constant 0 : index
    %8 = vector.load %arg11[%c0_6, %c0_7, %c0_8] : memref<8x8x512xf32, #tpu.memory_space<vmem>>, vector<8x8x512xf32>
    tpu.vector_store %arg11[%c0_6, %c0_7, %c0_8], %7 {strides = array<i32>} : memref<8x8x512xf32, #tpu.memory_space<vmem>>, vector<8x8x512xf32>,
    %cst_9 = arith.constant 0.000000e+00 : f32
    %9 = vector.broadcast %cst_9 : f32 to vector<8x128xf32>
    %cst_10 = arith.constant 0.000000e+00 : f32
    %10 = vector.broadcast %cst_10 : f32 to vector<8x128xf32>
    %c0_i32 = arith.constant 0 : i32
    %11 = arith.index_cast %c0_i32 : i32 to index
    %c0_11 = arith.constant 0 : index
    %c0_12 = arith.constant 0 : index
    %12 = vector.load %arg11[%11, %c0_11, %c0_12] : memref<8x8x512xf32, #tpu.memory_space<vmem>>, vector<1x8x512xf32>
    %13 = vector.shape_cast %12 : vector<1x8x512xf32> to vector<8x512xf32>
    %c0_13 = arith.constant 0 : index
    %c0_14 = arith.constant 0 : index
    %14 = vector.load %arg3[%c0_13, %c0_14] : memref<128x512xf32, #tpu.memory_space<vmem>>, vector<128x512xf32>
    %cst_15 = arith.constant dense<0.000000e+00> : vector<8x512xf32>
    %15 = tpu.matmul %9, %14, %cst_15 {dimension_numbers = #tpu.dot_dimension_numbers<[1], [0], [0], [1], [0, 0, 1, 1], [], []>} : vector<8x128xf32>, vector<128x512xf32>, vector<8x512xf32> -> vector<8x512xf32>
    %16 = arith.addf %13, %15 : vector<8x512xf32>
    %17 = vector.extract_strided_slice %16 {offsets = [0, 0], sizes = [8, 128], strides = [1, 1]} : vector<8x512xf32> to vector<8x128xf32>
    %cst_16 = arith.constant 5.000000e-01 : f32
    %18 = vector.broadcast %cst_16 : f32 to vector<8x128xf32>
    %19 = arith.mulf %18, %17 : vector<8x128xf32>
    %20 = math.tanh %19 : vector<8x128xf32>
    %cst_17 = arith.constant 5.000000e-01 : f32
    %21 = vector.broadcast %cst_17 : f32 to vector<8x128xf32>
    %22 = arith.mulf %21, %20 : vector<8x128xf32>
    %cst_18 = arith.constant 5.000000e-01 : f32
    %23 = vector.broadcast %cst_18 : f32 to vector<8x128xf32>
    %24 = arith.addf %22, %23 : vector<8x128xf32>
    %25 = vector.extract_strided_slice %16 {offsets = [0, 128], sizes = [8, 128], strides = [1, 1]} : vector<8x512xf32> to vector<8x128xf32>
    %cst_19 = arith.constant 5.000000e-01 : f32
    %26 = vector.broadcast %cst_19 : f32 to vector<8x128xf32>
    %27 = arith.mulf %26, %25 : vector<8x128xf32>
    %28 = math.tanh %27 : vector<8x128xf32>
    %cst_20 = arith.constant 5.000000e-01 : f32
    %29 = vector.broadcast %cst_20 : f32 to vector<8x128xf32>
    %30 = arith.mulf %29, %28 : vector<8x128xf32>
    %cst_21 = arith.constant 5.000000e-01 : f32
    %31 = vector.broadcast %cst_21 : f32 to vector<8x128xf32>
    %32 = arith.addf %30, %31 : vector<8x128xf32>
    %33 = vector.extract_strided_slice %16 {offsets = [0, 256], sizes = [8, 128], strides = [1, 1]} : vector<8x512xf32> to vector<8x128xf32>
    %34 = math.tanh %33 : vector<8x128xf32>
    %35 = vector.extract_strided_slice %16 {offsets = [0, 384], sizes = [8, 128], strides = [1, 1]} : vector<8x512xf32> to vector<8x128xf32>
    %cst_22 = arith.constant 5.000000e-01 : f32
    %36 = vector.broadcast %cst_22 : f32 to vector<8x128xf32>
    %37 = arith.mulf %36, %35 : vector<8x128xf32>
    %38 = math.tanh %37 : vector<8x128xf32>
    %cst_23 = arith.constant 5.000000e-01 : f32
    %39 = vector.broadcast %cst_23 : f32 to vector<8x128xf32>
    %40 = arith.mulf %39, %38 : vector<8x128xf32>
    %cst_24 = arith.constant 5.000000e-01 : f32
    %41 = vector.broadcast %cst_24 : f32 to vector<8x128xf32>
    %42 = arith.addf %40, %41 : vector<8x128xf32>
    %43 = arith.mulf %32, %10 : vector<8x128xf32>
    %44 = arith.mulf %24, %34 : vector<8x128xf32>
    %45 = arith.addf %43, %44 : vector<8x128xf32>
    %46 = math.tanh %45 : vector<8x128xf32>
    %47 = arith.mulf %42, %46 : vector<8x128xf32>
    %48 = arith.index_cast %c0_i32 : i32 to index
    %c0_25 = arith.constant 0 : index
    %c0_26 = arith.constant 0 : index
    %49 = vector.load %arg12[%48, %c0_25, %c0_26] : memref<8x8x128xf32, #tpu.memory_space<vmem>>, vector<1x8x128xf32>
    %50 = vector.shape_cast %49 : vector<1x8x128xf32> to vector<8x128xf32>
    %51 = vector.shape_cast %47 : vector<8x128xf32> to vector<1x8x128xf32>
    tpu.vector_store %arg12[%48, %c0_25, %c0_26], %51 {strides = array<i32>} : memref<8x8x128xf32, #tpu.memory_space<vmem>>, vector<1x8x128xf32>,
    %c1_i32 = arith.constant 1 : i32
    %52 = arith.index_cast %c1_i32 : i32 to index
    %c0_27 = arith.constant 0 : index
    %c0_28 = arith.constant 0 : index
    %53 = vector.load %arg11[%52, %c0_27, %c0_28] : memref<8x8x512xf32, #tpu.memory_space<vmem>>, vector<1x8x512xf32>
    %54 = vector.shape_cast %53 : vector<1x8x512xf32> to vector<8x512xf32>
    %c0_29 = arith.constant 0 : index
    %c0_30 = arith.constant 0 : index
    %55 = vector.load %arg3[%c0_29, %c0_30] : memref<128x512xf32, #tpu.memory_space<vmem>>, vector<128x512xf32>
    %cst_31 = arith.constant dense<0.000000e+00> : vector<8x512xf32>
    %56 = tpu.matmul %47, %55, %cst_31 {dimension_numbers = #tpu.dot_dimension_numbers<[1], [0], [0], [1], [0, 0, 1, 1], [], []>} : vector<8x128xf32>, vector<128x512xf32>, vector<8x512xf32> -> vector<8x512xf32>
    %57 = arith.addf %54, %56 : vector<8x512xf32>
    %58 = vector.extract_strided_slice %57 {offsets = [0, 0], sizes = [8, 128], strides = [1, 1]} : vector<8x512xf32> to vector<8x128xf32>
    %cst_32 = arith.constant 5.000000e-01 : f32
    %59 = vector.broadcast %cst_32 : f32 to vector<8x128xf32>
    %60 = arith.mulf %59, %58 : vector<8x128xf32>
    %61 = math.tanh %60 : vector<8x128xf32>
    %cst_33 = arith.constant 5.000000e-01 : f32
    %62 = vector.broadcast %cst_33 : f32 to vector<8x128xf32>
    %63 = arith.mulf %62, %61 : vector<8x128xf32>
    %cst_34 = arith.constant 5.000000e-01 : f32
    %64 = vector.broadcast %cst_34 : f32 to vector<8x128xf32>
    %65 = arith.addf %63, %64 : vector<8x128xf32>
    %66 = vector.extract_strided_slice %57 {offsets = [0, 128], sizes = [8, 128], strides = [1, 1]} : vector<8x512xf32> to vector<8x128xf32>
    %cst_35 = arith.constant 5.000000e-01 : f32
    %67 = vector.broadcast %cst_35 : f32 to vector<8x128xf32>
    %68 = arith.mulf %67, %66 : vector<8x128xf32>
    %69 = math.tanh %68 : vector<8x128xf32>
    %cst_36 = arith.constant 5.000000e-01 : f32
    %70 = vector.broadcast %cst_36 : f32 to vector<8x128xf32>
    %71 = arith.mulf %70, %69 : vector<8x128xf32>
    %cst_37 = arith.constant 5.000000e-01 : f32
    %72 = vector.broadcast %cst_37 : f32 to vector<8x128xf32>
    %73 = arith.addf %71, %72 : vector<8x128xf32>
    %74 = vector.extract_strided_slice %57 {offsets = [0, 256], sizes = [8, 128], strides = [1, 1]} : vector<8x512xf32> to vector<8x128xf32>
    %75 = math.tanh %74 : vector<8x128xf32>
    %76 = vector.extract_strided_slice %57 {offsets = [0, 384], sizes = [8, 128], strides = [1, 1]} : vector<8x512xf32> to vector<8x128xf32>
    %cst_38 = arith.constant 5.000000e-01 : f32
    %77 = vector.broadcast %cst_38 : f32 to vector<8x128xf32>
    %78 = arith.mulf %77, %76 : vector<8x128xf32>
    %79 = math.tanh %78 : vector<8x128xf32>
    %cst_39 = arith.constant 5.000000e-01 : f32
    %80 = vector.broadcast %cst_39 : f32 to vector<8x128xf32>
    %81 = arith.mulf %80, %79 : vector<8x128xf32>
    %cst_40 = arith.constant 5.000000e-01 : f32
    %82 = vector.broadcast %cst_40 : f32 to vector<8x128xf32>
    %83 = arith.addf %81, %82 : vector<8x128xf32>
    %84 = arith.mulf %73, %45 : vector<8x128xf32>
    %85 = arith.mulf %65, %75 : vector<8x128xf32>
    %86 = arith.addf %84, %85 : vector<8x128xf32>
    %87 = math.tanh %86 : vector<8x128xf32>
    %88 = arith.mulf %83, %87 : vector<8x128xf32>
    %89 = arith.index_cast %c1_i32 : i32 to index
    %c0_41 = arith.constant 0 : index
    %c0_42 = arith.constant 0 : index
    %90 = vector.load %arg12[%89, %c0_41, %c0_42] : memref<8x8x128xf32, #tpu.memory_space<vmem>>, vector<1x8x128xf32>
    %91 = vector.shape_cast %90 : vector<1x8x128xf32> to vector<8x128xf32>
    %92 = vector.shape_cast %88 : vector<8x128xf32> to vector<1x8x128xf32>
    tpu.vector_store %arg12[%89, %c0_41, %c0_42], %92 {strides = array<i32>} : memref<8x8x128xf32, #tpu.memory_space<vmem>>, vector<1x8x128xf32>,
    %c2_i32 = arith.constant 2 : i32
    %93 = arith.index_cast %c2_i32 : i32 to index
    %c0_43 = arith.constant 0 : index
    %c0_44 = arith.constant 0 : index
    %94 = vector.load %arg11[%93, %c0_43, %c0_44] : memref<8x8x512xf32, #tpu.memory_space<vmem>>, vector<1x8x512xf32>
    %95 = vector.shape_cast %94 : vector<1x8x512xf32> to vector<8x512xf32>
    %c0_45 = arith.constant 0 : index
    %c0_46 = arith.constant 0 : index
    %96 = vector.load %arg3[%c0_45, %c0_46] : memref<128x512xf32, #tpu.memory_space<vmem>>, vector<128x512xf32>
    %cst_47 = arith.constant dense<0.000000e+00> : vector<8x512xf32>
    %97 = tpu.matmul %88, %96, %cst_47 {dimension_numbers = #tpu.dot_dimension_numbers<[1], [0], [0], [1], [0, 0, 1, 1], [], []>} : vector<8x128xf32>, vector<128x512xf32>, vector<8x512xf32> -> vector<8x512xf32>
    %98 = arith.addf %95, %97 : vector<8x512xf32>
    %99 = vector.extract_strided_slice %98 {offsets = [0, 0], sizes = [8, 128], strides = [1, 1]} : vector<8x512xf32> to vector<8x128xf32>
    %cst_48 = arith.constant 5.000000e-01 : f32
    %100 = vector.broadcast %cst_48 : f32 to vector<8x128xf32>
    %101 = arith.mulf %100, %99 : vector<8x128xf32>
    %102 = math.tanh %101 : vector<8x128xf32>
    %cst_49 = arith.constant 5.000000e-01 : f32
    %103 = vector.broadcast %cst_49 : f32 to vector<8x128xf32>
    %104 = arith.mulf %103, %102 : vector<8x128xf32>
    %cst_50 = arith.constant 5.000000e-01 : f32
    %105 = vector.broadcast %cst_50 : f32 to vector<8x128xf32>
    %106 = arith.addf %104, %105 : vector<8x128xf32>
    %107 = vector.extract_strided_slice %98 {offsets = [0, 128], sizes = [8, 128], strides = [1, 1]} : vector<8x512xf32> to vector<8x128xf32>
    %cst_51 = arith.constant 5.000000e-01 : f32
    %108 = vector.broadcast %cst_51 : f32 to vector<8x128xf32>
    %109 = arith.mulf %108, %107 : vector<8x128xf32>
    %110 = math.tanh %109 : vector<8x128xf32>
    %cst_52 = arith.constant 5.000000e-01 : f32
    %111 = vector.broadcast %cst_52 : f32 to vector<8x128xf32>
    %112 = arith.mulf %111, %110 : vector<8x128xf32>
    %cst_53 = arith.constant 5.000000e-01 : f32
    %113 = vector.broadcast %cst_53 : f32 to vector<8x128xf32>
    %114 = arith.addf %112, %113 : vector<8x128xf32>
    %115 = vector.extract_strided_slice %98 {offsets = [0, 256], sizes = [8, 128], strides = [1, 1]} : vector<8x512xf32> to vector<8x128xf32>
    %116 = math.tanh %115 : vector<8x128xf32>
    %117 = vector.extract_strided_slice %98 {offsets = [0, 384], sizes = [8, 128], strides = [1, 1]} : vector<8x512xf32> to vector<8x128xf32>
    %cst_54 = arith.constant 5.000000e-01 : f32
    %118 = vector.broadcast %cst_54 : f32 to vector<8x128xf32>
    %119 = arith.mulf %118, %117 : vector<8x128xf32>
    %120 = math.tanh %119 : vector<8x128xf32>
    %cst_55 = arith.constant 5.000000e-01 : f32
    %121 = vector.broadcast %cst_55 : f32 to vector<8x128xf32>
    %122 = arith.mulf %121, %120 : vector<8x128xf32>
    %cst_56 = arith.constant 5.000000e-01 : f32
    %123 = vector.broadcast %cst_56 : f32 to vector<8x128xf32>
    %124 = arith.addf %122, %123 : vector<8x128xf32>
    %125 = arith.mulf %114, %86 : vector<8x128xf32>
    %126 = arith.mulf %106, %116 : vector<8x128xf32>
    %127 = arith.addf %125, %126 : vector<8x128xf32>
    %128 = math.tanh %127 : vector<8x128xf32>
    %129 = arith.mulf %124, %128 : vector<8x128xf32>
    %130 = arith.index_cast %c2_i32 : i32 to index
    %c0_57 = arith.constant 0 : index
    %c0_58 = arith.constant 0 : index
    %131 = vector.load %arg12[%130, %c0_57, %c0_58] : memref<8x8x128xf32, #tpu.memory_space<vmem>>, vector<1x8x128xf32>
    %132 = vector.shape_cast %131 : vector<1x8x128xf32> to vector<8x128xf32>
    %133 = vector.shape_cast %129 : vector<8x128xf32> to vector<1x8x128xf32>
    tpu.vector_store %arg12[%130, %c0_57, %c0_58], %133 {strides = array<i32>} : memref<8x8x128xf32, #tpu.memory_space<vmem>>, vector<1x8x128xf32>,
    %c3_i32 = arith.constant 3 : i32
    %134 = arith.index_cast %c3_i32 : i32 to index
    %c0_59 = arith.constant 0 : index
    %c0_60 = arith.constant 0 : index
    %135 = vector.load %arg11[%134, %c0_59, %c0_60] : memref<8x8x512xf32, #tpu.memory_space<vmem>>, vector<1x8x512xf32>
    %136 = vector.shape_cast %135 : vector<1x8x512xf32> to vector<8x512xf32>
    %c0_61 = arith.constant 0 : index
    %c0_62 = arith.constant 0 : index
    %137 = vector.load %arg3[%c0_61, %c0_62] : memref<128x512xf32, #tpu.memory_space<vmem>>, vector<128x512xf32>
    %cst_63 = arith.constant dense<0.000000e+00> : vector<8x512xf32>
    %138 = tpu.matmul %129, %137, %cst_63 {dimension_numbers = #tpu.dot_dimension_numbers<[1], [0], [0], [1], [0, 0, 1, 1], [], []>} : vector<8x128xf32>, vector<128x512xf32>, vector<8x512xf32> -> vector<8x512xf32>
    %139 = arith.addf %136, %138 : vector<8x512xf32>
    %140 = vector.extract_strided_slice %139 {offsets = [0, 0], sizes = [8, 128], strides = [1, 1]} : vector<8x512xf32> to vector<8x128xf32>
    %cst_64 = arith.constant 5.000000e-01 : f32
    %141 = vector.broadcast %cst_64 : f32 to vector<8x128xf32>
    %142 = arith.mulf %141, %140 : vector<8x128xf32>
    %143 = math.tanh %142 : vector<8x128xf32>
    %cst_65 = arith.constant 5.000000e-01 : f32
    %144 = vector.broadcast %cst_65 : f32 to vector<8x128xf32>
    %145 = arith.mulf %144, %143 : vector<8x128xf32>
    %cst_66 = arith.constant 5.000000e-01 : f32
    %146 = vector.broadcast %cst_66 : f32 to vector<8x128xf32>
    %147 = arith.addf %145, %146 : vector<8x128xf32>
    %148 = vector.extract_strided_slice %139 {offsets = [0, 128], sizes = [8, 128], strides = [1, 1]} : vector<8x512xf32> to vector<8x128xf32>
    %cst_67 = arith.constant 5.000000e-01 : f32
    %149 = vector.broadcast %cst_67 : f32 to vector<8x128xf32>
    %150 = arith.mulf %149, %148 : vector<8x128xf32>
    %151 = math.tanh %150 : vector<8x128xf32>
    %cst_68 = arith.constant 5.000000e-01 : f32
    %152 = vector.broadcast %cst_68 : f32 to vector<8x128xf32>
    %153 = arith.mulf %152, %151 : vector<8x128xf32>
    %cst_69 = arith.constant 5.000000e-01 : f32
    %154 = vector.broadcast %cst_69 : f32 to vector<8x128xf32>
    %155 = arith.addf %153, %154 : vector<8x128xf32>
    %156 = vector.extract_strided_slice %139 {offsets = [0, 256], sizes = [8, 128], strides = [1, 1]} : vector<8x512xf32> to vector<8x128xf32>
    %157 = math.tanh %156 : vector<8x128xf32>
    %158 = vector.extract_strided_slice %139 {offsets = [0, 384], sizes = [8, 128], strides = [1, 1]} : vector<8x512xf32> to vector<8x128xf32>
    %cst_70 = arith.constant 5.000000e-01 : f32
    %159 = vector.broadcast %cst_70 : f32 to vector<8x128xf32>
    %160 = arith.mulf %159, %158 : vector<8x128xf32>
    %161 = math.tanh %160 : vector<8x128xf32>
    %cst_71 = arith.constant 5.000000e-01 : f32
    %162 = vector.broadcast %cst_71 : f32 to vector<8x128xf32>
    %163 = arith.mulf %162, %161 : vector<8x128xf32>
    %cst_72 = arith.constant 5.000000e-01 : f32
    %164 = vector.broadcast %cst_72 : f32 to vector<8x128xf32>
    %165 = arith.addf %163, %164 : vector<8x128xf32>
    %166 = arith.mulf %155, %127 : vector<8x128xf32>
    %167 = arith.mulf %147, %157 : vector<8x128xf32>
    %168 = arith.addf %166, %167 : vector<8x128xf32>
    %169 = math.tanh %168 : vector<8x128xf32>
    %170 = arith.mulf %165, %169 : vector<8x128xf32>
    %171 = arith.index_cast %c3_i32 : i32 to index
    %c0_73 = arith.constant 0 : index
    %c0_74 = arith.constant 0 : index
    %172 = vector.load %arg12[%171, %c0_73, %c0_74] : memref<8x8x128xf32, #tpu.memory_space<vmem>>, vector<1x8x128xf32>
    %173 = vector.shape_cast %172 : vector<1x8x128xf32> to vector<8x128xf32>
    %174 = vector.shape_cast %170 : vector<8x128xf32> to vector<1x8x128xf32>
    tpu.vector_store %arg12[%171, %c0_73, %c0_74], %174 {strides = array<i32>} : memref<8x8x128xf32, #tpu.memory_space<vmem>>, vector<1x8x128xf32>,
    %c4_i32 = arith.constant 4 : i32
    %175 = arith.index_cast %c4_i32 : i32 to index
    %c0_75 = arith.constant 0 : index
    %c0_76 = arith.constant 0 : index
    %176 = vector.load %arg11[%175, %c0_75, %c0_76] : memref<8x8x512xf32, #tpu.memory_space<vmem>>, vector<1x8x512xf32>
    %177 = vector.shape_cast %176 : vector<1x8x512xf32> to vector<8x512xf32>
    %c0_77 = arith.constant 0 : index
    %c0_78 = arith.constant 0 : index
    %178 = vector.load %arg3[%c0_77, %c0_78] : memref<128x512xf32, #tpu.memory_space<vmem>>, vector<128x512xf32>
    %cst_79 = arith.constant dense<0.000000e+00> : vector<8x512xf32>
    %179 = tpu.matmul %170, %178, %cst_79 {dimension_numbers = #tpu.dot_dimension_numbers<[1], [0], [0], [1], [0, 0, 1, 1], [], []>} : vector<8x128xf32>, vector<128x512xf32>, vector<8x512xf32> -> vector<8x512xf32>
    %180 = arith.addf %177, %179 : vector<8x512xf32>
    %181 = vector.extract_strided_slice %180 {offsets = [0, 0], sizes = [8, 128], strides = [1, 1]} : vector<8x512xf32> to vector<8x128xf32>
    %cst_80 = arith.constant 5.000000e-01 : f32
    %182 = vector.broadcast %cst_80 : f32 to vector<8x128xf32>
    %183 = arith.mulf %182, %181 : vector<8x128xf32>
    %184 = math.tanh %183 : vector<8x128xf32>
    %cst_81 = arith.constant 5.000000e-01 : f32
    %185 = vector.broadcast %cst_81 : f32 to vector<8x128xf32>
    %186 = arith.mulf %185, %184 : vector<8x128xf32>
    %cst_82 = arith.constant 5.000000e-01 : f32
    %187 = vector.broadcast %cst_82 : f32 to vector<8x128xf32>
    %188 = arith.addf %186, %187 : vector<8x128xf32>
    %189 = vector.extract_strided_slice %180 {offsets = [0, 128], sizes = [8, 128], strides = [1, 1]} : vector<8x512xf32> to vector<8x128xf32>
    %cst_83 = arith.constant 5.000000e-01 : f32
    %190 = vector.broadcast %cst_83 : f32 to vector<8x128xf32>
    %191 = arith.mulf %190, %189 : vector<8x128xf32>
    %192 = math.tanh %191 : vector<8x128xf32>
    %cst_84 = arith.constant 5.000000e-01 : f32
    %193 = vector.broadcast %cst_84 : f32 to vector<8x128xf32>
    %194 = arith.mulf %193, %192 : vector<8x128xf32>
    %cst_85 = arith.constant 5.000000e-01 : f32
    %195 = vector.broadcast %cst_85 : f32 to vector<8x128xf32>
    %196 = arith.addf %194, %195 : vector<8x128xf32>
    %197 = vector.extract_strided_slice %180 {offsets = [0, 256], sizes = [8, 128], strides = [1, 1]} : vector<8x512xf32> to vector<8x128xf32>
    %198 = math.tanh %197 : vector<8x128xf32>
    %199 = vector.extract_strided_slice %180 {offsets = [0, 384], sizes = [8, 128], strides = [1, 1]} : vector<8x512xf32> to vector<8x128xf32>
    %cst_86 = arith.constant 5.000000e-01 : f32
    %200 = vector.broadcast %cst_86 : f32 to vector<8x128xf32>
    %201 = arith.mulf %200, %199 : vector<8x128xf32>
    %202 = math.tanh %201 : vector<8x128xf32>
    %cst_87 = arith.constant 5.000000e-01 : f32
    %203 = vector.broadcast %cst_87 : f32 to vector<8x128xf32>
    %204 = arith.mulf %203, %202 : vector<8x128xf32>
    %cst_88 = arith.constant 5.000000e-01 : f32
    %205 = vector.broadcast %cst_88 : f32 to vector<8x128xf32>
    %206 = arith.addf %204, %205 : vector<8x128xf32>
    %207 = arith.mulf %196, %168 : vector<8x128xf32>
    %208 = arith.mulf %188, %198 : vector<8x128xf32>
    %209 = arith.addf %207, %208 : vector<8x128xf32>
    %210 = math.tanh %209 : vector<8x128xf32>
    %211 = arith.mulf %206, %210 : vector<8x128xf32>
    %212 = arith.index_cast %c4_i32 : i32 to index
    %c0_89 = arith.constant 0 : index
    %c0_90 = arith.constant 0 : index
    %213 = vector.load %arg12[%212, %c0_89, %c0_90] : memref<8x8x128xf32, #tpu.memory_space<vmem>>, vector<1x8x128xf32>
    %214 = vector.shape_cast %213 : vector<1x8x128xf32> to vector<8x128xf32>
    %215 = vector.shape_cast %211 : vector<8x128xf32> to vector<1x8x128xf32>
    tpu.vector_store %arg12[%212, %c0_89, %c0_90], %215 {strides = array<i32>} : memref<8x8x128xf32, #tpu.memory_space<vmem>>, vector<1x8x128xf32>,
    %c5_i32 = arith.constant 5 : i32
    %216 = arith.index_cast %c5_i32 : i32 to index
    %c0_91 = arith.constant 0 : index
    %c0_92 = arith.constant 0 : index
    %217 = vector.load %arg11[%216, %c0_91, %c0_92] : memref<8x8x512xf32, #tpu.memory_space<vmem>>, vector<1x8x512xf32>
    %218 = vector.shape_cast %217 : vector<1x8x512xf32> to vector<8x512xf32>
    %c0_93 = arith.constant 0 : index
    %c0_94 = arith.constant 0 : index
    %219 = vector.load %arg3[%c0_93, %c0_94] : memref<128x512xf32, #tpu.memory_space<vmem>>, vector<128x512xf32>
    %cst_95 = arith.constant dense<0.000000e+00> : vector<8x512xf32>
    %220 = tpu.matmul %211, %219, %cst_95 {dimension_numbers = #tpu.dot_dimension_numbers<[1], [0], [0], [1], [0, 0, 1, 1], [], []>} : vector<8x128xf32>, vector<128x512xf32>, vector<8x512xf32> -> vector<8x512xf32>
    %221 = arith.addf %218, %220 : vector<8x512xf32>
    %222 = vector.extract_strided_slice %221 {offsets = [0, 0], sizes = [8, 128], strides = [1, 1]} : vector<8x512xf32> to vector<8x128xf32>
    %cst_96 = arith.constant 5.000000e-01 : f32
    %223 = vector.broadcast %cst_96 : f32 to vector<8x128xf32>
    %224 = arith.mulf %223, %222 : vector<8x128xf32>
    %225 = math.tanh %224 : vector<8x128xf32>
    %cst_97 = arith.constant 5.000000e-01 : f32
    %226 = vector.broadcast %cst_97 : f32 to vector<8x128xf32>
    %227 = arith.mulf %226, %225 : vector<8x128xf32>
    %cst_98 = arith.constant 5.000000e-01 : f32
    %228 = vector.broadcast %cst_98 : f32 to vector<8x128xf32>
    %229 = arith.addf %227, %228 : vector<8x128xf32>
    %230 = vector.extract_strided_slice %221 {offsets = [0, 128], sizes = [8, 128], strides = [1, 1]} : vector<8x512xf32> to vector<8x128xf32>
    %cst_99 = arith.constant 5.000000e-01 : f32
    %231 = vector.broadcast %cst_99 : f32 to vector<8x128xf32>
    %232 = arith.mulf %231, %230 : vector<8x128xf32>
    %233 = math.tanh %232 : vector<8x128xf32>
    %cst_100 = arith.constant 5.000000e-01 : f32
    %234 = vector.broadcast %cst_100 : f32 to vector<8x128xf32>
    %235 = arith.mulf %234, %233 : vector<8x128xf32>
    %cst_101 = arith.constant 5.000000e-01 : f32
    %236 = vector.broadcast %cst_101 : f32 to vector<8x128xf32>
    %237 = arith.addf %235, %236 : vector<8x128xf32>
    %238 = vector.extract_strided_slice %221 {offsets = [0, 256], sizes = [8, 128], strides = [1, 1]} : vector<8x512xf32> to vector<8x128xf32>
    %239 = math.tanh %238 : vector<8x128xf32>
    %240 = vector.extract_strided_slice %221 {offsets = [0, 384], sizes = [8, 128], strides = [1, 1]} : vector<8x512xf32> to vector<8x128xf32>
    %cst_102 = arith.constant 5.000000e-01 : f32
    %241 = vector.broadcast %cst_102 : f32 to vector<8x128xf32>
    %242 = arith.mulf %241, %240 : vector<8x128xf32>
    %243 = math.tanh %242 : vector<8x128xf32>
    %cst_103 = arith.constant 5.000000e-01 : f32
    %244 = vector.broadcast %cst_103 : f32 to vector<8x128xf32>
    %245 = arith.mulf %244, %243 : vector<8x128xf32>
    %cst_104 = arith.constant 5.000000e-01 : f32
    %246 = vector.broadcast %cst_104 : f32 to vector<8x128xf32>
    %247 = arith.addf %245, %246 : vector<8x128xf32>
    %248 = arith.mulf %237, %209 : vector<8x128xf32>
    %249 = arith.mulf %229, %239 : vector<8x128xf32>
    %250 = arith.addf %248, %249 : vector<8x128xf32>
    %251 = math.tanh %250 : vector<8x128xf32>
    %252 = arith.mulf %247, %251 : vector<8x128xf32>
    %253 = arith.index_cast %c5_i32 : i32 to index
    %c0_105 = arith.constant 0 : index
    %c0_106 = arith.constant 0 : index
    %254 = vector.load %arg12[%253, %c0_105, %c0_106] : memref<8x8x128xf32, #tpu.memory_space<vmem>>, vector<1x8x128xf32>
    %255 = vector.shape_cast %254 : vector<1x8x128xf32> to vector<8x128xf32>
    %256 = vector.shape_cast %252 : vector<8x128xf32> to vector<1x8x128xf32>
    tpu.vector_store %arg12[%253, %c0_105, %c0_106], %256 {strides = array<i32>} : memref<8x8x128xf32, #tpu.memory_space<vmem>>, vector<1x8x128xf32>,
    %c6_i32 = arith.constant 6 : i32
    %257 = arith.index_cast %c6_i32 : i32 to index
    %c0_107 = arith.constant 0 : index
    %c0_108 = arith.constant 0 : index
    %258 = vector.load %arg11[%257, %c0_107, %c0_108] : memref<8x8x512xf32, #tpu.memory_space<vmem>>, vector<1x8x512xf32>
    %259 = vector.shape_cast %258 : vector<1x8x512xf32> to vector<8x512xf32>
    %c0_109 = arith.constant 0 : index
    %c0_110 = arith.constant 0 : index
    %260 = vector.load %arg3[%c0_109, %c0_110] : memref<128x512xf32, #tpu.memory_space<vmem>>, vector<128x512xf32>
    %cst_111 = arith.constant dense<0.000000e+00> : vector<8x512xf32>
    %261 = tpu.matmul %252, %260, %cst_111 {dimension_numbers = #tpu.dot_dimension_numbers<[1], [0], [0], [1], [0, 0, 1, 1], [], []>} : vector<8x128xf32>, vector<128x512xf32>, vector<8x512xf32> -> vector<8x512xf32>
    %262 = arith.addf %259, %261 : vector<8x512xf32>
    %263 = vector.extract_strided_slice %262 {offsets = [0, 0], sizes = [8, 128], strides = [1, 1]} : vector<8x512xf32> to vector<8x128xf32>
    %cst_112 = arith.constant 5.000000e-01 : f32
    %264 = vector.broadcast %cst_112 : f32 to vector<8x128xf32>
    %265 = arith.mulf %264, %263 : vector<8x128xf32>
    %266 = math.tanh %265 : vector<8x128xf32>
    %cst_113 = arith.constant 5.000000e-01 : f32
    %267 = vector.broadcast %cst_113 : f32 to vector<8x128xf32>
    %268 = arith.mulf %267, %266 : vector<8x128xf32>
    %cst_114 = arith.constant 5.000000e-01 : f32
    %269 = vector.broadcast %cst_114 : f32 to vector<8x128xf32>
    %270 = arith.addf %268, %269 : vector<8x128xf32>
    %271 = vector.extract_strided_slice %262 {offsets = [0, 128], sizes = [8, 128], strides = [1, 1]} : vector<8x512xf32> to vector<8x128xf32>
    %cst_115 = arith.constant 5.000000e-01 : f32
    %272 = vector.broadcast %cst_115 : f32 to vector<8x128xf32>
    %273 = arith.mulf %272, %271 : vector<8x128xf32>
    %274 = math.tanh %273 : vector<8x128xf32>
    %cst_116 = arith.constant 5.000000e-01 : f32
    %275 = vector.broadcast %cst_116 : f32 to vector<8x128xf32>
    %276 = arith.mulf %275, %274 : vector<8x128xf32>
    %cst_117 = arith.constant 5.000000e-01 : f32
    %277 = vector.broadcast %cst_117 : f32 to vector<8x128xf32>
    %278 = arith.addf %276, %277 : vector<8x128xf32>
    %279 = vector.extract_strided_slice %262 {offsets = [0, 256], sizes = [8, 128], strides = [1, 1]} : vector<8x512xf32> to vector<8x128xf32>
    %280 = math.tanh %279 : vector<8x128xf32>
    %281 = vector.extract_strided_slice %262 {offsets = [0, 384], sizes = [8, 128], strides = [1, 1]} : vector<8x512xf32> to vector<8x128xf32>
    %cst_118 = arith.constant 5.000000e-01 : f32
    %282 = vector.broadcast %cst_118 : f32 to vector<8x128xf32>
    %283 = arith.mulf %282, %281 : vector<8x128xf32>
    %284 = math.tanh %283 : vector<8x128xf32>
    %cst_119 = arith.constant 5.000000e-01 : f32
    %285 = vector.broadcast %cst_119 : f32 to vector<8x128xf32>
    %286 = arith.mulf %285, %284 : vector<8x128xf32>
    %cst_120 = arith.constant 5.000000e-01 : f32
    %287 = vector.broadcast %cst_120 : f32 to vector<8x128xf32>
    %288 = arith.addf %286, %287 : vector<8x128xf32>
    %289 = arith.mulf %278, %250 : vector<8x128xf32>
    %290 = arith.mulf %270, %280 : vector<8x128xf32>
    %291 = arith.addf %289, %290 : vector<8x128xf32>
    %292 = math.tanh %291 : vector<8x128xf32>
    %293 = arith.mulf %288, %292 : vector<8x128xf32>
    %294 = arith.index_cast %c6_i32 : i32 to index
    %c0_121 = arith.constant 0 : index
    %c0_122 = arith.constant 0 : index
    %295 = vector.load %arg12[%294, %c0_121, %c0_122] : memref<8x8x128xf32, #tpu.memory_space<vmem>>, vector<1x8x128xf32>
    %296 = vector.shape_cast %295 : vector<1x8x128xf32> to vector<8x128xf32>
    %297 = vector.shape_cast %293 : vector<8x128xf32> to vector<1x8x128xf32>
    tpu.vector_store %arg12[%294, %c0_121, %c0_122], %297 {strides = array<i32>} : memref<8x8x128xf32, #tpu.memory_space<vmem>>, vector<1x8x128xf32>,
    %c7_i32 = arith.constant 7 : i32
    %298 = arith.index_cast %c7_i32 : i32 to index
    %c0_123 = arith.constant 0 : index
    %c0_124 = arith.constant 0 : index
    %299 = vector.load %arg11[%298, %c0_123, %c0_124] : memref<8x8x512xf32, #tpu.memory_space<vmem>>, vector<1x8x512xf32>
    %300 = vector.shape_cast %299 : vector<1x8x512xf32> to vector<8x512xf32>
    %c0_125 = arith.constant 0 : index
    %c0_126 = arith.constant 0 : index
    %301 = vector.load %arg3[%c0_125, %c0_126] : memref<128x512xf32, #tpu.memory_space<vmem>>, vector<128x512xf32>
    %cst_127 = arith.constant dense<0.000000e+00> : vector<8x512xf32>
    %302 = tpu.matmul %293, %301, %cst_127 {dimension_numbers = #tpu.dot_dimension_numbers<[1], [0], [0], [1], [0, 0, 1, 1], [], []>} : vector<8x128xf32>, vector<128x512xf32>, vector<8x512xf32> -> vector<8x512xf32>
    %303 = arith.addf %300, %302 : vector<8x512xf32>
    %304 = vector.extract_strided_slice %303 {offsets = [0, 0], sizes = [8, 128], strides = [1, 1]} : vector<8x512xf32> to vector<8x128xf32>
    %cst_128 = arith.constant 5.000000e-01 : f32
    %305 = vector.broadcast %cst_128 : f32 to vector<8x128xf32>
    %306 = arith.mulf %305, %304 : vector<8x128xf32>
    %307 = math.tanh %306 : vector<8x128xf32>
    %cst_129 = arith.constant 5.000000e-01 : f32
    %308 = vector.broadcast %cst_129 : f32 to vector<8x128xf32>
    %309 = arith.mulf %308, %307 : vector<8x128xf32>
    %cst_130 = arith.constant 5.000000e-01 : f32
    %310 = vector.broadcast %cst_130 : f32 to vector<8x128xf32>
    %311 = arith.addf %309, %310 : vector<8x128xf32>
    %312 = vector.extract_strided_slice %303 {offsets = [0, 128], sizes = [8, 128], strides = [1, 1]} : vector<8x512xf32> to vector<8x128xf32>
    %cst_131 = arith.constant 5.000000e-01 : f32
    %313 = vector.broadcast %cst_131 : f32 to vector<8x128xf32>
    %314 = arith.mulf %313, %312 : vector<8x128xf32>
    %315 = math.tanh %314 : vector<8x128xf32>
    %cst_132 = arith.constant 5.000000e-01 : f32
    %316 = vector.broadcast %cst_132 : f32 to vector<8x128xf32>
    %317 = arith.mulf %316, %315 : vector<8x128xf32>
    %cst_133 = arith.constant 5.000000e-01 : f32
    %318 = vector.broadcast %cst_133 : f32 to vector<8x128xf32>
    %319 = arith.addf %317, %318 : vector<8x128xf32>
    %320 = vector.extract_strided_slice %303 {offsets = [0, 256], sizes = [8, 128], strides = [1, 1]} : vector<8x512xf32> to vector<8x128xf32>
    %321 = math.tanh %320 : vector<8x128xf32>
    %322 = vector.extract_strided_slice %303 {offsets = [0, 384], sizes = [8, 128], strides = [1, 1]} : vector<8x512xf32> to vector<8x128xf32>
    %cst_134 = arith.constant 5.000000e-01 : f32
    %323 = vector.broadcast %cst_134 : f32 to vector<8x128xf32>
    %324 = arith.mulf %323, %322 : vector<8x128xf32>
    %325 = math.tanh %324 : vector<8x128xf32>
    %cst_135 = arith.constant 5.000000e-01 : f32
    %326 = vector.broadcast %cst_135 : f32 to vector<8x128xf32>
    %327 = arith.mulf %326, %325 : vector<8x128xf32>
    %cst_136 = arith.constant 5.000000e-01 : f32
    %328 = vector.broadcast %cst_136 : f32 to vector<8x128xf32>
    %329 = arith.addf %327, %328 : vector<8x128xf32>
    %330 = arith.mulf %319, %291 : vector<8x128xf32>
    %331 = arith.mulf %311, %321 : vector<8x128xf32>
    %332 = arith.addf %330, %331 : vector<8x128xf32>
    %333 = math.tanh %332 : vector<8x128xf32>
    %334 = arith.mulf %329, %333 : vector<8x128xf32>
    %335 = arith.index_cast %c7_i32 : i32 to index
    %c0_137 = arith.constant 0 : index
    %c0_138 = arith.constant 0 : index
    %336 = vector.load %arg12[%335, %c0_137, %c0_138] : memref<8x8x128xf32, #tpu.memory_space<vmem>>, vector<1x8x128xf32>
    %337 = vector.shape_cast %336 : vector<1x8x128xf32> to vector<8x128xf32>
    %338 = vector.shape_cast %334 : vector<8x128xf32> to vector<1x8x128xf32>
    tpu.vector_store %arg12[%335, %c0_137, %c0_138], %338 {strides = array<i32>} : memref<8x8x128xf32, #tpu.memory_space<vmem>>, vector<1x8x128xf32>,
    %c8_i32 = arith.constant 8 : i32
    %c0_139 = arith.constant 0 : index
    %c0_140 = arith.constant 0 : index
    %c0_141 = arith.constant 0 : index
    %339 = vector.load %arg12[%c0_139, %c0_140, %c0_141] : memref<8x8x128xf32, #tpu.memory_space<vmem>>, vector<8x8x128xf32>
    %340 = vector.shape_cast %339 : vector<8x8x128xf32> to vector<64x128xf32>
    %c0_142 = arith.constant 0 : index
    %c0_143 = arith.constant 0 : index
    %341 = vector.load %arg5[%c0_142, %c0_143] : memref<128x512xf32, #tpu.memory_space<vmem>>, vector<128x512xf32>
    %cst_144 = arith.constant dense<0.000000e+00> : vector<64x512xf32>
    %342 = tpu.matmul %340, %341, %cst_144 {dimension_numbers = #tpu.dot_dimension_numbers<[1], [0], [0], [1], [0, 0, 1, 1], [], []>} : vector<64x128xf32>, vector<128x512xf32>, vector<64x512xf32> -> vector<64x512xf32>
    %c0_145 = arith.constant 0 : index
    %c0_146 = arith.constant 0 : index
    %343 = vector.load %arg7[%c0_145, %c0_146] : memref<1x512xf32, #tpu.memory_space<vmem>>, vector<1x512xf32>
    %344 = vector.broadcast %343 : vector<1x512xf32> to vector<64x512xf32>
    %345 = arith.addf %342, %344 : vector<64x512xf32>
    %346 = vector.shape_cast %345 : vector<64x512xf32> to vector<8x8x512xf32>
    %c0_147 = arith.constant 0 : index
    %c0_148 = arith.constant 0 : index
    %c0_149 = arith.constant 0 : index
    %347 = vector.load %arg11[%c0_147, %c0_148, %c0_149] : memref<8x8x512xf32, #tpu.memory_space<vmem>>, vector<8x8x512xf32>
    tpu.vector_store %arg11[%c0_147, %c0_148, %c0_149], %346 {strides = array<i32>} : memref<8x8x512xf32, #tpu.memory_space<vmem>>, vector<8x8x512xf32>,
    %c0_i32_150 = arith.constant 0 : i32
    %348 = arith.index_cast %c0_i32_150 : i32 to index
    %c0_151 = arith.constant 0 : index
    %c0_152 = arith.constant 0 : index
    %349 = vector.load %arg11[%348, %c0_151, %c0_152] : memref<8x8x512xf32, #tpu.memory_space<vmem>>, vector<1x8x512xf32>
    %350 = vector.shape_cast %349 : vector<1x8x512xf32> to vector<8x512xf32>
    %c0_153 = arith.constant 0 : index
    %c0_154 = arith.constant 0 : index
    %351 = vector.load %arg6[%c0_153, %c0_154] : memref<128x512xf32, #tpu.memory_space<vmem>>, vector<128x512xf32>
    %cst_155 = arith.constant dense<0.000000e+00> : vector<8x512xf32>
    %352 = tpu.matmul %9, %351, %cst_155 {dimension_numbers = #tpu.dot_dimension_numbers<[1], [0], [0], [1], [0, 0, 1, 1], [], []>} : vector<8x128xf32>, vector<128x512xf32>, vector<8x512xf32> -> vector<8x512xf32>
    %353 = arith.addf %350, %352 : vector<8x512xf32>
    %354 = vector.extract_strided_slice %353 {offsets = [0, 0], sizes = [8, 128], strides = [1, 1]} : vector<8x512xf32> to vector<8x128xf32>
    %cst_156 = arith.constant 5.000000e-01 : f32
    %355 = vector.broadcast %cst_156 : f32 to vector<8x128xf32>
    %356 = arith.mulf %355, %354 : vector<8x128xf32>
    %357 = math.tanh %356 : vector<8x128xf32>
    %cst_157 = arith.constant 5.000000e-01 : f32
    %358 = vector.broadcast %cst_157 : f32 to vector<8x128xf32>
    %359 = arith.mulf %358, %357 : vector<8x128xf32>
    %cst_158 = arith.constant 5.000000e-01 : f32
    %360 = vector.broadcast %cst_158 : f32 to vector<8x128xf32>
    %361 = arith.addf %359, %360 : vector<8x128xf32>
    %362 = vector.extract_strided_slice %353 {offsets = [0, 128], sizes = [8, 128], strides = [1, 1]} : vector<8x512xf32> to vector<8x128xf32>
    %cst_159 = arith.constant 5.000000e-01 : f32
    %363 = vector.broadcast %cst_159 : f32 to vector<8x128xf32>
    %364 = arith.mulf %363, %362 : vector<8x128xf32>
    %365 = math.tanh %364 : vector<8x128xf32>
    %cst_160 = arith.constant 5.000000e-01 : f32
    %366 = vector.broadcast %cst_160 : f32 to vector<8x128xf32>
    %367 = arith.mulf %366, %365 : vector<8x128xf32>
    %cst_161 = arith.constant 5.000000e-01 : f32
    %368 = vector.broadcast %cst_161 : f32 to vector<8x128xf32>
    %369 = arith.addf %367, %368 : vector<8x128xf32>
    %370 = vector.extract_strided_slice %353 {offsets = [0, 256], sizes = [8, 128], strides = [1, 1]} : vector<8x512xf32> to vector<8x128xf32>
    %371 = math.tanh %370 : vector<8x128xf32>
    %372 = vector.extract_strided_slice %353 {offsets = [0, 384], sizes = [8, 128], strides = [1, 1]} : vector<8x512xf32> to vector<8x128xf32>
    %cst_162 = arith.constant 5.000000e-01 : f32
    %373 = vector.broadcast %cst_162 : f32 to vector<8x128xf32>
    %374 = arith.mulf %373, %372 : vector<8x128xf32>
    %375 = math.tanh %374 : vector<8x128xf32>
    %cst_163 = arith.constant 5.000000e-01 : f32
    %376 = vector.broadcast %cst_163 : f32 to vector<8x128xf32>
    %377 = arith.mulf %376, %375 : vector<8x128xf32>
    %cst_164 = arith.constant 5.000000e-01 : f32
    %378 = vector.broadcast %cst_164 : f32 to vector<8x128xf32>
    %379 = arith.addf %377, %378 : vector<8x128xf32>
    %380 = arith.mulf %369, %10 : vector<8x128xf32>
    %381 = arith.mulf %361, %371 : vector<8x128xf32>
    %382 = arith.addf %380, %381 : vector<8x128xf32>
    %383 = math.tanh %382 : vector<8x128xf32>
    %384 = arith.mulf %379, %383 : vector<8x128xf32>
    %c1_i32_165 = arith.constant 1 : i32
    %385 = arith.index_cast %c1_i32_165 : i32 to index
    %c0_166 = arith.constant 0 : index
    %c0_167 = arith.constant 0 : index
    %386 = vector.load %arg11[%385, %c0_166, %c0_167] : memref<8x8x512xf32, #tpu.memory_space<vmem>>, vector<1x8x512xf32>
    %387 = vector.shape_cast %386 : vector<1x8x512xf32> to vector<8x512xf32>
    %c0_168 = arith.constant 0 : index
    %c0_169 = arith.constant 0 : index
    %388 = vector.load %arg6[%c0_168, %c0_169] : memref<128x512xf32, #tpu.memory_space<vmem>>, vector<128x512xf32>
    %cst_170 = arith.constant dense<0.000000e+00> : vector<8x512xf32>
    %389 = tpu.matmul %384, %388, %cst_170 {dimension_numbers = #tpu.dot_dimension_numbers<[1], [0], [0], [1], [0, 0, 1, 1], [], []>} : vector<8x128xf32>, vector<128x512xf32>, vector<8x512xf32> -> vector<8x512xf32>
    %390 = arith.addf %387, %389 : vector<8x512xf32>
    %391 = vector.extract_strided_slice %390 {offsets = [0, 0], sizes = [8, 128], strides = [1, 1]} : vector<8x512xf32> to vector<8x128xf32>
    %cst_171 = arith.constant 5.000000e-01 : f32
    %392 = vector.broadcast %cst_171 : f32 to vector<8x128xf32>
    %393 = arith.mulf %392, %391 : vector<8x128xf32>
    %394 = math.tanh %393 : vector<8x128xf32>
    %cst_172 = arith.constant 5.000000e-01 : f32
    %395 = vector.broadcast %cst_172 : f32 to vector<8x128xf32>
    %396 = arith.mulf %395, %394 : vector<8x128xf32>
    %cst_173 = arith.constant 5.000000e-01 : f32
    %397 = vector.broadcast %cst_173 : f32 to vector<8x128xf32>
    %398 = arith.addf %396, %397 : vector<8x128xf32>
    %399 = vector.extract_strided_slice %390 {offsets = [0, 128], sizes = [8, 128], strides = [1, 1]} : vector<8x512xf32> to vector<8x128xf32>
    %cst_174 = arith.constant 5.000000e-01 : f32
    %400 = vector.broadcast %cst_174 : f32 to vector<8x128xf32>
    %401 = arith.mulf %400, %399 : vector<8x128xf32>
    %402 = math.tanh %401 : vector<8x128xf32>
    %cst_175 = arith.constant 5.000000e-01 : f32
    %403 = vector.broadcast %cst_175 : f32 to vector<8x128xf32>
    %404 = arith.mulf %403, %402 : vector<8x128xf32>
    %cst_176 = arith.constant 5.000000e-01 : f32
    %405 = vector.broadcast %cst_176 : f32 to vector<8x128xf32>
    %406 = arith.addf %404, %405 : vector<8x128xf32>
    %407 = vector.extract_strided_slice %390 {offsets = [0, 256], sizes = [8, 128], strides = [1, 1]} : vector<8x512xf32> to vector<8x128xf32>
    %408 = math.tanh %407 : vector<8x128xf32>
    %409 = vector.extract_strided_slice %390 {offsets = [0, 384], sizes = [8, 128], strides = [1, 1]} : vector<8x512xf32> to vector<8x128xf32>
    %cst_177 = arith.constant 5.000000e-01 : f32
    %410 = vector.broadcast %cst_177 : f32 to vector<8x128xf32>
    %411 = arith.mulf %410, %409 : vector<8x128xf32>
    %412 = math.tanh %411 : vector<8x128xf32>
    %cst_178 = arith.constant 5.000000e-01 : f32
    %413 = vector.broadcast %cst_178 : f32 to vector<8x128xf32>
    %414 = arith.mulf %413, %412 : vector<8x128xf32>
    %cst_179 = arith.constant 5.000000e-01 : f32
    %415 = vector.broadcast %cst_179 : f32 to vector<8x128xf32>
    %416 = arith.addf %414, %415 : vector<8x128xf32>
    %417 = arith.mulf %406, %382 : vector<8x128xf32>
    %418 = arith.mulf %398, %408 : vector<8x128xf32>
    %419 = arith.addf %417, %418 : vector<8x128xf32>
    %420 = math.tanh %419 : vector<8x128xf32>
    %421 = arith.mulf %416, %420 : vector<8x128xf32>
    %c2_i32_180 = arith.constant 2 : i32
    %422 = arith.index_cast %c2_i32_180 : i32 to index
    %c0_181 = arith.constant 0 : index
    %c0_182 = arith.constant 0 : index
    %423 = vector.load %arg11[%422, %c0_181, %c0_182] : memref<8x8x512xf32, #tpu.memory_space<vmem>>, vector<1x8x512xf32>
    %424 = vector.shape_cast %423 : vector<1x8x512xf32> to vector<8x512xf32>
    %c0_183 = arith.constant 0 : index
    %c0_184 = arith.constant 0 : index
    %425 = vector.load %arg6[%c0_183, %c0_184] : memref<128x512xf32, #tpu.memory_space<vmem>>, vector<128x512xf32>
    %cst_185 = arith.constant dense<0.000000e+00> : vector<8x512xf32>
    %426 = tpu.matmul %421, %425, %cst_185 {dimension_numbers = #tpu.dot_dimension_numbers<[1], [0], [0], [1], [0, 0, 1, 1], [], []>} : vector<8x128xf32>, vector<128x512xf32>, vector<8x512xf32> -> vector<8x512xf32>
    %427 = arith.addf %424, %426 : vector<8x512xf32>
    %428 = vector.extract_strided_slice %427 {offsets = [0, 0], sizes = [8, 128], strides = [1, 1]} : vector<8x512xf32> to vector<8x128xf32>
    %cst_186 = arith.constant 5.000000e-01 : f32
    %429 = vector.broadcast %cst_186 : f32 to vector<8x128xf32>
    %430 = arith.mulf %429, %428 : vector<8x128xf32>
    %431 = math.tanh %430 : vector<8x128xf32>
    %cst_187 = arith.constant 5.000000e-01 : f32
    %432 = vector.broadcast %cst_187 : f32 to vector<8x128xf32>
    %433 = arith.mulf %432, %431 : vector<8x128xf32>
    %cst_188 = arith.constant 5.000000e-01 : f32
    %434 = vector.broadcast %cst_188 : f32 to vector<8x128xf32>
    %435 = arith.addf %433, %434 : vector<8x128xf32>
    %436 = vector.extract_strided_slice %427 {offsets = [0, 128], sizes = [8, 128], strides = [1, 1]} : vector<8x512xf32> to vector<8x128xf32>
    %cst_189 = arith.constant 5.000000e-01 : f32
    %437 = vector.broadcast %cst_189 : f32 to vector<8x128xf32>
    %438 = arith.mulf %437, %436 : vector<8x128xf32>
    %439 = math.tanh %438 : vector<8x128xf32>
    %cst_190 = arith.constant 5.000000e-01 : f32
    %440 = vector.broadcast %cst_190 : f32 to vector<8x128xf32>
    %441 = arith.mulf %440, %439 : vector<8x128xf32>
    %cst_191 = arith.constant 5.000000e-01 : f32
    %442 = vector.broadcast %cst_191 : f32 to vector<8x128xf32>
    %443 = arith.addf %441, %442 : vector<8x128xf32>
    %444 = vector.extract_strided_slice %427 {offsets = [0, 256], sizes = [8, 128], strides = [1, 1]} : vector<8x512xf32> to vector<8x128xf32>
    %445 = math.tanh %444 : vector<8x128xf32>
    %446 = vector.extract_strided_slice %427 {offsets = [0, 384], sizes = [8, 128], strides = [1, 1]} : vector<8x512xf32> to vector<8x128xf32>
    %cst_192 = arith.constant 5.000000e-01 : f32
    %447 = vector.broadcast %cst_192 : f32 to vector<8x128xf32>
    %448 = arith.mulf %447, %446 : vector<8x128xf32>
    %449 = math.tanh %448 : vector<8x128xf32>
    %cst_193 = arith.constant 5.000000e-01 : f32
    %450 = vector.broadcast %cst_193 : f32 to vector<8x128xf32>
    %451 = arith.mulf %450, %449 : vector<8x128xf32>
    %cst_194 = arith.constant 5.000000e-01 : f32
    %452 = vector.broadcast %cst_194 : f32 to vector<8x128xf32>
    %453 = arith.addf %451, %452 : vector<8x128xf32>
    %454 = arith.mulf %443, %419 : vector<8x128xf32>
    %455 = arith.mulf %435, %445 : vector<8x128xf32>
    %456 = arith.addf %454, %455 : vector<8x128xf32>
    %457 = math.tanh %456 : vector<8x128xf32>
    %458 = arith.mulf %453, %457 : vector<8x128xf32>
    %c3_i32_195 = arith.constant 3 : i32
    %459 = arith.index_cast %c3_i32_195 : i32 to index
    %c0_196 = arith.constant 0 : index
    %c0_197 = arith.constant 0 : index
    %460 = vector.load %arg11[%459, %c0_196, %c0_197] : memref<8x8x512xf32, #tpu.memory_space<vmem>>, vector<1x8x512xf32>
    %461 = vector.shape_cast %460 : vector<1x8x512xf32> to vector<8x512xf32>
    %c0_198 = arith.constant 0 : index
    %c0_199 = arith.constant 0 : index
    %462 = vector.load %arg6[%c0_198, %c0_199] : memref<128x512xf32, #tpu.memory_space<vmem>>, vector<128x512xf32>
    %cst_200 = arith.constant dense<0.000000e+00> : vector<8x512xf32>
    %463 = tpu.matmul %458, %462, %cst_200 {dimension_numbers = #tpu.dot_dimension_numbers<[1], [0], [0], [1], [0, 0, 1, 1], [], []>} : vector<8x128xf32>, vector<128x512xf32>, vector<8x512xf32> -> vector<8x512xf32>
    %464 = arith.addf %461, %463 : vector<8x512xf32>
    %465 = vector.extract_strided_slice %464 {offsets = [0, 0], sizes = [8, 128], strides = [1, 1]} : vector<8x512xf32> to vector<8x128xf32>
    %cst_201 = arith.constant 5.000000e-01 : f32
    %466 = vector.broadcast %cst_201 : f32 to vector<8x128xf32>
    %467 = arith.mulf %466, %465 : vector<8x128xf32>
    %468 = math.tanh %467 : vector<8x128xf32>
    %cst_202 = arith.constant 5.000000e-01 : f32
    %469 = vector.broadcast %cst_202 : f32 to vector<8x128xf32>
    %470 = arith.mulf %469, %468 : vector<8x128xf32>
    %cst_203 = arith.constant 5.000000e-01 : f32
    %471 = vector.broadcast %cst_203 : f32 to vector<8x128xf32>
    %472 = arith.addf %470, %471 : vector<8x128xf32>
    %473 = vector.extract_strided_slice %464 {offsets = [0, 128], sizes = [8, 128], strides = [1, 1]} : vector<8x512xf32> to vector<8x128xf32>
    %cst_204 = arith.constant 5.000000e-01 : f32
    %474 = vector.broadcast %cst_204 : f32 to vector<8x128xf32>
    %475 = arith.mulf %474, %473 : vector<8x128xf32>
    %476 = math.tanh %475 : vector<8x128xf32>
    %cst_205 = arith.constant 5.000000e-01 : f32
    %477 = vector.broadcast %cst_205 : f32 to vector<8x128xf32>
    %478 = arith.mulf %477, %476 : vector<8x128xf32>
    %cst_206 = arith.constant 5.000000e-01 : f32
    %479 = vector.broadcast %cst_206 : f32 to vector<8x128xf32>
    %480 = arith.addf %478, %479 : vector<8x128xf32>
    %481 = vector.extract_strided_slice %464 {offsets = [0, 256], sizes = [8, 128], strides = [1, 1]} : vector<8x512xf32> to vector<8x128xf32>
    %482 = math.tanh %481 : vector<8x128xf32>
    %483 = vector.extract_strided_slice %464 {offsets = [0, 384], sizes = [8, 128], strides = [1, 1]} : vector<8x512xf32> to vector<8x128xf32>
    %cst_207 = arith.constant 5.000000e-01 : f32
    %484 = vector.broadcast %cst_207 : f32 to vector<8x128xf32>
    %485 = arith.mulf %484, %483 : vector<8x128xf32>
    %486 = math.tanh %485 : vector<8x128xf32>
    %cst_208 = arith.constant 5.000000e-01 : f32
    %487 = vector.broadcast %cst_208 : f32 to vector<8x128xf32>
    %488 = arith.mulf %487, %486 : vector<8x128xf32>
    %cst_209 = arith.constant 5.000000e-01 : f32
    %489 = vector.broadcast %cst_209 : f32 to vector<8x128xf32>
    %490 = arith.addf %488, %489 : vector<8x128xf32>
    %491 = arith.mulf %480, %456 : vector<8x128xf32>
    %492 = arith.mulf %472, %482 : vector<8x128xf32>
    %493 = arith.addf %491, %492 : vector<8x128xf32>
    %494 = math.tanh %493 : vector<8x128xf32>
    %495 = arith.mulf %490, %494 : vector<8x128xf32>
    %c4_i32_210 = arith.constant 4 : i32
    %496 = arith.index_cast %c4_i32_210 : i32 to index
    %c0_211 = arith.constant 0 : index
    %c0_212 = arith.constant 0 : index
    %497 = vector.load %arg11[%496, %c0_211, %c0_212] : memref<8x8x512xf32, #tpu.memory_space<vmem>>, vector<1x8x512xf32>
    %498 = vector.shape_cast %497 : vector<1x8x512xf32> to vector<8x512xf32>
    %c0_213 = arith.constant 0 : index
    %c0_214 = arith.constant 0 : index
    %499 = vector.load %arg6[%c0_213, %c0_214] : memref<128x512xf32, #tpu.memory_space<vmem>>, vector<128x512xf32>
    %cst_215 = arith.constant dense<0.000000e+00> : vector<8x512xf32>
    %500 = tpu.matmul %495, %499, %cst_215 {dimension_numbers = #tpu.dot_dimension_numbers<[1], [0], [0], [1], [0, 0, 1, 1], [], []>} : vector<8x128xf32>, vector<128x512xf32>, vector<8x512xf32> -> vector<8x512xf32>
    %501 = arith.addf %498, %500 : vector<8x512xf32>
    %502 = vector.extract_strided_slice %501 {offsets = [0, 0], sizes = [8, 128], strides = [1, 1]} : vector<8x512xf32> to vector<8x128xf32>
    %cst_216 = arith.constant 5.000000e-01 : f32
    %503 = vector.broadcast %cst_216 : f32 to vector<8x128xf32>
    %504 = arith.mulf %503, %502 : vector<8x128xf32>
    %505 = math.tanh %504 : vector<8x128xf32>
    %cst_217 = arith.constant 5.000000e-01 : f32
    %506 = vector.broadcast %cst_217 : f32 to vector<8x128xf32>
    %507 = arith.mulf %506, %505 : vector<8x128xf32>
    %cst_218 = arith.constant 5.000000e-01 : f32
    %508 = vector.broadcast %cst_218 : f32 to vector<8x128xf32>
    %509 = arith.addf %507, %508 : vector<8x128xf32>
    %510 = vector.extract_strided_slice %501 {offsets = [0, 128], sizes = [8, 128], strides = [1, 1]} : vector<8x512xf32> to vector<8x128xf32>
    %cst_219 = arith.constant 5.000000e-01 : f32
    %511 = vector.broadcast %cst_219 : f32 to vector<8x128xf32>
    %512 = arith.mulf %511, %510 : vector<8x128xf32>
    %513 = math.tanh %512 : vector<8x128xf32>
    %cst_220 = arith.constant 5.000000e-01 : f32
    %514 = vector.broadcast %cst_220 : f32 to vector<8x128xf32>
    %515 = arith.mulf %514, %513 : vector<8x128xf32>
    %cst_221 = arith.constant 5.000000e-01 : f32
    %516 = vector.broadcast %cst_221 : f32 to vector<8x128xf32>
    %517 = arith.addf %515, %516 : vector<8x128xf32>
    %518 = vector.extract_strided_slice %501 {offsets = [0, 256], sizes = [8, 128], strides = [1, 1]} : vector<8x512xf32> to vector<8x128xf32>
    %519 = math.tanh %518 : vector<8x128xf32>
    %520 = vector.extract_strided_slice %501 {offsets = [0, 384], sizes = [8, 128], strides = [1, 1]} : vector<8x512xf32> to vector<8x128xf32>
    %cst_222 = arith.constant 5.000000e-01 : f32
    %521 = vector.broadcast %cst_222 : f32 to vector<8x128xf32>
    %522 = arith.mulf %521, %520 : vector<8x128xf32>
    %523 = math.tanh %522 : vector<8x128xf32>
    %cst_223 = arith.constant 5.000000e-01 : f32
    %524 = vector.broadcast %cst_223 : f32 to vector<8x128xf32>
    %525 = arith.mulf %524, %523 : vector<8x128xf32>
    %cst_224 = arith.constant 5.000000e-01 : f32
    %526 = vector.broadcast %cst_224 : f32 to vector<8x128xf32>
    %527 = arith.addf %525, %526 : vector<8x128xf32>
    %528 = arith.mulf %517, %493 : vector<8x128xf32>
    %529 = arith.mulf %509, %519 : vector<8x128xf32>
    %530 = arith.addf %528, %529 : vector<8x128xf32>
    %531 = math.tanh %530 : vector<8x128xf32>
    %532 = arith.mulf %527, %531 : vector<8x128xf32>
    %c5_i32_225 = arith.constant 5 : i32
    %533 = arith.index_cast %c5_i32_225 : i32 to index
    %c0_226 = arith.constant 0 : index
    %c0_227 = arith.constant 0 : index
    %534 = vector.load %arg11[%533, %c0_226, %c0_227] : memref<8x8x512xf32, #tpu.memory_space<vmem>>, vector<1x8x512xf32>
    %535 = vector.shape_cast %534 : vector<1x8x512xf32> to vector<8x512xf32>
    %c0_228 = arith.constant 0 : index
    %c0_229 = arith.constant 0 : index
    %536 = vector.load %arg6[%c0_228, %c0_229] : memref<128x512xf32, #tpu.memory_space<vmem>>, vector<128x512xf32>
    %cst_230 = arith.constant dense<0.000000e+00> : vector<8x512xf32>
    %537 = tpu.matmul %532, %536, %cst_230 {dimension_numbers = #tpu.dot_dimension_numbers<[1], [0], [0], [1], [0, 0, 1, 1], [], []>} : vector<8x128xf32>, vector<128x512xf32>, vector<8x512xf32> -> vector<8x512xf32>
    %538 = arith.addf %535, %537 : vector<8x512xf32>
    %539 = vector.extract_strided_slice %538 {offsets = [0, 0], sizes = [8, 128], strides = [1, 1]} : vector<8x512xf32> to vector<8x128xf32>
    %cst_231 = arith.constant 5.000000e-01 : f32
    %540 = vector.broadcast %cst_231 : f32 to vector<8x128xf32>
    %541 = arith.mulf %540, %539 : vector<8x128xf32>
    %542 = math.tanh %541 : vector<8x128xf32>
    %cst_232 = arith.constant 5.000000e-01 : f32
    %543 = vector.broadcast %cst_232 : f32 to vector<8x128xf32>
    %544 = arith.mulf %543, %542 : vector<8x128xf32>
    %cst_233 = arith.constant 5.000000e-01 : f32
    %545 = vector.broadcast %cst_233 : f32 to vector<8x128xf32>
    %546 = arith.addf %544, %545 : vector<8x128xf32>
    %547 = vector.extract_strided_slice %538 {offsets = [0, 128], sizes = [8, 128], strides = [1, 1]} : vector<8x512xf32> to vector<8x128xf32>
    %cst_234 = arith.constant 5.000000e-01 : f32
    %548 = vector.broadcast %cst_234 : f32 to vector<8x128xf32>
    %549 = arith.mulf %548, %547 : vector<8x128xf32>
    %550 = math.tanh %549 : vector<8x128xf32>
    %cst_235 = arith.constant 5.000000e-01 : f32
    %551 = vector.broadcast %cst_235 : f32 to vector<8x128xf32>
    %552 = arith.mulf %551, %550 : vector<8x128xf32>
    %cst_236 = arith.constant 5.000000e-01 : f32
    %553 = vector.broadcast %cst_236 : f32 to vector<8x128xf32>
    %554 = arith.addf %552, %553 : vector<8x128xf32>
    %555 = vector.extract_strided_slice %538 {offsets = [0, 256], sizes = [8, 128], strides = [1, 1]} : vector<8x512xf32> to vector<8x128xf32>
    %556 = math.tanh %555 : vector<8x128xf32>
    %557 = vector.extract_strided_slice %538 {offsets = [0, 384], sizes = [8, 128], strides = [1, 1]} : vector<8x512xf32> to vector<8x128xf32>
    %cst_237 = arith.constant 5.000000e-01 : f32
    %558 = vector.broadcast %cst_237 : f32 to vector<8x128xf32>
    %559 = arith.mulf %558, %557 : vector<8x128xf32>
    %560 = math.tanh %559 : vector<8x128xf32>
    %cst_238 = arith.constant 5.000000e-01 : f32
    %561 = vector.broadcast %cst_238 : f32 to vector<8x128xf32>
    %562 = arith.mulf %561, %560 : vector<8x128xf32>
    %cst_239 = arith.constant 5.000000e-01 : f32
    %563 = vector.broadcast %cst_239 : f32 to vector<8x128xf32>
    %564 = arith.addf %562, %563 : vector<8x128xf32>
    %565 = arith.mulf %554, %530 : vector<8x128xf32>
    %566 = arith.mulf %546, %556 : vector<8x128xf32>
    %567 = arith.addf %565, %566 : vector<8x128xf32>
    %568 = math.tanh %567 : vector<8x128xf32>
    %569 = arith.mulf %564, %568 : vector<8x128xf32>
    %c6_i32_240 = arith.constant 6 : i32
    %570 = arith.index_cast %c6_i32_240 : i32 to index
    %c0_241 = arith.constant 0 : index
    %c0_242 = arith.constant 0 : index
    %571 = vector.load %arg11[%570, %c0_241, %c0_242] : memref<8x8x512xf32, #tpu.memory_space<vmem>>, vector<1x8x512xf32>
    %572 = vector.shape_cast %571 : vector<1x8x512xf32> to vector<8x512xf32>
    %c0_243 = arith.constant 0 : index
    %c0_244 = arith.constant 0 : index
    %573 = vector.load %arg6[%c0_243, %c0_244] : memref<128x512xf32, #tpu.memory_space<vmem>>, vector<128x512xf32>
    %cst_245 = arith.constant dense<0.000000e+00> : vector<8x512xf32>
    %574 = tpu.matmul %569, %573, %cst_245 {dimension_numbers = #tpu.dot_dimension_numbers<[1], [0], [0], [1], [0, 0, 1, 1], [], []>} : vector<8x128xf32>, vector<128x512xf32>, vector<8x512xf32> -> vector<8x512xf32>
    %575 = arith.addf %572, %574 : vector<8x512xf32>
    %576 = vector.extract_strided_slice %575 {offsets = [0, 0], sizes = [8, 128], strides = [1, 1]} : vector<8x512xf32> to vector<8x128xf32>
    %cst_246 = arith.constant 5.000000e-01 : f32
    %577 = vector.broadcast %cst_246 : f32 to vector<8x128xf32>
    %578 = arith.mulf %577, %576 : vector<8x128xf32>
    %579 = math.tanh %578 : vector<8x128xf32>
    %cst_247 = arith.constant 5.000000e-01 : f32
    %580 = vector.broadcast %cst_247 : f32 to vector<8x128xf32>
    %581 = arith.mulf %580, %579 : vector<8x128xf32>
    %cst_248 = arith.constant 5.000000e-01 : f32
    %582 = vector.broadcast %cst_248 : f32 to vector<8x128xf32>
    %583 = arith.addf %581, %582 : vector<8x128xf32>
    %584 = vector.extract_strided_slice %575 {offsets = [0, 128], sizes = [8, 128], strides = [1, 1]} : vector<8x512xf32> to vector<8x128xf32>
    %cst_249 = arith.constant 5.000000e-01 : f32
    %585 = vector.broadcast %cst_249 : f32 to vector<8x128xf32>
    %586 = arith.mulf %585, %584 : vector<8x128xf32>
    %587 = math.tanh %586 : vector<8x128xf32>
    %cst_250 = arith.constant 5.000000e-01 : f32
    %588 = vector.broadcast %cst_250 : f32 to vector<8x128xf32>
    %589 = arith.mulf %588, %587 : vector<8x128xf32>
    %cst_251 = arith.constant 5.000000e-01 : f32
    %590 = vector.broadcast %cst_251 : f32 to vector<8x128xf32>
    %591 = arith.addf %589, %590 : vector<8x128xf32>
    %592 = vector.extract_strided_slice %575 {offsets = [0, 256], sizes = [8, 128], strides = [1, 1]} : vector<8x512xf32> to vector<8x128xf32>
    %593 = math.tanh %592 : vector<8x128xf32>
    %594 = vector.extract_strided_slice %575 {offsets = [0, 384], sizes = [8, 128], strides = [1, 1]} : vector<8x512xf32> to vector<8x128xf32>
    %cst_252 = arith.constant 5.000000e-01 : f32
    %595 = vector.broadcast %cst_252 : f32 to vector<8x128xf32>
    %596 = arith.mulf %595, %594 : vector<8x128xf32>
    %597 = math.tanh %596 : vector<8x128xf32>
    %cst_253 = arith.constant 5.000000e-01 : f32
    %598 = vector.broadcast %cst_253 : f32 to vector<8x128xf32>
    %599 = arith.mulf %598, %597 : vector<8x128xf32>
    %cst_254 = arith.constant 5.000000e-01 : f32
    %600 = vector.broadcast %cst_254 : f32 to vector<8x128xf32>
    %601 = arith.addf %599, %600 : vector<8x128xf32>
    %602 = arith.mulf %591, %567 : vector<8x128xf32>
    %603 = arith.mulf %583, %593 : vector<8x128xf32>
    %604 = arith.addf %602, %603 : vector<8x128xf32>
    %605 = math.tanh %604 : vector<8x128xf32>
    %606 = arith.mulf %601, %605 : vector<8x128xf32>
    %c7_i32_255 = arith.constant 7 : i32
    %607 = arith.index_cast %c7_i32_255 : i32 to index
    %c0_256 = arith.constant 0 : index
    %c0_257 = arith.constant 0 : index
    %608 = vector.load %arg11[%607, %c0_256, %c0_257] : memref<8x8x512xf32, #tpu.memory_space<vmem>>, vector<1x8x512xf32>
    %609 = vector.shape_cast %608 : vector<1x8x512xf32> to vector<8x512xf32>
    %c0_258 = arith.constant 0 : index
    %c0_259 = arith.constant 0 : index
    %610 = vector.load %arg6[%c0_258, %c0_259] : memref<128x512xf32, #tpu.memory_space<vmem>>, vector<128x512xf32>
    %cst_260 = arith.constant dense<0.000000e+00> : vector<8x512xf32>
    %611 = tpu.matmul %606, %610, %cst_260 {dimension_numbers = #tpu.dot_dimension_numbers<[1], [0], [0], [1], [0, 0, 1, 1], [], []>} : vector<8x128xf32>, vector<128x512xf32>, vector<8x512xf32> -> vector<8x512xf32>
    %612 = arith.addf %609, %611 : vector<8x512xf32>
    %613 = vector.extract_strided_slice %612 {offsets = [0, 0], sizes = [8, 128], strides = [1, 1]} : vector<8x512xf32> to vector<8x128xf32>
    %cst_261 = arith.constant 5.000000e-01 : f32
    %614 = vector.broadcast %cst_261 : f32 to vector<8x128xf32>
    %615 = arith.mulf %614, %613 : vector<8x128xf32>
    %616 = math.tanh %615 : vector<8x128xf32>
    %cst_262 = arith.constant 5.000000e-01 : f32
    %617 = vector.broadcast %cst_262 : f32 to vector<8x128xf32>
    %618 = arith.mulf %617, %616 : vector<8x128xf32>
    %cst_263 = arith.constant 5.000000e-01 : f32
    %619 = vector.broadcast %cst_263 : f32 to vector<8x128xf32>
    %620 = arith.addf %618, %619 : vector<8x128xf32>
    %621 = vector.extract_strided_slice %612 {offsets = [0, 128], sizes = [8, 128], strides = [1, 1]} : vector<8x512xf32> to vector<8x128xf32>
    %cst_264 = arith.constant 5.000000e-01 : f32
    %622 = vector.broadcast %cst_264 : f32 to vector<8x128xf32>
    %623 = arith.mulf %622, %621 : vector<8x128xf32>
    %624 = math.tanh %623 : vector<8x128xf32>
    %cst_265 = arith.constant 5.000000e-01 : f32
    %625 = vector.broadcast %cst_265 : f32 to vector<8x128xf32>
    %626 = arith.mulf %625, %624 : vector<8x128xf32>
    %cst_266 = arith.constant 5.000000e-01 : f32
    %627 = vector.broadcast %cst_266 : f32 to vector<8x128xf32>
    %628 = arith.addf %626, %627 : vector<8x128xf32>
    %629 = vector.extract_strided_slice %612 {offsets = [0, 256], sizes = [8, 128], strides = [1, 1]} : vector<8x512xf32> to vector<8x128xf32>
    %630 = math.tanh %629 : vector<8x128xf32>
    %631 = vector.extract_strided_slice %612 {offsets = [0, 384], sizes = [8, 128], strides = [1, 1]} : vector<8x512xf32> to vector<8x128xf32>
    %cst_267 = arith.constant 5.000000e-01 : f32
    %632 = vector.broadcast %cst_267 : f32 to vector<8x128xf32>
    %633 = arith.mulf %632, %631 : vector<8x128xf32>
    %634 = math.tanh %633 : vector<8x128xf32>
    %cst_268 = arith.constant 5.000000e-01 : f32
    %635 = vector.broadcast %cst_268 : f32 to vector<8x128xf32>
    %636 = arith.mulf %635, %634 : vector<8x128xf32>
    %cst_269 = arith.constant 5.000000e-01 : f32
    %637 = vector.broadcast %cst_269 : f32 to vector<8x128xf32>
    %638 = arith.addf %636, %637 : vector<8x128xf32>
    %639 = arith.mulf %628, %604 : vector<8x128xf32>
    %640 = arith.mulf %620, %630 : vector<8x128xf32>
    %641 = arith.addf %639, %640 : vector<8x128xf32>
    %642 = math.tanh %641 : vector<8x128xf32>
    %643 = arith.mulf %638, %642 : vector<8x128xf32>
    %c8_i32_270 = arith.constant 8 : i32
    %c0_271 = arith.constant 0 : index
    %c0_272 = arith.constant 0 : index
    %644 = vector.load %arg8[%c0_271, %c0_272] : memref<128x128xf32, #tpu.memory_space<vmem>>, vector<128x128xf32>
    %cst_273 = arith.constant dense<0.000000e+00> : vector<8x128xf32>
    %645 = tpu.matmul %643, %644, %cst_273 {dimension_numbers = #tpu.dot_dimension_numbers<[1], [0], [0], [1], [0, 0, 1, 1], [], []>} : vector<8x128xf32>, vector<128x128xf32>, vector<8x128xf32> -> vector<8x128xf32>
    %c0_274 = arith.constant 0 : index
    %c0_275 = arith.constant 0 : index
    %646 = vector.load %arg9[%c0_274, %c0_275] : memref<1x128xf32, #tpu.memory_space<vmem>>, vector<1x128xf32>
    %647 = vector.broadcast %646 : vector<1x128xf32> to vector<8x128xf32>
    %648 = arith.addf %645, %647 : vector<8x128xf32>
    %c0_276 = arith.constant 0 : index
    %c0_277 = arith.constant 0 : index
    %649 = vector.load %arg10[%c0_276, %c0_277] : memref<8x128xf32, #tpu.memory_space<vmem>>, vector<8x128xf32>
    tpu.vector_store %arg10[%c0_276, %c0_277], %648 {strides = array<i32>} : memref<8x128xf32, #tpu.memory_space<vmem>>, vector<8x128xf32>,
    return
  }
  func.func @transform_0(%arg0: i32) -> (i32, i32, i32) {
    %c0_i32 = arith.constant 0 : i32
    %c0_i32_0 = arith.constant 0 : i32
    %c0_i32_1 = arith.constant 0 : i32
    return %c0_i32, %arg0, %c0_i32_0 : i32, i32, i32
  }
  func.func @transform_1(%arg0: i32) -> (i32, i32) {
    %c0_i32 = arith.constant 0 : i32
    %c0_i32_0 = arith.constant 0 : i32
    %c0_i32_1 = arith.constant 0 : i32
    return %c0_i32, %c0_i32_0 : i32, i32
  }
  func.func @transform_2(%arg0: i32) -> (i32, i32) {
    %c0_i32 = arith.constant 0 : i32
    %c0_i32_0 = arith.constant 0 : i32
    %c0_i32_1 = arith.constant 0 : i32
    return %c0_i32, %c0_i32_0 : i32, i32
  }
  func.func @transform_3(%arg0: i32) -> (i32, i32) {
    %c0_i32 = arith.constant 0 : i32
    %c0_i32_0 = arith.constant 0 : i32
    %c0_i32_1 = arith.constant 0 : i32
    return %c0_i32, %c0_i32_0 : i32, i32
  }
  func.func @transform_4(%arg0: i32) -> (i32, i32) {
    %c0_i32 = arith.constant 0 : i32
    %c0_i32_0 = arith.constant 0 : i32
    %c0_i32_1 = arith.constant 0 : i32
    return %c0_i32, %c0_i32_0 : i32, i32
  }
  func.func @transform_5(%arg0: i32) -> (i32, i32) {
    %c0_i32 = arith.constant 0 : i32
    %c0_i32_0 = arith.constant 0 : i32
    %c0_i32_1 = arith.constant 0 : i32
    return %c0_i32, %c0_i32_0 : i32, i32
  }
  func.func @transform_6(%arg0: i32) -> (i32, i32) {
    %c0_i32 = arith.constant 0 : i32
    %c0_i32_0 = arith.constant 0 : i32
    %c0_i32_1 = arith.constant 0 : i32
    return %c0_i32, %c0_i32_0 : i32, i32
  }
  func.func @transform_7(%arg0: i32) -> (i32, i32) {
    %c0_i32 = arith.constant 0 : i32
    %c0_i32_0 = arith.constant 0 : i32
    %c0_i32_1 = arith.constant 0 : i32
    return %c0_i32, %c0_i32_0 : i32, i32
  }
  func.func @transform_8(%arg0: i32) -> (i32, i32) {
    %c0_i32 = arith.constant 0 : i32
    %c0_i32_0 = arith.constant 0 : i32
    %c0_i32_1 = arith.constant 0 : i32
    return %c0_i32, %c0_i32_0 : i32, i32
  }
  func.func @transform_9(%arg0: i32) -> (i32, i32) {
    %c0_i32 = arith.constant 0 : i32
    %c0_i32_0 = arith.constant 0 : i32
    return %arg0, %c0_i32 : i32, i32
  }
}

</mosaic_0001>

<llo_original>
// kernel: lstm_classifier_forward.1
$region0: #{lstm_classifier_forward.1}
  #allocation0 [shape = 'u32[]', space=smem, size = 0x4, offset = 0x4, fixed_abs, tag = 'smem constant byte address 0x4 - core index']
  #allocation1 [shape = 'u32[144,128]{1,0:T(1,128)}', space=vmem, size = 0x12000, scoped, tag = 'internal scratch']
  #allocation2 [shape = 'f32[8,8,512]{2,1,0:T(8,128)}', space=vmem, size = 0x20000, scoped, tag = 'scratch operand']
  #allocation3 [shape = 'f32[8,8,128]{2,1,0:T(8,128)}', space=vmem, size = 0x8000, scoped, tag = 'scratch operand']
  %s0 = inlined_call_operand.vmem [shape: f32[8,8,16], index: 0, kind: input, shape index: {}]
  %s1 = inlined_call_operand.vmem [shape: f32[16,512], index: 1, kind: input, shape index: {}]
  %s2 = inlined_call_operand.vmem [shape: f32[128,512], index: 2, kind: input, shape index: {}]
  %s3 = inlined_call_operand.vmem [shape: f32[1,512], index: 3, kind: input, shape index: {}]
  %s4 = inlined_call_operand.vmem [shape: f32[128,512], index: 4, kind: input, shape index: {}]
  %s5 = inlined_call_operand.vmem [shape: f32[128,512], index: 5, kind: input, shape index: {}]
  %s6 = inlined_call_operand.vmem [shape: f32[1,512], index: 6, kind: input, shape index: {}]
  %s7 = inlined_call_operand.vmem [shape: f32[128,128], index: 7, kind: input, shape index: {}]
  %s8 = inlined_call_operand.vmem [shape: f32[1,128], index: 8, kind: input, shape index: {}]
  %s9 = inlined_call_operand.vmem [shape: f32[8,128], index: 9, kind: output, shape index: {}]
  %s10 = sld [smem:[#allocation0]]
  $region46: #{lstm_classifier_forward.1} parent=0
    _
  %s12 = ssub.s32 1, %s10
  %s13 = scalar_select 0, %s12, %s10
  // Predicated region
  $region2: #{lstm_classifier_forward.1} parent=0 // pred_check
    _
  $region3: #{lstm_classifier_forward.1} parent=0 // pred_check_branch
    %15 = sbr.rel (0) target = $region5
  $region4: #{lstm_classifier_forward.1} parent=0 // pred_region
    _
  $region5: #{lstm_classifier_forward.1} parent=0 // pred_fallthru
    _
  // Predicated region
  $region6: #{lstm_classifier_forward.1} parent=0 // pred_check
    _
  $region7: #{lstm_classifier_forward.1} parent=0 // pred_check_branch
    %17 = sbr.rel (0) target = $region9
  $region8: #{lstm_classifier_forward.1} parent=0 // pred_region
    _
  $region9: #{lstm_classifier_forward.1} parent=0 // pred_fallthru
    _
  // Predicated region
  $region10: #{lstm_classifier_forward.1} parent=0 // pred_check
    _
  $region11: #{lstm_classifier_forward.1} parent=0 // pred_check_branch
    %19 = sbr.rel (0) target = $region13
  $region12: #{lstm_classifier_forward.1} parent=0 // pred_region
    _
  $region13: #{lstm_classifier_forward.1} parent=0 // pred_fallthru
    _
  // Predicated region
  $region14: #{lstm_classifier_forward.1} parent=0 // pred_check
    _
  $region15: #{lstm_classifier_forward.1} parent=0 // pred_check_branch
    %21 = sbr.rel (0) target = $region17
  $region16: #{lstm_classifier_forward.1} parent=0 // pred_region
    _
  $region17: #{lstm_classifier_forward.1} parent=0 // pred_fallthru
    _
  // Predicated region
  $region18: #{lstm_classifier_forward.1} parent=0 // pred_check
    _
  $region19: #{lstm_classifier_forward.1} parent=0 // pred_check_branch
    %23 = sbr.rel (0) target = $region21
  $region20: #{lstm_classifier_forward.1} parent=0 // pred_region
    _
  $region21: #{lstm_classifier_forward.1} parent=0 // pred_fallthru
    _
  // Predicated region
  $region22: #{lstm_classifier_forward.1} parent=0 // pred_check
    _
  $region23: #{lstm_classifier_forward.1} parent=0 // pred_check_branch
    %25 = sbr.rel (0) target = $region25
  $region24: #{lstm_classifier_forward.1} parent=0 // pred_region
    _
  $region25: #{lstm_classifier_forward.1} parent=0 // pred_fallthru
    _
  // Predicated region
  $region26: #{lstm_classifier_forward.1} parent=0 // pred_check
    _
  $region27: #{lstm_classifier_forward.1} parent=0 // pred_check_branch
    %27 = sbr.rel (0) target = $region29
  $region28: #{lstm_classifier_forward.1} parent=0 // pred_region
    _
  $region29: #{lstm_classifier_forward.1} parent=0 // pred_fallthru
    _
  // Predicated region
  $region30: #{lstm_classifier_forward.1} parent=0 // pred_check
    _
  $region31: #{lstm_classifier_forward.1} parent=0 // pred_check_branch
    %29 = sbr.rel (0) target = $region33
  $region32: #{lstm_classifier_forward.1} parent=0 // pred_region
    _
  $region33: #{lstm_classifier_forward.1} parent=0 // pred_fallthru
    _
  // Predicated region
  $region34: #{lstm_classifier_forward.1} parent=0 // pred_check
    _
  $region35: #{lstm_classifier_forward.1} parent=0 // pred_check_branch
    %31 = sbr.rel (0) target = $region37
  $region36: #{lstm_classifier_forward.1} parent=0 // pred_region
    _
  $region37: #{lstm_classifier_forward.1} parent=0 // pred_fallthru
    _
  %v32 = vld [vmem:[%s0] sm:$0xff]
  %v33 = vld [vmem:[%s0 + $0x8] sm:$0xff]
  %v34 = vld [vmem:[%s0 + $0x10] sm:$0xff]
  %v35 = vld [vmem:[%s0 + $0x18] sm:$0xff]
  %v36 = vld [vmem:[%s0 + $0x20] sm:$0xff]
  %v37 = vld [vmem:[%s0 + $0x28] sm:$0xff]
  %v38 = vld [vmem:[%s0 + $0x30] sm:$0xff]
  %v39 = vld [vmem:[%s0 + $0x38] sm:$0xff]
  %v40 = vld [vmem:[%s1] sm:$0xff]
  %v41 = vld [vmem:[%s1 + $0x8] sm:$0xff]
  %v42 = vld [vmem:[%s1 + $0x10] sm:$0xff]
  %v43 = vld [vmem:[%s1 + $0x18] sm:$0xff]
  %v44 = vld [vmem:[%s1 + $0x20] sm:$0xff]
  %v45 = vld [vmem:[%s1 + $0x28] sm:$0xff]
  %v46 = vld [vmem:[%s1 + $0x30] sm:$0xff]
  %v47 = vld [vmem:[%s1 + $0x38] sm:$0xff]
  %v48 = vld [vmem:[%s3] sm:$0xf]
  %v50 = vlaneseq
  %v51 = vshrl.u32 %v50, 7
  %v52 = vsub.s32 0, %v51
  %v53 = vrot.slane %v48, %v52
  %v54 = vlaneseq
  %v55 = vshrl.u32 %v54, 7
  %v56 = vsub.s32 1, %v55
  %v57 = vrot.slane %v48, %v56
  %v58 = vlaneseq
  %v59 = vshrl.u32 %v58, 7
  %v60 = vsub.s32 2, %v59
  %v61 = vrot.slane %v48, %v60
  %v62 = vlaneseq
  %v63 = vshrl.u32 %v62, 7
  %v64 = vsub.s32 3, %v63
  %v65 = vrot.slane %v48, %v64
  %vm70 = vcmask 130048
  %v72 = vsel %vm70, %v32, 0
  %v75 = vsel %vm70, %v33, 0
  %v78 = vsel %vm70, %v34, 0
  %v81 = vsel %vm70, %v35, 0
  %v84 = vsel %vm70, %v36, 0
  %v87 = vsel %vm70, %v37, 0
  %v90 = vsel %vm70, %v38, 0
  %v93 = vsel %vm70, %v39, 0
  %95 = vmatprep.subr.mxu0 %v41
  %96 = vmatpush1.msra.mxu0 %v40
  %97 = vmatprep.subr.mxu0 %v45
  %98 = vmatpush1.msra.mxu0 %v44
  %99 = vmatprep.subr.mxu0 0.0
  %100 = vmatpush1.msra.mxu0 0.0
  %101 = vmatprep.subr.mxu0 0.0
  %102 = vmatpush1.msra.mxu0 0.0
  %103 = vmatprep.subr.mxu0 0.0
  %104 = vmatpush1.msra.mxu0 0.0
  %105 = vmatprep.subr.mxu0 0.0
  %106 = vmatpush1.msra.mxu0 0.0
  %107 = vmatprep.subr.mxu0 0.0
  %108 = vmatpush1.msra.mxu0 0.0
  %109 = vmatprep.subr.mxu0 0.0
  %110 = vmatpush1.msra.mxu0 0.0
  %111 = vmatprep.subr.mxu0 0.0
  %112 = vmatpush1.msra.mxu0 0.0
  %113 = vmatprep.subr.mxu0 0.0
  %114 = vmatpush1.msra.mxu0 0.0
  %115 = vmatprep.subr.mxu0 0.0
  %116 = vmatpush1.msra.mxu0 0.0
  %117 = vmatprep.subr.mxu0 0.0
  %118 = vmatpush1.msra.mxu0 0.0
  %119 = vmatprep.subr.mxu0 0.0
  %120 = vmatpush1.msra.mxu0 0.0
  %121 = vmatprep.subr.mxu0 0.0
  %122 = vmatpush1.msra.mxu0 0.0
  %123 = vmatprep.subr.mxu0 0.0
  %124 = vmatpush1.msra.mxu0 0.0
  %125 = vmatprep.subr.mxu0 0.0
  %126 = vmatpush1.msra.mxu0 0.0
  %127 = vmatprep.subr.mxu0 0.0
  %128 = vmatpush1.msra.mxu0 0.0
  %129 = vmatprep.subr.mxu0 0.0
  %130 = vmatpush1.msra.mxu0 0.0
  %131 = vmatprep.subr.mxu0 0.0
  %132 = vmatpush1.msra.mxu0 0.0
  %133 = vmatprep.subr.mxu0 0.0
  %134 = vmatpush1.msra.mxu0 0.0
  %135 = vmatprep.subr.mxu0 0.0
  %136 = vmatpush1.msra.mxu0 0.0
  %137 = vmatprep.subr.mxu0 0.0
  %138 = vmatpush1.msra.mxu0 0.0
  %139 = vmatprep.subr.mxu0 0.0
  %140 = vmatpush1.msra.mxu0 0.0
  %141 = vmatprep.subr.mxu0 0.0
  %142 = vmatpush1.msra.mxu0 0.0
  %143 = vmatprep.subr.mxu0 0.0
  %144 = vmatpush1.msra.mxu0 0.0
  %145 = vmatprep.subr.mxu0 0.0
  %146 = vmatpush1.msra.mxu0 0.0
  %147 = vmatprep.subr.mxu0 0.0
  %148 = vmatpush1.msra.mxu0 0.0
  %149 = vmatprep.subr.mxu0 0.0
  %150 = vmatpush1.msra.mxu0 0.0
  %151 = vmatprep.subr.mxu0 0.0
  %152 = vmatpush1.msra.mxu0 0.0
  %153 = vmatprep.subr.mxu0 0.0
  %154 = vmatpush1.msra.mxu0 0.0
  %155 = vmatprep.subr.mxu0 0.0
  %156 = vmatpush1.msra.mxu0 0.0
  %157 = vmatprep.subr.mxu0 0.0
  %158 = vmatpush1.msra.mxu0 0.0
  %159 = vmatprep.mubr.f32.mxu0 0.0
  %160 = vmatmul.mubr.f32.gmra.mrb[0].mxu0 %v72
  %v161 = vpop.f32.mrb[0].mxu0
  %v162 = vadd.f32 %v53, %v161
  %v163 = vpop.f32.mrb[0].mxu0
  %v164 = vadd.f32 %v57, %v163
  %165 = vmatprep.mubr.f32.mxu0 0.0
  %166 = vmatmul.mubr.f32.gmra.mrb[0].mxu0 %v75
  %v167 = vpop.f32.mrb[0].mxu0
  %v168 = vadd.f32 %v53, %v167
  %v169 = vpop.f32.mrb[0].mxu0
  %v170 = vadd.f32 %v57, %v169
  %171 = vmatprep.mubr.f32.mxu0 0.0
  %172 = vmatmul.mubr.f32.gmra.mrb[0].mxu0 %v78
  %v173 = vpop.f32.mrb[0].mxu0
  %v174 = vadd.f32 %v53, %v173
  %v175 = vpop.f32.mrb[0].mxu0
  %v176 = vadd.f32 %v57, %v175
  %177 = vmatprep.mubr.f32.mxu0 0.0
  %178 = vmatmul.mubr.f32.gmra.mrb[0].mxu0 %v81
  %v179 = vpop.f32.mrb[0].mxu0
  %v180 = vadd.f32 %v53, %v179
  %v181 = vpop.f32.mrb[0].mxu0
  %v182 = vadd.f32 %v57, %v181
  %183 = vmatprep.mubr.f32.mxu0 0.0
  %184 = vmatmul.mubr.f32.gmra.mrb[0].mxu0 %v84
  %v185 = vpop.f32.mrb[0].mxu0
  %v186 = vadd.f32 %v53, %v185
  %v187 = vpop.f32.mrb[0].mxu0
  %v188 = vadd.f32 %v57, %v187
  %189 = vmatprep.mubr.f32.mxu0 0.0
  %190 = vmatmul.mubr.f32.gmra.mrb[0].mxu0 %v87
  %v191 = vpop.f32.mrb[0].mxu0
  %v192 = vadd.f32 %v53, %v191
  %v193 = vpop.f32.mrb[0].mxu0
  %v194 = vadd.f32 %v57, %v193
  %195 = vmatprep.mubr.f32.mxu0 0.0
  %196 = vmatmul.mubr.f32.gmra.mrb[0].mxu0 %v90
  %v197 = vpop.f32.mrb[0].mxu0
  %v198 = vadd.f32 %v53, %v197
  %v199 = vpop.f32.mrb[0].mxu0
  %v200 = vadd.f32 %v57, %v199
  %201 = vmatprep.mubr.f32.mxu0 0.0
  %202 = vmatmul.mubr.f32.gmra.mrb[0].mxu0 %v93
  %v203 = vpop.f32.mrb[0].mxu0
  %v204 = vadd.f32 %v53, %v203
  %v205 = vpop.f32.mrb[0].mxu0
  %v206 = vadd.f32 %v57, %v205
  %207 = vdwg.mxu0
  %208 = vmatprep.subr.mxu0 %v43
  %209 = vmatpush1.msra.mxu0 %v42
  %210 = vmatprep.subr.mxu0 %v47
  %211 = vmatpush1.msra.mxu0 %v46
  %212 = vmatprep.subr.mxu0 0.0
  %213 = vmatpush1.msra.mxu0 0.0
  %214 = vmatprep.subr.mxu0 0.0
  %215 = vmatpush1.msra.mxu0 0.0
  %216 = vmatprep.subr.mxu0 0.0
  %217 = vmatpush1.msra.mxu0 0.0
  %218 = vmatprep.subr.mxu0 0.0
  %219 = vmatpush1.msra.mxu0 0.0
  %220 = vmatprep.subr.mxu0 0.0
  %221 = vmatpush1.msra.mxu0 0.0
  %222 = vmatprep.subr.mxu0 0.0
  %223 = vmatpush1.msra.mxu0 0.0
  %224 = vmatprep.subr.mxu0 0.0
  %225 = vmatpush1.msra.mxu0 0.0
  %226 = vmatprep.subr.mxu0 0.0
  %227 = vmatpush1.msra.mxu0 0.0
  %228 = vmatprep.subr.mxu0 0.0
  %229 = vmatpush1.msra.mxu0 0.0
  %230 = vmatprep.subr.mxu0 0.0
  %231 = vmatpush1.msra.mxu0 0.0
  %232 = vmatprep.subr.mxu0 0.0
  %233 = vmatpush1.msra.mxu0 0.0
  %234 = vmatprep.subr.mxu0 0.0
  %235 = vmatpush1.msra.mxu0 0.0
  %236 = vmatprep.subr.mxu0 0.0
  %237 = vmatpush1.msra.mxu0 0.0
  %238 = vmatprep.subr.mxu0 0.0
  %239 = vmatpush1.msra.mxu0 0.0
  %240 = vmatprep.subr.mxu0 0.0
  %241 = vmatpush1.msra.mxu0 0.0
  %242 = vmatprep.subr.mxu0 0.0
  %243 = vmatpush1.msra.mxu0 0.0
  %244 = vmatprep.subr.mxu0 0.0
  %245 = vmatpush1.msra.mxu0 0.0
  %246 = vmatprep.subr.mxu0 0.0
  %247 = vmatpush1.msra.mxu0 0.0
  %248 = vmatprep.subr.mxu0 0.0
  %249 = vmatpush1.msra.mxu0 0.0
  %250 = vmatprep.subr.mxu0 0.0
  %251 = vmatpush1.msra.mxu0 0.0
  %252 = vmatprep.subr.mxu0 0.0
  %253 = vmatpush1.msra.mxu0 0.0
  %254 = vmatprep.subr.mxu0 0.0
  %255 = vmatpush1.msra.mxu0 0.0
  %256 = vmatprep.subr.mxu0 0.0
  %257 = vmatpush1.msra.mxu0 0.0
  %258 = vmatprep.subr.mxu0 0.0
  %259 = vmatpush1.msra.mxu0 0.0
  %260 = vmatprep.subr.mxu0 0.0
  %261 = vmatpush1.msra.mxu0 0.0
  %262 = vmatprep.subr.mxu0 0.0
  %263 = vmatpush1.msra.mxu0 0.0
  %264 = vmatprep.subr.mxu0 0.0
  %265 = vmatpush1.msra.mxu0 0.0
  %266 = vmatprep.subr.mxu0 0.0
  %267 = vmatpush1.msra.mxu0 0.0
  %268 = vmatprep.subr.mxu0 0.0
  %269 = vmatpush1.msra.mxu0 0.0
  %270 = vmatprep.subr.mxu0 0.0
  %271 = vmatpush1.msra.mxu0 0.0
  %272 = vmatprep.mubr.f32.mxu0 0.0
  %273 = vmatmul.mubr.f32.gmra.mrb[0].mxu0 %v72
  %v274 = vpop.f32.mrb[0].mxu0
  %v275 = vadd.f32 %v61, %v274
  %v276 = vpop.f32.mrb[0].mxu0
  %v277 = vadd.f32 %v65, %v276
  %278 = vmatprep.mubr.f32.mxu0 0.0
  %279 = vmatmul.mubr.f32.gmra.mrb[0].mxu0 %v75
  %v280 = vpop.f32.mrb[0].mxu0
  %v281 = vadd.f32 %v61, %v280
  %v282 = vpop.f32.mrb[0].mxu0
  %v283 = vadd.f32 %v65, %v282
  %284 = vmatprep.mubr.f32.mxu0 0.0
  %285 = vmatmul.mubr.f32.gmra.mrb[0].mxu0 %v78
  %v286 = vpop.f32.mrb[0].mxu0
  %v287 = vadd.f32 %v61, %v286
  %v288 = vpop.f32.mrb[0].mxu0
  %v289 = vadd.f32 %v65, %v288
  %290 = vmatprep.mubr.f32.mxu0 0.0
  %291 = vmatmul.mubr.f32.gmra.mrb[0].mxu0 %v81
  %v292 = vpop.f32.mrb[0].mxu0
  %v293 = vadd.f32 %v61, %v292
  %v294 = vpop.f32.mrb[0].mxu0
  %v295 = vadd.f32 %v65, %v294
  %296 = vmatprep.mubr.f32.mxu0 0.0
  %297 = vmatmul.mubr.f32.gmra.mrb[0].mxu0 %v84
  %v298 = vpop.f32.mrb[0].mxu0
  %v299 = vadd.f32 %v61, %v298
  %v300 = vpop.f32.mrb[0].mxu0
  %v301 = vadd.f32 %v65, %v300
  %302 = vmatprep.mubr.f32.mxu0 0.0
  %303 = vmatmul.mubr.f32.gmra.mrb[0].mxu0 %v87
  %v304 = vpop.f32.mrb[0].mxu0
  %v305 = vadd.f32 %v61, %v304
  %v306 = vpop.f32.mrb[0].mxu0
  %v307 = vadd.f32 %v65, %v306
  %308 = vmatprep.mubr.f32.mxu0 0.0
  %309 = vmatmul.mubr.f32.gmra.mrb[0].mxu0 %v90
  %v310 = vpop.f32.mrb[0].mxu0
  %v311 = vadd.f32 %v61, %v310
  %v312 = vpop.f32.mrb[0].mxu0
  %v313 = vadd.f32 %v65, %v312
  %314 = vmatprep.mubr.f32.mxu0 0.0
  %315 = vmatmul.mubr.f32.gmra.mrb[0].mxu0 %v93
  %v316 = vpop.f32.mrb[0].mxu0
  %v317 = vadd.f32 %v61, %v316
  %v318 = vpop.f32.mrb[0].mxu0
  %v319 = vadd.f32 %v65, %v318
  %320 = vdwg.mxu0
  %321 = vst [vmem:[#allocation2] sm:$0xff] %v162
  %322 = vst [vmem:[#allocation2 + $0x8] sm:$0xff] %v164
  %323 = vst [vmem:[#allocation2 + $0x10] sm:$0xff] %v275
  %324 = vst [vmem:[#allocation2 + $0x18] sm:$0xff] %v277
  %325 = vst [vmem:[#allocation2 + $0x20] sm:$0xff] %v168
  %326 = vst [vmem:[#allocation2 + $0x28] sm:$0xff] %v170
  %327 = vst [vmem:[#allocation2 + $0x30] sm:$0xff] %v281
  %328 = vst [vmem:[#allocation2 + $0x38] sm:$0xff] %v283
  %329 = vst [vmem:[#allocation2 + $0x40] sm:$0xff] %v174
  %330 = vst [vmem:[#allocation2 + $0x48] sm:$0xff] %v176
  %331 = vst [vmem:[#allocation2 + $0x50] sm:$0xff] %v287
  %332 = vst [vmem:[#allocation2 + $0x58] sm:$0xff] %v289
  %333 = vst [vmem:[#allocation2 + $0x60] sm:$0xff] %v180
  %334 = vst [vmem:[#allocation2 + $0x68] sm:$0xff] %v182
  %335 = vst [vmem:[#allocation2 + $0x70] sm:$0xff] %v293
  %336 = vst [vmem:[#allocation2 + $0x78] sm:$0xff] %v295
  %337 = vst [vmem:[#allocation2 + $0x80] sm:$0xff] %v186
  %338 = vst [vmem:[#allocation2 + $0x88] sm:$0xff] %v188
  %339 = vst [vmem:[#allocation2 + $0x90] sm:$0xff] %v299
  %340 = vst [vmem:[#allocation2 + $0x98] sm:$0xff] %v301
  %341 = vst [vmem:[#allocation2 + $0xa0] sm:$0xff] %v192
  %342 = vst [vmem:[#allocation2 + $0xa8] sm:$0xff] %v194
  %343 = vst [vmem:[#allocation2 + $0xb0] sm:$0xff] %v305
  %344 = vst [vmem:[#allocation2 + $0xb8] sm:$0xff] %v307
  %345 = vst [vmem:[#allocation2 + $0xc0] sm:$0xff] %v198
  %346 = vst [vmem:[#allocation2 + $0xc8] sm:$0xff] %v200
  %347 = vst [vmem:[#allocation2 + $0xd0] sm:$0xff] %v311
  %348 = vst [vmem:[#allocation2 + $0xd8] sm:$0xff] %v313
  %349 = vst [vmem:[#allocation2 + $0xe0] sm:$0xff] %v204
  %350 = vst [vmem:[#allocation2 + $0xe8] sm:$0xff] %v206
  %351 = vst [vmem:[#allocation2 + $0xf0] sm:$0xff] %v317
  %352 = vst [vmem:[#allocation2 + $0xf8] sm:$0xff] %v319
  %v353 = vld [vmem:[#allocation2] sm:$0xff]
  %v354 = vld [vmem:[#allocation2 + $0x8] sm:$0xff]
  %v355 = vld [vmem:[#allocation2 + $0x10] sm:$0xff]
  %v356 = vld [vmem:[#allocation2 + $0x18] sm:$0xff]
  %v357 = vld [vmem:[%s2] sm:$0xff]
  %v358 = vld [vmem:[%s2 + $0x8] sm:$0xff]
  %v359 = vld [vmem:[%s2 + $0x10] sm:$0xff]
  %v360 = vld [vmem:[%s2 + $0x18] sm:$0xff]
  %v361 = vld [vmem:[%s2 + $0x20] sm:$0xff]
  %v362 = vld [vmem:[%s2 + $0x28] sm:$0xff]
  %v363 = vld [vmem:[%s2 + $0x30] sm:$0xff]
  %v364 = vld [vmem:[%s2 + $0x38] sm:$0xff]
  %v365 = vld [vmem:[%s2 + $0x40] sm:$0xff]
  %v366 = vld [vmem:[%s2 + $0x48] sm:$0xff]
  %v367 = vld [vmem:[%s2 + $0x50] sm:$0xff]
  %v368 = vld [vmem:[%s2 + $0x58] sm:$0xff]
  %v369 = vld [vmem:[%s2 + $0x60] sm:$0xff]
  %v370 = vld [vmem:[%s2 + $0x68] sm:$0xff]
  %v371 = vld [vmem:[%s2 + $0x70] sm:$0xff]
  %v372 = vld [vmem:[%s2 + $0x78] sm:$0xff]
  %v373 = vld [vmem:[%s2 + $0x80] sm:$0xff]
  %v374 = vld [vmem:[%s2 + $0x88] sm:$0xff]
  %v375 = vld [vmem:[%s2 + $0x90] sm:$0xff]
  %v376 = vld [vmem:[%s2 + $0x98] sm:$0xff]
  %v377 = vld [vmem:[%s2 + $0xa0] sm:$0xff]
  %v378 = vld [vmem:[%s2 + $0xa8] sm:$0xff]
  %v379 = vld [vmem:[%s2 + $0xb0] sm:$0xff]
  %v380 = vld [vmem:[%s2 + $0xb8] sm:$0xff]
  %v381 = vld [vmem:[%s2 + $0xc0] sm:$0xff]
  %v382 = vld [vmem:[%s2 + $0xc8] sm:$0xff]
  %v383 = vld [vmem:[%s2 + $0xd0] sm:$0xff]
  %v384 = vld [vmem:[%s2 + $0xd8] sm:$0xff]
  %v385 = vld [vmem:[%s2 + $0xe0] sm:$0xff]
  %v386 = vld [vmem:[%s2 + $0xe8] sm:$0xff]
  %v387 = vld [vmem:[%s2 + $0xf0] sm:$0xff]
  %v388 = vld [vmem:[%s2 + $0xf8] sm:$0xff]
  %v389 = vld [vmem:[%s2 + $0x100] sm:$0xff]
  %v390 = vld [vmem:[%s2 + $0x108] sm:$0xff]
  %v391 = vld [vmem:[%s2 + $0x110] sm:$0xff]
  %v392 = vld [vmem:[%s2 + $0x118] sm:$0xff]
  %v393 = vld [vmem:[%s2 + $0x120] sm:$0xff]
  %v394 = vld [vmem:[%s2 + $0x128] sm:$0xff]
  %v395 = vld [vmem:[%s2 + $0x130] sm:$0xff]
  %v396 = vld [vmem:[%s2 + $0x138] sm:$0xff]
  %v397 = vld [vmem:[%s2 + $0x140] sm:$0xff]
  %v398 = vld [vmem:[%s2 + $0x148] sm:$0xff]
  %v399 = vld [vmem:[%s2 + $0x150] sm:$0xff]
  %v400 = vld [vmem:[%s2 + $0x158] sm:$0xff]
  %v401 = vld [vmem:[%s2 + $0x160] sm:$0xff]
  %v402 = vld [vmem:[%s2 + $0x168] sm:$0xff]
  %v403 = vld [vmem:[%s2 + $0x170] sm:$0xff]
  %v404 = vld [vmem:[%s2 + $0x178] sm:$0xff]
  %v405 = vld [vmem:[%s2 + $0x180] sm:$0xff]
  %v406 = vld [vmem:[%s2 + $0x188] sm:$0xff]
  %v407 = vld [vmem:[%s2 + $0x190] sm:$0xff]
  %v408 = vld [vmem:[%s2 + $0x198] sm:$0xff]
  %v409 = vld [vmem:[%s2 + $0x1a0] sm:$0xff]
  %v410 = vld [vmem:[%s2 + $0x1a8] sm:$0xff]
  %v411 = vld [vmem:[%s2 + $0x1b0] sm:$0xff]
  %v412 = vld [vmem:[%s2 + $0x1b8] sm:$0xff]
  %v413 = vld [vmem:[%s2 + $0x1c0] sm:$0xff]
  %v414 = vld [vmem:[%s2 + $0x1c8] sm:$0xff]
  %v415 = vld [vmem:[%s2 + $0x1d0] sm:$0xff]
  %v416 = vld [vmem:[%s2 + $0x1d8] sm:$0xff]
  %v417 = vld [vmem:[%s2 + $0x1e0] sm:$0xff]
  %v418 = vld [vmem:[%s2 + $0x1e8] sm:$0xff]
  %v419 = vld [vmem:[%s2 + $0x1f0] sm:$0xff]
  %v420 = vld [vmem:[%s2 + $0x1f8] sm:$0xff]
  %421 = vmatprep.subr.mxu0 %v358
  %422 = vmatpush1.msra.mxu0 %v357
  %423 = vmatprep.subr.mxu0 %v362
  %424 = vmatpush1.msra.mxu0 %v361
  %425 = vmatprep.subr.mxu0 %v366
  %426 = vmatpush1.msra.mxu0 %v365
  %427 = vmatprep.subr.mxu0 %v370
  %428 = vmatpush1.msra.mxu0 %v369
  %429 = vmatprep.subr.mxu0 %v374
  %430 = vmatpush1.msra.mxu0 %v373
  %431 = vmatprep.subr.mxu0 %v378
  %432 = vmatpush1.msra.mxu0 %v377
  %433 = vmatprep.subr.mxu0 %v382
  %434 = vmatpush1.msra.mxu0 %v381
  %435 = vmatprep.subr.mxu0 %v386
  %436 = vmatpush1.msra.mxu0 %v385
  %437 = vmatprep.subr.mxu0 %v390
  %438 = vmatpush1.msra.mxu0 %v389
  %439 = vmatprep.subr.mxu0 %v394
  %440 = vmatpush1.msra.mxu0 %v393
  %441 = vmatprep.subr.mxu0 %v398
  %442 = vmatpush1.msra.mxu0 %v397
  %443 = vmatprep.subr.mxu0 %v402
  %444 = vmatpush1.msra.mxu0 %v401
  %445 = vmatprep.subr.mxu0 %v406
  %446 = vmatpush1.msra.mxu0 %v405
  %447 = vmatprep.subr.mxu0 %v410
  %448 = vmatpush1.msra.mxu0 %v409
  %449 = vmatprep.subr.mxu0 %v414
  %450 = vmatpush1.msra.mxu0 %v413
  %451 = vmatprep.subr.mxu0 %v418
  %452 = vmatpush1.msra.mxu0 %v417
  %453 = vmatprep.subr.mxu0 0.0
  %454 = vmatpush1.msra.mxu0 0.0
  %455 = vmatprep.subr.mxu0 0.0
  %456 = vmatpush1.msra.mxu0 0.0
  %457 = vmatprep.subr.mxu0 0.0
  %458 = vmatpush1.msra.mxu0 0.0
  %459 = vmatprep.subr.mxu0 0.0
  %460 = vmatpush1.msra.mxu0 0.0
  %461 = vmatprep.subr.mxu0 0.0
  %462 = vmatpush1.msra.mxu0 0.0
  %463 = vmatprep.subr.mxu0 0.0
  %464 = vmatpush1.msra.mxu0 0.0
  %465 = vmatprep.subr.mxu0 0.0
  %466 = vmatpush1.msra.mxu0 0.0
  %467 = vmatprep.subr.mxu0 0.0
  %468 = vmatpush1.msra.mxu0 0.0
  %469 = vmatprep.subr.mxu0 0.0
  %470 = vmatpush1.msra.mxu0 0.0
  %471 = vmatprep.subr.mxu0 0.0
  %472 = vmatpush1.msra.mxu0 0.0
  %473 = vmatprep.subr.mxu0 0.0
  %474 = vmatpush1.msra.mxu0 0.0
  %475 = vmatprep.subr.mxu0 0.0
  %476 = vmatpush1.msra.mxu0 0.0
  %477 = vmatprep.subr.mxu0 0.0
  %478 = vmatpush1.msra.mxu0 0.0
  %479 = vmatprep.subr.mxu0 0.0
  %480 = vmatpush1.msra.mxu0 0.0
  %481 = vmatprep.subr.mxu0 0.0
  %482 = vmatpush1.msra.mxu0 0.0
  %483 = vmatprep.subr.mxu0 0.0
  %484 = vmatpush1.msra.mxu0 0.0
  %485 = vmatprep.mubr.f32.mxu0 0.0
  %486 = vmatmul.mubr.f32.gmra.mrb[0].mxu0 0.0
  %v487 = vpop.f32.mrb[0].mxu0
  %v488 = vadd.f32 0.0, %v487
  %v489 = vpop.f32.mrb[0].mxu0
  %v490 = vadd.f32 0.0, %v489
  %491 = vdwg.mxu0
  %492 = vmatprep.subr.mxu0 %v360
  %493 = vmatpush1.msra.mxu0 %v359
  %494 = vmatprep.subr.mxu0 %v364
  %495 = vmatpush1.msra.mxu0 %v363
  %496 = vmatprep.subr.mxu0 %v368
  %497 = vmatpush1.msra.mxu0 %v367
  %498 = vmatprep.subr.mxu0 %v372
  %499 = vmatpush1.msra.mxu0 %v371
  %500 = vmatprep.subr.mxu0 %v376
  %501 = vmatpush1.msra.mxu0 %v375
  %502 = vmatprep.subr.mxu0 %v380
  %503 = vmatpush1.msra.mxu0 %v379
  %504 = vmatprep.subr.mxu0 %v384
  %505 = vmatpush1.msra.mxu0 %v383
  %506 = vmatprep.subr.mxu0 %v388
  %507 = vmatpush1.msra.mxu0 %v387
  %508 = vmatprep.subr.mxu0 %v392
  %509 = vmatpush1.msra.mxu0 %v391
  %510 = vmatprep.subr.mxu0 %v396
  %511 = vmatpush1.msra.mxu0 %v395
  %512 = vmatprep.subr.mxu0 %v400
  %513 = vmatpush1.msra.mxu0 %v399
  %514 = vmatprep.subr.mxu0 %v404
  %515 = vmatpush1.msra.mxu0 %v403
  %516 = vmatprep.subr.mxu0 %v408
  %517 = vmatpush1.msra.mxu0 %v407
  %518 = vmatprep.subr.mxu0 %v412
  %519 = vmatpush1.msra.mxu0 %v411
  %520 = vmatprep.subr.mxu0 %v416
  %521 = vmatpush1.msra.mxu0 %v415
  %522 = vmatprep.subr.mxu0 %v420
  %523 = vmatpush1.msra.mxu0 %v419
  %524 = vmatprep.subr.mxu0 0.0
  %525 = vmatpush1.msra.mxu0 0.0
  %526 = vmatprep.subr.mxu0 0.0
  %527 = vmatpush1.msra.mxu0 0.0
  %528 = vmatprep.subr.mxu0 0.0
  %529 = vmatpush1.msra.mxu0 0.0
  %530 = vmatprep.subr.mxu0 0.0
  %531 = vmatpush1.msra.mxu0 0.0
  %532 = vmatprep.subr.mxu0 0.0
  %533 = vmatpush1.msra.mxu0 0.0
  %534 = vmatprep.subr.mxu0 0.0
  %535 = vmatpush1.msra.mxu0 0.0
  %536 = vmatprep.subr.mxu0 0.0
  %537 = vmatpush1.msra.mxu0 0.0
  %538 = vmatprep.subr.mxu0 0.0
  %539 = vmatpush1.msra.mxu0 0.0
  %540 = vmatprep.subr.mxu0 0.0
  %541 = vmatpush1.msra.mxu0 0.0
  %542 = vmatprep.subr.mxu0 0.0
  %543 = vmatpush1.msra.mxu0 0.0
  %544 = vmatprep.subr.mxu0 0.0
  %545 = vmatpush1.msra.mxu0 0.0
  %546 = vmatprep.subr.mxu0 0.0
  %547 = vmatpush1.msra.mxu0 0.0
  %548 = vmatprep.subr.mxu0 0.0
  %549 = vmatpush1.msra.mxu0 0.0
  %550 = vmatprep.subr.mxu0 0.0
  %551 = vmatpush1.msra.mxu0 0.0
  %552 = vmatprep.subr.mxu0 0.0
  %553 = vmatpush1.msra.mxu0 0.0
  %554 = vmatprep.subr.mxu0 0.0
  %555 = vmatpush1.msra.mxu0 0.0
  %556 = vmatprep.mubr.f32.mxu0 0.0
  %557 = vmatmul.mubr.f32.gmra.mrb[0].mxu0 0.0
  %v558 = vpop.f32.mrb[0].mxu0
  %v559 = vadd.f32 0.0, %v558
  %v560 = vpop.f32.mrb[0].mxu0
  %v561 = vadd.f32 0.0, %v560
  %562 = vdwg.mxu0
  %v563 = vadd.f32 %v353, %v488
  %v564 = vadd.f32 %v354, %v490
  %v565 = vadd.f32 %v355, %v559
  %v566 = vadd.f32 %v356, %v561
  %v567 = vmul.f32 %v563, 0.5
  %v568 = vtanh.pop %v567
  %v569 = vmul.f32 %v568, 0.5
  %v570 = vadd.f32 %v569, 0.5
  %v571 = vmul.f32 %v564, 0.5
  %v572 = vtanh.pop %v571
  %v573 = vmul.f32 %v572, 0.5
  %v574 = vadd.f32 %v573, 0.5
  %v575 = vtanh.pop %v565
  %v576 = vmul.f32 %v566, 0.5
  %v577 = vtanh.pop %v576
  %v578 = vmul.f32 %v577, 0.5
  %v579 = vadd.f32 %v578, 0.5
  %v580 = vmul.f32 %v574, 0.0
  %v581 = vmul.f32 %v570, %v575
  %v582 = vadd.f32 %v580, %v581
  %v583 = vtanh.pop %v582
  %v584 = vmul.f32 %v579, %v583
  %585 = vst [vmem:[#allocation3] sm:$0xff] %v584
  %s586 = scalar_lea.vmem [#allocation2], 32
  %v587 = vld [vmem:[%s586] sm:$0xff]
  %v588 = vld [vmem:[%s586 + $0x8] sm:$0xff]
  %v589 = vld [vmem:[%s586 + $0x10] sm:$0xff]
  %v590 = vld [vmem:[%s586 + $0x18] sm:$0xff]
  %v591 = vld [vmem:[%s2] sm:$0xff]
  %v592 = vld [vmem:[%s2 + $0x8] sm:$0xff]
  %v593 = vld [vmem:[%s2 + $0x10] sm:$0xff]
  %v594 = vld [vmem:[%s2 + $0x18] sm:$0xff]
  %v595 = vld [vmem:[%s2 + $0x20] sm:$0xff]
  %v596 = vld [vmem:[%s2 + $0x28] sm:$0xff]
  %v597 = vld [vmem:[%s2 + $0x30] sm:$0xff]
  %v598 = vld [vmem:[%s2 + $0x38] sm:$0xff]
  %v599 = vld [vmem:[%s2 + $0x40] sm:$0xff]
  %v600 = vld [vmem:[%s2 + $0x48] sm:$0xff]
  %v601 = vld [vmem:[%s2 + $0x50] sm:$0xff]
  %v602 = vld [vmem:[%s2 + $0x58] sm:$0xff]
  %v603 = vld [vmem:[%s2 + $0x60] sm:$0xff]
  %v604 = vld [vmem:[%s2 + $0x68] sm:$0xff]
  %v605 = vld [vmem:[%s2 + $0x70] sm:$0xff]
  %v606 = vld [vmem:[%s2 + $0x78] sm:$0xff]
  %v607 = vld [vmem:[%s2 + $0x80] sm:$0xff]
  %v608 = vld [vmem:[%s2 + $0x88] sm:$0xff]
  %v609 = vld [vmem:[%s2 + $0x90] sm:$0xff]
  %v610 = vld [vmem:[%s2 + $0x98] sm:$0xff]
  %v611 = vld [vmem:[%s2 + $0xa0] sm:$0xff]
  %v612 = vld [vmem:[%s2 + $0xa8] sm:$0xff]
  %v613 = vld [vmem:[%s2 + $0xb0] sm:$0xff]
  %v614 = vld [vmem:[%s2 + $0xb8] sm:$0xff]
  %v615 = vld [vmem:[%s2 + $0xc0] sm:$0xff]
  %v616 = vld [vmem:[%s2 + $0xc8] sm:$0xff]
  %v617 = vld [vmem:[%s2 + $0xd0] sm:$0xff]
  %v618 = vld [vmem:[%s2 + $0xd8] sm:$0xff]
  %v619 = vld [vmem:[%s2 + $0xe0] sm:$0xff]
  %v620 = vld [vmem:[%s2 + $0xe8] sm:$0xff]
  %v621 = vld [vmem:[%s2 + $0xf0] sm:$0xff]
  %v622 = vld [vmem:[%s2 + $0xf8] sm:$0xff]
  %v623 = vld [vmem:[%s2 + $0x100] sm:$0xff]
  %v624 = vld [vmem:[%s2 + $0x108] sm:$0xff]
  %v625 = vld [vmem:[%s2 + $0x110] sm:$0xff]
  %v626 = vld [vmem:[%s2 + $0x118] sm:$0xff]
  %v627 = vld [vmem:[%s2 + $0x120] sm:$0xff]
  %v628 = vld [vmem:[%s2 + $0x128] sm:$0xff]
  %v629 = vld [vmem:[%s2 + $0x130] sm:$0xff]
  %v630 = vld [vmem:[%s2 + $0x138] sm:$0xff]
  %v631 = vld [vmem:[%s2 + $0x140] sm:$0xff]
  %v632 = vld [vmem:[%s2 + $0x148] sm:$0xff]
  %v633 = vld [vmem:[%s2 + $0x150] sm:$0xff]
  %v634 = vld [vmem:[%s2 + $0x158] sm:$0xff]
  %v635 = vld [vmem:[%s2 + $0x160] sm:$0xff]
  %v636 = vld [vmem:[%s2 + $0x168] sm:$0xff]
  %v637 = vld [vmem:[%s2 + $0x170] sm:$0xff]
  %v638 = vld [vmem:[%s2 + $0x178] sm:$0xff]
  %v639 = vld [vmem:[%s2 + $0x180] sm:$0xff]
  %v640 = vld [vmem:[%s2 + $0x188] sm:$0xff]
  %v641 = vld [vmem:[%s2 + $0x190] sm:$0xff]
  %v642 = vld [vmem:[%s2 + $0x198] sm:$0xff]
  %v643 = vld [vmem:[%s2 + $0x1a0] sm:$0xff]
  %v644 = vld [vmem:[%s2 + $0x1a8] sm:$0xff]
  %v645 = vld [vmem:[%s2 + $0x1b0] sm:$0xff]
  %v646 = vld [vmem:[%s2 + $0x1b8] sm:$0xff]
  %v647 = vld [vmem:[%s2 + $0x1c0] sm:$0xff]
  %v648 = vld [vmem:[%s2 + $0x1c8] sm:$0xff]
  %v649 = vld [vmem:[%s2 + $0x1d0] sm:$0xff]
  %v650 = vld [vmem:[%s2 + $0x1d8] sm:$0xff]
  %v651 = vld [vmem:[%s2 + $0x1e0] sm:$0xff]
  %v652 = vld [vmem:[%s2 + $0x1e8] sm:$0xff]
  %v653 = vld [vmem:[%s2 + $0x1f0] sm:$0xff]
  %v654 = vld [vmem:[%s2 + $0x1f8] sm:$0xff]
  %655 = vmatprep.subr.mxu0 %v592
  %656 = vmatpush1.msra.mxu0 %v591
  %657 = vmatprep.subr.mxu0 %v596
  %658 = vmatpush1.msra.mxu0 %v595
  %659 = vmatprep.subr.mxu0 %v600
  %660 = vmatpush1.msra.mxu0 %v599
  %661 = vmatprep.subr.mxu0 %v604
  %662 = vmatpush1.msra.mxu0 %v603
  %663 = vmatprep.subr.mxu0 %v608
  %664 = vmatpush1.msra.mxu0 %v607
  %665 = vmatprep.subr.mxu0 %v612
  %666 = vmatpush1.msra.mxu0 %v611
  %667 = vmatprep.subr.mxu0 %v616
  %668 = vmatpush1.msra.mxu0 %v615
  %669 = vmatprep.subr.mxu0 %v620
  %670 = vmatpush1.msra.mxu0 %v619
  %671 = vmatprep.subr.mxu0 %v624
  %672 = vmatpush1.msra.mxu0 %v623
  %673 = vmatprep.subr.mxu0 %v628
  %674 = vmatpush1.msra.mxu0 %v627
  %675 = vmatprep.subr.mxu0 %v632
  %676 = vmatpush1.msra.mxu0 %v631
  %677 = vmatprep.subr.mxu0 %v636
  %678 = vmatpush1.msra.mxu0 %v635
  %679 = vmatprep.subr.mxu0 %v640
  %680 = vmatpush1.msra.mxu0 %v639
  %681 = vmatprep.subr.mxu0 %v644
  %682 = vmatpush1.msra.mxu0 %v643
  %683 = vmatprep.subr.mxu0 %v648
  %684 = vmatpush1.msra.mxu0 %v647
  %685 = vmatprep.subr.mxu0 %v652
  %686 = vmatpush1.msra.mxu0 %v651
  %687 = vmatprep.subr.mxu0 0.0
  %688 = vmatpush1.msra.mxu0 0.0
  %689 = vmatprep.subr.mxu0 0.0
  %690 = vmatpush1.msra.mxu0 0.0
  %691 = vmatprep.subr.mxu0 0.0
  %692 = vmatpush1.msra.mxu0 0.0
  %693 = vmatprep.subr.mxu0 0.0
  %694 = vmatpush1.msra.mxu0 0.0
  %695 = vmatprep.subr.mxu0 0.0
  %696 = vmatpush1.msra.mxu0 0.0
  %697 = vmatprep.subr.mxu0 0.0
  %698 = vmatpush1.msra.mxu0 0.0
  %699 = vmatprep.subr.mxu0 0.0
  %700 = vmatpush1.msra.mxu0 0.0
  %701 = vmatprep.subr.mxu0 0.0
  %702 = vmatpush1.msra.mxu0 0.0
  %703 = vmatprep.subr.mxu0 0.0
  %704 = vmatpush1.msra.mxu0 0.0
  %705 = vmatprep.subr.mxu0 0.0
  %706 = vmatpush1.msra.mxu0 0.0
  %707 = vmatprep.subr.mxu0 0.0
  %708 = vmatpush1.msra.mxu0 0.0
  %709 = vmatprep.subr.mxu0 0.0
  %710 = vmatpush1.msra.mxu0 0.0
  %711 = vmatprep.subr.mxu0 0.0
  %712 = vmatpush1.msra.mxu0 0.0
  %713 = vmatprep.subr.mxu0 0.0
  %714 = vmatpush1.msra.mxu0 0.0
  %715 = vmatprep.subr.mxu0 0.0
  %716 = vmatpush1.msra.mxu0 0.0
  %717 = vmatprep.subr.mxu0 0.0
  %718 = vmatpush1.msra.mxu0 0.0
  %719 = vmatprep.mubr.f32.mxu0 0.0
  %720 = vmatmul.mubr.f32.gmra.mrb[0].mxu0 %v584
  %v721 = vpop.f32.mrb[0].mxu0
  %v722 = vadd.f32 0.0, %v721
  %v723 = vpop.f32.mrb[0].mxu0
  %v724 = vadd.f32 0.0, %v723
  %725 = vdwg.mxu0
  %726 = vmatprep.subr.mxu0 %v594
  %727 = vmatpush1.msra.mxu0 %v593
  %728 = vmatprep.subr.mxu0 %v598
  %729 = vmatpush1.msra.mxu0 %v597
  %730 = vmatprep.subr.mxu0 %v602
  %731 = vmatpush1.msra.mxu0 %v601
  %732 = vmatprep.subr.mxu0 %v606
  %733 = vmatpush1.msra.mxu0 %v605
  %734 = vmatprep.subr.mxu0 %v610
  %735 = vmatpush1.msra.mxu0 %v609
  %736 = vmatprep.subr.mxu0 %v614
  %737 = vmatpush1.msra.mxu0 %v613
  %738 = vmatprep.subr.mxu0 %v618
  %739 = vmatpush1.msra.mxu0 %v617
  %740 = vmatprep.subr.mxu0 %v622
  %741 = vmatpush1.msra.mxu0 %v621
  %742 = vmatprep.subr.mxu0 %v626
  %743 = vmatpush1.msra.mxu0 %v625
  %744 = vmatprep.subr.mxu0 %v630
  %745 = vmatpush1.msra.mxu0 %v629
  %746 = vmatprep.subr.mxu0 %v634
  %747 = vmatpush1.msra.mxu0 %v633
  %748 = vmatprep.subr.mxu0 %v638
  %749 = vmatpush1.msra.mxu0 %v637
  %750 = vmatprep.subr.mxu0 %v642
  %751 = vmatpush1.msra.mxu0 %v641
  %752 = vmatprep.subr.mxu0 %v646
  %753 = vmatpush1.msra.mxu0 %v645
  %754 = vmatprep.subr.mxu0 %v650
  %755 = vmatpush1.msra.mxu0 %v649
  %756 = vmatprep.subr.mxu0 %v654
  %757 = vmatpush1.msra.mxu0 %v653
  %758 = vmatprep.subr.mxu0 0.0
  %759 = vmatpush1.msra.mxu0 0.0
  %760 = vmatprep.subr.mxu0 0.0
  %761 = vmatpush1.msra.mxu0 0.0
  %762 = vmatprep.subr.mxu0 0.0
  %763 = vmatpush1.msra.mxu0 0.0
  %764 = vmatprep.subr.mxu0 0.0
  %765 = vmatpush1.msra.mxu0 0.0
  %766 = vmatprep.subr.mxu0 0.0
  %767 = vmatpush1.msra.mxu0 0.0
  %768 = vmatprep.subr.mxu0 0.0
  %769 = vmatpush1.msra.mxu0 0.0
  %770 = vmatprep.subr.mxu0 0.0
  %771 = vmatpush1.msra.mxu0 0.0
  %772 = vmatprep.subr.mxu0 0.0
  %773 = vmatpush1.msra.mxu0 0.0
  %774 = vmatprep.subr.mxu0 0.0
  %775 = vmatpush1.msra.mxu0 0.0
  %776 = vmatprep.subr.mxu0 0.0
  %777 = vmatpush1.msra.mxu0 0.0
  %778 = vmatprep.subr.mxu0 0.0
  %779 = vmatpush1.msra.mxu0 0.0
  %780 = vmatprep.subr.mxu0 0.0
  %781 = vmatpush1.msra.mxu0 0.0
  %782 = vmatprep.subr.mxu0 0.0
  %783 = vmatpush1.msra.mxu0 0.0
  %784 = vmatprep.subr.mxu0 0.0
  %785 = vmatpush1.msra.mxu0 0.0
  %786 = vmatprep.subr.mxu0 0.0
  %787 = vmatpush1.msra.mxu0 0.0
  %788 = vmatprep.subr.mxu0 0.0
  %789 = vmatpush1.msra.mxu0 0.0
  %790 = vmatprep.mubr.f32.mxu0 0.0
  %791 = vmatmul.mubr.f32.gmra.mrb[0].mxu0 %v584
  %v792 = vpop.f32.mrb[0].mxu0
  %v793 = vadd.f32 0.0, %v792
  %v794 = vpop.f32.mrb[0].mxu0
  %v795 = vadd.f32 0.0, %v794
  %796 = vdwg.mxu0
  %v797 = vadd.f32 %v587, %v722
  %v798 = vadd.f32 %v588, %v724
  %v799 = vadd.f32 %v589, %v793
  %v800 = vadd.f32 %v590, %v795
  %v801 = vmul.f32 %v797, 0.5
  %v802 = vtanh.pop %v801
  %v803 = vmul.f32 %v802, 0.5
  %v804 = vadd.f32 %v803, 0.5
  %v805 = vmul.f32 %v798, 0.5
  %v806 = vtanh.pop %v805
  %v807 = vmul.f32 %v806, 0.5
  %v808 = vadd.f32 %v807, 0.5
  %v809 = vtanh.pop %v799
  %v810 = vmul.f32 %v800, 0.5
  %v811 = vtanh.pop %v810
  %v812 = vmul.f32 %v811, 0.5
  %v813 = vadd.f32 %v812, 0.5
  %v814 = vmul.f32 %v808, %v582
  %v815 = vmul.f32 %v804, %v809
  %v816 = vadd.f32 %v814, %v815
  %v817 = vtanh.pop %v816
  %v818 = vmul.f32 %v813, %v817
  %s819 = scalar_lea.vmem [#allocation3], 8
  %820 = vst [vmem:[%s819] sm:$0xff] %v818
  %s821 = scalar_lea.vmem [#allocation2], 64
  %v822 = vld [vmem:[%s821] sm:$0xff]
  %v823 = vld [vmem:[%s821 + $0x8] sm:$0xff]
  %v824 = vld [vmem:[%s821 + $0x10] sm:$0xff]
  %v825 = vld [vmem:[%s821 + $0x18] sm:$0xff]
  %v826 = vld [vmem:[%s2] sm:$0xff]
  %v827 = vld [vmem:[%s2 + $0x8] sm:$0xff]
  %v828 = vld [vmem:[%s2 + $0x10] sm:$0xff]
  %v829 = vld [vmem:[%s2 + $0x18] sm:$0xff]
  %v830 = vld [vmem:[%s2 + $0x20] sm:$0xff]
  %v831 = vld [vmem:[%s2 + $0x28] sm:$0xff]
  %v832 = vld [vmem:[%s2 + $0x30] sm:$0xff]
  %v833 = vld [vmem:[%s2 + $0x38] sm:$0xff]
  %v834 = vld [vmem:[%s2 + $0x40] sm:$0xff]
  %v835 = vld [vmem:[%s2 + $0x48] sm:$0xff]
  %v836 = vld [vmem:[%s2 + $0x50] sm:$0xff]
  %v837 = vld [vmem:[%s2 + $0x58] sm:$0xff]
  %v838 = vld [vmem:[%s2 + $0x60] sm:$0xff]
  %v839 = vld [vmem:[%s2 + $0x68] sm:$0xff]
  %v840 = vld [vmem:[%s2 + $0x70] sm:$0xff]
  %v841 = vld [vmem:[%s2 + $0x78] sm:$0xff]
  %v842 = vld [vmem:[%s2 + $0x80] sm:$0xff]
  %v843 = vld [vmem:[%s2 + $0x88] sm:$0xff]
  %v844 = vld [vmem:[%s2 + $0x90] sm:$0xff]
  %v845 = vld [vmem:[%s2 + $0x98] sm:$0xff]
  %v846 = vld [vmem:[%s2 + $0xa0] sm:$0xff]
  %v847 = vld [vmem:[%s2 + $0xa8] sm:$0xff]
  %v848 = vld [vmem:[%s2 + $0xb0] sm:$0xff]
  %v849 = vld [vmem:[%s2 + $0xb8] sm:$0xff]
  %v850 = vld [vmem:[%s2 + $0xc0] sm:$0xff]
  %v851 = vld [vmem:[%s2 + $0xc8] sm:$0xff]
  %v852 = vld [vmem:[%s2 + $0xd0] sm:$0xff]
  %v853 = vld [vmem:[%s2 + $0xd8] sm:$0xff]
  %v854 = vld [vmem:[%s2 + $0xe0] sm:$0xff]
  %v855 = vld [vmem:[%s2 + $0xe8] sm:$0xff]
  %v856 = vld [vmem:[%s2 + $0xf0] sm:$0xff]
  %v857 = vld [vmem:[%s2 + $0xf8] sm:$0xff]
  %v858 = vld [vmem:[%s2 + $0x100] sm:$0xff]
  %v859 = vld [vmem:[%s2 + $0x108] sm:$0xff]
  %v860 = vld [vmem:[%s2 + $0x110] sm:$0xff]
  %v861 = vld [vmem:[%s2 + $0x118] sm:$0xff]
  %v862 = vld [vmem:[%s2 + $0x120] sm:$0xff]
  %v863 = vld [vmem:[%s2 + $0x128] sm:$0xff]
  %v864 = vld [vmem:[%s2 + $0x130] sm:$0xff]
  %v865 = vld [vmem:[%s2 + $0x138] sm:$0xff]
  %v866 = vld [vmem:[%s2 + $0x140] sm:$0xff]
  %v867 = vld [vmem:[%s2 + $0x148] sm:$0xff]
  %v868 = vld [vmem:[%s2 + $0x150] sm:$0xff]
  %v869 = vld [vmem:[%s2 + $0x158] sm:$0xff]
  %v870 = vld [vmem:[%s2 + $0x160] sm:$0xff]
  %v871 = vld [vmem:[%s2 + $0x168] sm:$0xff]
  %v872 = vld [vmem:[%s2 + $0x170] sm:$0xff]
  %v873 = vld [vmem:[%s2 + $0x178] sm:$0xff]
  %v874 = vld [vmem:[%s2 + $0x180] sm:$0xff]
  %v875 = vld [vmem:[%s2 + $0x188] sm:$0xff]
  %v876 = vld [vmem:[%s2 + $0x190] sm:$0xff]
  %v877 = vld [vmem:[%s2 + $0x198] sm:$0xff]
  %v878 = vld [vmem:[%s2 + $0x1a0] sm:$0xff]
  %v879 = vld [vmem:[%s2 + $0x1a8] sm:$0xff]
  %v880 = vld [vmem:[%s2 + $0x1b0] sm:$0xff]
  %v881 = vld [vmem:[%s2 + $0x1b8] sm:$0xff]
  %v882 = vld [vmem:[%s2 + $0x1c0] sm:$0xff]
  %v883 = vld [vmem:[%s2 + $0x1c8] sm:$0xff]
  %v884 = vld [vmem:[%s2 + $0x1d0] sm:$0xff]
  %v885 = vld [vmem:[%s2 + $0x1d8] sm:$0xff]
  %v886 = vld [vmem:[%s2 + $0x1e0] sm:$0xff]
  %v887 = vld [vmem:[%s2 + $0x1e8] sm:$0xff]
  %v888 = vld [vmem:[%s2 + $0x1f0] sm:$0xff]
  %v889 = vld [vmem:[%s2 + $0x1f8] sm:$0xff]
  %890 = vmatprep.subr.mxu0 %v827
  %891 = vmatpush1.msra.mxu0 %v826
  %892 = vmatprep.subr.mxu0 %v831
  %893 = vmatpush1.msra.mxu0 %v830
  %894 = vmatprep.subr.mxu0 %v835
  %895 = vmatpush1.msra.mxu0 %v834
  %896 = vmatprep.subr.mxu0 %v839
  %897 = vmatpush1.msra.mxu0 %v838
  %898 = vmatprep.subr.mxu0 %v843
  %899 = vmatpush1.msra.mxu0 %v842
  %900 = vmatprep.subr.mxu0 %v847
  %901 = vmatpush1.msra.mxu0 %v846
  %902 = vmatprep.subr.mxu0 %v851
  %903 = vmatpush1.msra.mxu0 %v850
  %904 = vmatprep.subr.mxu0 %v855
  %905 = vmatpush1.msra.mxu0 %v854
  %906 = vmatprep.subr.mxu0 %v859
  %907 = vmatpush1.msra.mxu0 %v858
  %908 = vmatprep.subr.mxu0 %v863
  %909 = vmatpush1.msra.mxu0 %v862
  %910 = vmatprep.subr.mxu0 %v867
  %911 = vmatpush1.msra.mxu0 %v866
  %912 = vmatprep.subr.mxu0 %v871
  %913 = vmatpush1.msra.mxu0 %v870
  %914 = vmatprep.subr.mxu0 %v875
  %915 = vmatpush1.msra.mxu0 %v874
  %916 = vmatprep.subr.mxu0 %v879
  %917 = vmatpush1.msra.mxu0 %v878
  %918 = vmatprep.subr.mxu0 %v883
  %919 = vmatpush1.msra.mxu0 %v882
  %920 = vmatprep.subr.mxu0 %v887
  %921 = vmatpush1.msra.mxu0 %v886
  %922 = vmatprep.subr.mxu0 0.0
  %923 = vmatpush1.msra.mxu0 0.0
  %924 = vmatprep.subr.mxu0 0.0
  %925 = vmatpush1.msra.mxu0 0.0
  %926 = vmatprep.subr.mxu0 0.0
  %927 = vmatpush1.msra.mxu0 0.0
  %928 = vmatprep.subr.mxu0 0.0
  %929 = vmatpush1.msra.mxu0 0.0
  %930 = vmatprep.subr.mxu0 0.0
  %931 = vmatpush1.msra.mxu0 0.0
  %932 = vmatprep.subr.mxu0 0.0
  %933 = vmatpush1.msra.mxu0 0.0
  %934 = vmatprep.subr.mxu0 0.0
  %935 = vmatpush1.msra.mxu0 0.0
  %936 = vmatprep.subr.mxu0 0.0
  %937 = vmatpush1.msra.mxu0 0.0
  %938 = vmatprep.subr.mxu0 0.0
  %939 = vmatpush1.msra.mxu0 0.0
  %940 = vmatprep.subr.mxu0 0.0
  %941 = vmatpush1.msra.mxu0 0.0
  %942 = vmatprep.subr.mxu0 0.0
  %943 = vmatpush1.msra.mxu0 0.0
  %944 = vmatprep.subr.mxu0 0.0
  %945 = vmatpush1.msra.mxu0 0.0
  %946 = vmatprep.subr.mxu0 0.0
  %947 = vmatpush1.msra.mxu0 0.0
  %948 = vmatprep.subr.mxu0 0.0
  %949 = vmatpush1.msra.mxu0 0.0
  %950 = vmatprep.subr.mxu0 0.0
  %951 = vmatpush1.msra.mxu0 0.0
  %952 = vmatprep.subr.mxu0 0.0
  %953 = vmatpush1.msra.mxu0 0.0
  %954 = vmatprep.mubr.f32.mxu0 0.0
  %955 = vmatmul.mubr.f32.gmra.mrb[0].mxu0 %v818
  %v956 = vpop.f32.mrb[0].mxu0
  %v957 = vadd.f32 0.0, %v956
  %v958 = vpop.f32.mrb[0].mxu0
  %v959 = vadd.f32 0.0, %v958
  %960 = vdwg.mxu0
  %961 = vmatprep.subr.mxu0 %v829
  %962 = vmatpush1.msra.mxu0 %v828
  %963 = vmatprep.subr.mxu0 %v833
  %964 = vmatpush1.msra.mxu0 %v832
  %965 = vmatprep.subr.mxu0 %v837
  %966 = vmatpush1.msra.mxu0 %v836
  %967 = vmatprep.subr.mxu0 %v841
  %968 = vmatpush1.msra.mxu0 %v840
  %969 = vmatprep.subr.mxu0 %v845
  %970 = vmatpush1.msra.mxu0 %v844
  %971 = vmatprep.subr.mxu0 %v849
  %972 = vmatpush1.msra.mxu0 %v848
  %973 = vmatprep.subr.mxu0 %v853
  %974 = vmatpush1.msra.mxu0 %v852
  %975 = vmatprep.subr.mxu0 %v857
  %976 = vmatpush1.msra.mxu0 %v856
  %977 = vmatprep.subr.mxu0 %v861
  %978 = vmatpush1.msra.mxu0 %v860
  %979 = vmatprep.subr.mxu0 %v865
  %980 = vmatpush1.msra.mxu0 %v864
  %981 = vmatprep.subr.mxu0 %v869
  %982 = vmatpush1.msra.mxu0 %v868
  %983 = vmatprep.subr.mxu0 %v873
  %984 = vmatpush1.msra.mxu0 %v872
  %985 = vmatprep.subr.mxu0 %v877
  %986 = vmatpush1.msra.mxu0 %v876
  %987 = vmatprep.subr.mxu0 %v881
  %988 = vmatpush1.msra.mxu0 %v880
  %989 = vmatprep.subr.mxu0 %v885
  %990 = vmatpush1.msra.mxu0 %v884
  %991 = vmatprep.subr.mxu0 %v889
  %992 = vmatpush1.msra.mxu0 %v888
  %993 = vmatprep.subr.mxu0 0.0
  %994 = vmatpush1.msra.mxu0 0.0
  %995 = vmatprep.subr.mxu0 0.0
  %996 = vmatpush1.msra.mxu0 0.0
  %997 = vmatprep.subr.mxu0 0.0
  %998 = vmatpush1.msra.mxu0 0.0
  %999 = vmatprep.subr.mxu0 0.0
  %1000 = vmatpush1.msra.mxu0 0.0
  %1001 = vmatprep.subr.mxu0 0.0
  %1002 = vmatpush1.msra.mxu0 0.0
  %1003 = vmatprep.subr.mxu0 0.0
  %1004 = vmatpush1.msra.mxu0 0.0
  %1005 = vmatprep.subr.mxu0 0.0
  %1006 = vmatpush1.msra.mxu0 0.0
  %1007 = vmatprep.subr.mxu0 0.0
  %1008 = vmatpush1.msra.mxu0 0.0
  %1009 = vmatprep.subr.mxu0 0.0
  %1010 = vmatpush1.msra.mxu0 0.0
  %1011 = vmatprep.subr.mxu0 0.0
  %1012 = vmatpush1.msra.mxu0 0.0
  %1013 = vmatprep.subr.mxu0 0.0
  %1014 = vmatpush1.msra.mxu0 0.0
  %1015 = vmatprep.subr.mxu0 0.0
  %1016 = vmatpush1.msra.mxu0 0.0
  %1017 = vmatprep.subr.mxu0 0.0
  %1018 = vmatpush1.msra.mxu0 0.0
  %1019 = vmatprep.subr.mxu0 0.0
  %1020 = vmatpush1.msra.mxu0 0.0
  %1021 = vmatprep.subr.mxu0 0.0
  %1022 = vmatpush1.msra.mxu0 0.0
  %1023 = vmatprep.subr.mxu0 0.0
  %1024 = vmatpush1.msra.mxu0 0.0
  %1025 = vmatprep.mubr.f32.mxu0 0.0
  %1026 = vmatmul.mubr.f32.gmra.mrb[0].mxu0 %v818
  %v1027 = vpop.f32.mrb[0].mxu0
  %v1028 = vadd.f32 0.0, %v1027
  %v1029 = vpop.f32.mrb[0].mxu0
  %v1030 = vadd.f32 0.0, %v1029
  %1031 = vdwg.mxu0
  %v1032 = vadd.f32 %v822, %v957
  %v1033 = vadd.f32 %v823, %v959
  %v1034 = vadd.f32 %v824, %v1028
  %v1035 = vadd.f32 %v825, %v1030
  %v1036 = vmul.f32 %v1032, 0.5
  %v1037 = vtanh.pop %v1036
  %v1038 = vmul.f32 %v1037, 0.5
  %v1039 = vadd.f32 %v1038, 0.5
  %v1040 = vmul.f32 %v1033, 0.5
  %v1041 = vtanh.pop %v1040
  %v1042 = vmul.f32 %v1041, 0.5
  %v1043 = vadd.f32 %v1042, 0.5
  %v1044 = vtanh.pop %v1034
  %v1045 = vmul.f32 %v1035, 0.5
  %v1046 = vtanh.pop %v1045
  %v1047 = vmul.f32 %v1046, 0.5
  %v1048 = vadd.f32 %v1047, 0.5
  %v1049 = vmul.f32 %v1043, %v816
  %v1050 = vmul.f32 %v1039, %v1044
  %v1051 = vadd.f32 %v1049, %v1050
  %v1052 = vtanh.pop %v1051
  %v1053 = vmul.f32 %v1048, %v1052
  %s1054 = scalar_lea.vmem [#allocation3], 16
  %1055 = vst [vmem:[%s1054] sm:$0xff] %v1053
  %s1056 = scalar_lea.vmem [#allocation2], 96
  %v1057 = vld [vmem:[%s1056] sm:$0xff]
  %v1058 = vld [vmem:[%s1056 + $0x8] sm:$0xff]
  %v1059 = vld [vmem:[%s1056 + $0x10] sm:$0xff]
  %v1060 = vld [vmem:[%s1056 + $0x18] sm:$0xff]
  %v1061 = vld [vmem:[%s2] sm:$0xff]
  %v1062 = vld [vmem:[%s2 + $0x8] sm:$0xff]
  %v1063 = vld [vmem:[%s2 + $0x10] sm:$0xff]
  %v1064 = vld [vmem:[%s2 + $0x18] sm:$0xff]
  %v1065 = vld [vmem:[%s2 + $0x20] sm:$0xff]
  %v1066 = vld [vmem:[%s2 + $0x28] sm:$0xff]
  %v1067 = vld [vmem:[%s2 + $0x30] sm:$0xff]
  %v1068 = vld [vmem:[%s2 + $0x38] sm:$0xff]
  %v1069 = vld [vmem:[%s2 + $0x40] sm:$0xff]
  %v1070 = vld [vmem:[%s2 + $0x48] sm:$0xff]
  %v1071 = vld [vmem:[%s2 + $0x50] sm:$0xff]
  %v1072 = vld [vmem:[%s2 + $0x58] sm:$0xff]
  %v1073 = vld [vmem:[%s2 + $0x60] sm:$0xff]
  %v1074 = vld [vmem:[%s2 + $0x68] sm:$0xff]
  %v1075 = vld [vmem:[%s2 + $0x70] sm:$0xff]
  %v1076 = vld [vmem:[%s2 + $0x78] sm:$0xff]
  %v1077 = vld [vmem:[%s2 + $0x80] sm:$0xff]
  %v1078 = vld [vmem:[%s2 + $0x88] sm:$0xff]
  %v1079 = vld [vmem:[%s2 + $0x90] sm:$0xff]
  %v1080 = vld [vmem:[%s2 + $0x98] sm:$0xff]
  %v1081 = vld [vmem:[%s2 + $0xa0] sm:$0xff]
  %v1082 = vld [vmem:[%s2 + $0xa8] sm:$0xff]
  %v1083 = vld [vmem:[%s2 + $0xb0] sm:$0xff]
  %v1084 = vld [vmem:[%s2 + $0xb8] sm:$0xff]
  %v1085 = vld [vmem:[%s2 + $0xc0] sm:$0xff]
  %v1086 = vld [vmem:[%s2 + $0xc8] sm:$0xff]
  %v1087 = vld [vmem:[%s2 + $0xd0] sm:$0xff]
  %v1088 = vld [vmem:[%s2 + $0xd8] sm:$0xff]
  %v1089 = vld [vmem:[%s2 + $0xe0] sm:$0xff]
  %v1090 = vld [vmem:[%s2 + $0xe8] sm:$0xff]
  %v1091 = vld [vmem:[%s2 + $0xf0] sm:$0xff]
  %v1092 = vld [vmem:[%s2 + $0xf8] sm:$0xff]
  %v1093 = vld [vmem:[%s2 + $0x100] sm:$0xff]
  %v1094 = vld [vmem:[%s2 + $0x108] sm:$0xff]
  %v1095 = vld [vmem:[%s2 + $0x110] sm:$0xff]
  %v1096 = vld [vmem:[%s2 + $0x118] sm:$0xff]
  %v1097 = vld [vmem:[%s2 + $0x120] sm:$0xff]
  %v1098 = vld [vmem:[%s2 + $0x128] sm:$0xff]
  %v1099 = vld [vmem:[%s2 + $0x130] sm:$0xff]
  %v1100 = vld [vmem:[%s2 + $0x138] sm:$0xff]
  %v1101 = vld [vmem:[%s2 + $0x140] sm:$0xff]
  %v1102 = vld [vmem:[%s2 + $0x148] sm:$0xff]
  %v1103 = vld [vmem:[%s2 + $0x150] sm:$0xff]
  %v1104 = vld [vmem:[%s2 + $0x158] sm:$0xff]
  %v1105 = vld [vmem:[%s2 + $0x160] sm:$0xff]
  %v1106 = vld [vmem:[%s2 + $0x168] sm:$0xff]
  %v1107 = vld [vmem:[%s2 + $0x170] sm:$0xff]
  %v1108 = vld [vmem:[%s2 + $0x178] sm:$0xff]
  %v1109 = vld [vmem:[%s2 + $0x180] sm:$0xff]
  %v1110 = vld [vmem:[%s2 + $0x188] sm:$0xff]
  %v1111 = vld [vmem:[%s2 + $0x190] sm:$0xff]
  %v1112 = vld [vmem:[%s2 + $0x198] sm:$0xff]
  %v1113 = vld [vmem:[%s2 + $0x1a0] sm:$0xff]
  %v1114 = vld [vmem:[%s2 + $0x1a8] sm:$0xff]
  %v1115 = vld [vmem:[%s2 + $0x1b0] sm:$0xff]
  %v1116 = vld [vmem:[%s2 + $0x1b8] sm:$0xff]
  %v1117 = vld [vmem:[%s2 + $0x1c0] sm:$0xff]
  %v1118 = vld [vmem:[%s2 + $0x1c8] sm:$0xff]
  %v1119 = vld [vmem:[%s2 + $0x1d0] sm:$0xff]
  %v1120 = vld [vmem:[%s2 + $0x1d8] sm:$0xff]
  %v1121 = vld [vmem:[%s2 + $0x1e0] sm:$0xff]
  %v1122 = vld [vmem:[%s2 + $0x1e8] sm:$0xff]
  %v1123 = vld [vmem:[%s2 + $0x1f0] sm:$0xff]
  %v1124 = vld [vmem:[%s2 + $0x1f8] sm:$0xff]
  %1125 = vmatprep.subr.mxu0 %v1062
  %1126 = vmatpush1.msra.mxu0 %v1061
  %1127 = vmatprep.subr.mxu0 %v1066
  %1128 = vmatpush1.msra.mxu0 %v1065
  %1129 = vmatprep.subr.mxu0 %v1070
  %1130 = vmatpush1.msra.mxu0 %v1069
  %1131 = vmatprep.subr.mxu0 %v1074
  %1132 = vmatpush1.msra.mxu0 %v1073
  %1133 = vmatprep.subr.mxu0 %v1078
  %1134 = vmatpush1.msra.mxu0 %v1077
  %1135 = vmatprep.subr.mxu0 %v1082
  %1136 = vmatpush1.msra.mxu0 %v1081
  %1137 = vmatprep.subr.mxu0 %v1086
  %1138 = vmatpush1.msra.mxu0 %v1085
  %1139 = vmatprep.subr.mxu0 %v1090
  %1140 = vmatpush1.msra.mxu0 %v1089
  %1141 = vmatprep.subr.mxu0 %v1094
  %1142 = vmatpush1.msra.mxu0 %v1093
  %1143 = vmatprep.subr.mxu0 %v1098
  %1144 = vmatpush1.msra.mxu0 %v1097
  %1145 = vmatprep.subr.mxu0 %v1102
  %1146 = vmatpush1.msra.mxu0 %v1101
  %1147 = vmatprep.subr.mxu0 %v1106
  %1148 = vmatpush1.msra.mxu0 %v1105
  %1149 = vmatprep.subr.mxu0 %v1110
  %1150 = vmatpush1.msra.mxu0 %v1109
  %1151 = vmatprep.subr.mxu0 %v1114
  %1152 = vmatpush1.msra.mxu0 %v1113
  %1153 = vmatprep.subr.mxu0 %v1118
  %1154 = vmatpush1.msra.mxu0 %v1117
  %1155 = vmatprep.subr.mxu0 %v1122
  %1156 = vmatpush1.msra.mxu0 %v1121
  %1157 = vmatprep.subr.mxu0 0.0
  %1158 = vmatpush1.msra.mxu0 0.0
  %1159 = vmatprep.subr.mxu0 0.0
  %1160 = vmatpush1.msra.mxu0 0.0
  %1161 = vmatprep.subr.mxu0 0.0
  %1162 = vmatpush1.msra.mxu0 0.0
  %1163 = vmatprep.subr.mxu0 0.0
  %1164 = vmatpush1.msra.mxu0 0.0
  %1165 = vmatprep.subr.mxu0 0.0
  %1166 = vmatpush1.msra.mxu0 0.0
  %1167 = vmatprep.subr.mxu0 0.0
  %1168 = vmatpush1.msra.mxu0 0.0
  %1169 = vmatprep.subr.mxu0 0.0
  %1170 = vmatpush1.msra.mxu0 0.0
  %1171 = vmatprep.subr.mxu0 0.0
  %1172 = vmatpush1.msra.mxu0 0.0
  %1173 = vmatprep.subr.mxu0 0.0
  %1174 = vmatpush1.msra.mxu0 0.0
  %1175 = vmatprep.subr.mxu0 0.0
  %1176 = vmatpush1.msra.mxu0 0.0
  %1177 = vmatprep.subr.mxu0 0.0
  %1178 = vmatpush1.msra.mxu0 0.0
  %1179 = vmatprep.subr.mxu0 0.0
  %1180 = vmatpush1.msra.mxu0 0.0
  %1181 = vmatprep.subr.mxu0 0.0
  %1182 = vmatpush1.msra.mxu0 0.0
  %1183 = vmatprep.subr.mxu0 0.0
  %1184 = vmatpush1.msra.mxu0 0.0
  %1185 = vmatprep.subr.mxu0 0.0
  %1186 = vmatpush1.msra.mxu0 0.0
  %1187 = vmatprep.subr.mxu0 0.0
  %1188 = vmatpush1.msra.mxu0 0.0
  %1189 = vmatprep.mubr.f32.mxu0 0.0
  %1190 = vmatmul.mubr.f32.gmra.mrb[0].mxu0 %v1053
  %v1191 = vpop.f32.mrb[0].mxu0
  %v1192 = vadd.f32 0.0, %v1191
  %v1193 = vpop.f32.mrb[0].mxu0
  %v1194 = vadd.f32 0.0, %v1193
  %1195 = vdwg.mxu0
  %1196 = vmatprep.subr.mxu0 %v1064
  %1197 = vmatpush1.msra.mxu0 %v1063
  %1198 = vmatprep.subr.mxu0 %v1068
  %1199 = vmatpush1.msra.mxu0 %v1067
  %1200 = vmatprep.subr.mxu0 %v1072
  %1201 = vmatpush1.msra.mxu0 %v1071
  %1202 = vmatprep.subr.mxu0 %v1076
  %1203 = vmatpush1.msra.mxu0 %v1075
  %1204 = vmatprep.subr.mxu0 %v1080
  %1205 = vmatpush1.msra.mxu0 %v1079
  %1206 = vmatprep.subr.mxu0 %v1084
  %1207 = vmatpush1.msra.mxu0 %v1083
  %1208 = vmatprep.subr.mxu0 %v1088
  %1209 = vmatpush1.msra.mxu0 %v1087
  %1210 = vmatprep.subr.mxu0 %v1092
  %1211 = vmatpush1.msra.mxu0 %v1091
  %1212 = vmatprep.subr.mxu0 %v1096
  %1213 = vmatpush1.msra.mxu0 %v1095
  %1214 = vmatprep.subr.mxu0 %v1100
  %1215 = vmatpush1.msra.mxu0 %v1099
  %1216 = vmatprep.subr.mxu0 %v1104
  %1217 = vmatpush1.msra.mxu0 %v1103
  %1218 = vmatprep.subr.mxu0 %v1108
  %1219 = vmatpush1.msra.mxu0 %v1107
  %1220 = vmatprep.subr.mxu0 %v1112
  %1221 = vmatpush1.msra.mxu0 %v1111
  %1222 = vmatprep.subr.mxu0 %v1116
  %1223 = vmatpush1.msra.mxu0 %v1115
  %1224 = vmatprep.subr.mxu0 %v1120
  %1225 = vmatpush1.msra.mxu0 %v1119
  %1226 = vmatprep.subr.mxu0 %v1124
  %1227 = vmatpush1.msra.mxu0 %v1123
  %1228 = vmatprep.subr.mxu0 0.0
  %1229 = vmatpush1.msra.mxu0 0.0
  %1230 = vmatprep.subr.mxu0 0.0
  %1231 = vmatpush1.msra.mxu0 0.0
  %1232 = vmatprep.subr.mxu0 0.0
  %1233 = vmatpush1.msra.mxu0 0.0
  %1234 = vmatprep.subr.mxu0 0.0
  %1235 = vmatpush1.msra.mxu0 0.0
  %1236 = vmatprep.subr.mxu0 0.0
  %1237 = vmatpush1.msra.mxu0 0.0
  %1238 = vmatprep.subr.mxu0 0.0
  %1239 = vmatpush1.msra.mxu0 0.0
  %1240 = vmatprep.subr.mxu0 0.0
  %1241 = vmatpush1.msra.mxu0 0.0
  %1242 = vmatprep.subr.mxu0 0.0
  %1243 = vmatpush1.msra.mxu0 0.0
  %1244 = vmatprep.subr.mxu0 0.0
  %1245 = vmatpush1.msra.mxu0 0.0
  %1246 = vmatprep.subr.mxu0 0.0
  %1247 = vmatpush1.msra.mxu0 0.0
  %1248 = vmatprep.subr.mxu0 0.0
  %1249 = vmatpush1.msra.mxu0 0.0
  %1250 = vmatprep.subr.mxu0 0.0
  %1251 = vmatpush1.msra.mxu0 0.0
  %1252 = vmatprep.subr.mxu0 0.0
  %1253 = vmatpush1.msra.mxu0 0.0
  %1254 = vmatprep.subr.mxu0 0.0
  %1255 = vmatpush1.msra.mxu0 0.0
  %1256 = vmatprep.subr.mxu0 0.0
  %1257 = vmatpush1.msra.mxu0 0.0
  %1258 = vmatprep.subr.mxu0 0.0
  %1259 = vmatpush1.msra.mxu0 0.0
  %1260 = vmatprep.mubr.f32.mxu0 0.0
  %1261 = vmatmul.mubr.f32.gmra.mrb[0].mxu0 %v1053
  %v1262 = vpop.f32.mrb[0].mxu0
  %v1263 = vadd.f32 0.0, %v1262
  %v1264 = vpop.f32.mrb[0].mxu0
  %v1265 = vadd.f32 0.0, %v1264
  %1266 = vdwg.mxu0
  %v1267 = vadd.f32 %v1057, %v1192
  %v1268 = vadd.f32 %v1058, %v1194
  %v1269 = vadd.f32 %v1059, %v1263
  %v1270 = vadd.f32 %v1060, %v1265
  %v1271 = vmul.f32 %v1267, 0.5
  %v1272 = vtanh.pop %v1271
  %v1273 = vmul.f32 %v1272, 0.5
  %v1274 = vadd.f32 %v1273, 0.5
  %v1275 = vmul.f32 %v1268, 0.5
  %v1276 = vtanh.pop %v1275
  %v1277 = vmul.f32 %v1276, 0.5
  %v1278 = vadd.f32 %v1277, 0.5
  %v1279 = vtanh.pop %v1269
  %v1280 = vmul.f32 %v1270, 0.5
  %v1281 = vtanh.pop %v1280
  %v1282 = vmul.f32 %v1281, 0.5
  %v1283 = vadd.f32 %v1282, 0.5
  %v1284 = vmul.f32 %v1278, %v1051
  %v1285 = vmul.f32 %v1274, %v1279
  %v1286 = vadd.f32 %v1284, %v1285
  %v1287 = vtanh.pop %v1286
  %v1288 = vmul.f32 %v1283, %v1287
  %s1289 = scalar_lea.vmem [#allocation3], 24
  %1290 = vst [vmem:[%s1289] sm:$0xff] %v1288
  %s1291 = scalar_lea.vmem [#allocation2], 128
  %v1292 = vld [vmem:[%s1291] sm:$0xff]
  %v1293 = vld [vmem:[%s1291 + $0x8] sm:$0xff]
  %v1294 = vld [vmem:[%s1291 + $0x10] sm:$0xff]
  %v1295 = vld [vmem:[%s1291 + $0x18] sm:$0xff]
  %v1296 = vld [vmem:[%s2] sm:$0xff]
  %v1297 = vld [vmem:[%s2 + $0x8] sm:$0xff]
  %v1298 = vld [vmem:[%s2 + $0x10] sm:$0xff]
  %v1299 = vld [vmem:[%s2 + $0x18] sm:$0xff]
  %v1300 = vld [vmem:[%s2 + $0x20] sm:$0xff]
  %v1301 = vld [vmem:[%s2 + $0x28] sm:$0xff]
  %v1302 = vld [vmem:[%s2 + $0x30] sm:$0xff]
  %v1303 = vld [vmem:[%s2 + $0x38] sm:$0xff]
  %v1304 = vld [vmem:[%s2 + $0x40] sm:$0xff]
  %v1305 = vld [vmem:[%s2 + $0x48] sm:$0xff]
  %v1306 = vld [vmem:[%s2 + $0x50] sm:$0xff]
  %v1307 = vld [vmem:[%s2 + $0x58] sm:$0xff]
  %v1308 = vld [vmem:[%s2 + $0x60] sm:$0xff]
  %v1309 = vld [vmem:[%s2 + $0x68] sm:$0xff]
  %v1310 = vld [vmem:[%s2 + $0x70] sm:$0xff]
  %v1311 = vld [vmem:[%s2 + $0x78] sm:$0xff]
  %v1312 = vld [vmem:[%s2 + $0x80] sm:$0xff]
  %v1313 = vld [vmem:[%s2 + $0x88] sm:$0xff]
  %v1314 = vld [vmem:[%s2 + $0x90] sm:$0xff]
  %v1315 = vld [vmem:[%s2 + $0x98] sm:$0xff]
  %v1316 = vld [vmem:[%s2 + $0xa0] sm:$0xff]
  %v1317 = vld [vmem:[%s2 + $0xa8] sm:$0xff]
  %v1318 = vld [vmem:[%s2 + $0xb0] sm:$0xff]
  %v1319 = vld [vmem:[%s2 + $0xb8] sm:$0xff]
  %v1320 = vld [vmem:[%s2 + $0xc0] sm:$0xff]
  %v1321 = vld [vmem:[%s2 + $0xc8] sm:$0xff]
  %v1322 = vld [vmem:[%s2 + $0xd0] sm:$0xff]
  %v1323 = vld [vmem:[%s2 + $0xd8] sm:$0xff]
  %v1324 = vld [vmem:[%s2 + $0xe0] sm:$0xff]
  %v1325 = vld [vmem:[%s2 + $0xe8] sm:$0xff]
  %v1326 = vld [vmem:[%s2 + $0xf0] sm:$0xff]
  %v1327 = vld [vmem:[%s2 + $0xf8] sm:$0xff]
  %v1328 = vld [vmem:[%s2 + $0x100] sm:$0xff]
  %v1329 = vld [vmem:[%s2 + $0x108] sm:$0xff]
  %v1330 = vld [vmem:[%s2 + $0x110] sm:$0xff]
  %v1331 = vld [vmem:[%s2 + $0x118] sm:$0xff]
  %v1332 = vld [vmem:[%s2 + $0x120] sm:$0xff]
  %v1333 = vld [vmem:[%s2 + $0x128] sm:$0xff]
  %v1334 = vld [vmem:[%s2 + $0x130] sm:$0xff]
  %v1335 = vld [vmem:[%s2 + $0x138] sm:$0xff]
  %v1336 = vld [vmem:[%s2 + $0x140] sm:$0xff]
  %v1337 = vld [vmem:[%s2 + $0x148] sm:$0xff]
  %v1338 = vld [vmem:[%s2 + $0x150] sm:$0xff]
  %v1339 = vld [vmem:[%s2 + $0x158] sm:$0xff]
  %v1340 = vld [vmem:[%s2 + $0x160] sm:$0xff]
  %v1341 = vld [vmem:[%s2 + $0x168] sm:$0xff]
  %v1342 = vld [vmem:[%s2 + $0x170] sm:$0xff]
  %v1343 = vld [vmem:[%s2 + $0x178] sm:$0xff]
  %v1344 = vld [vmem:[%s2 + $0x180] sm:$0xff]
  %v1345 = vld [vmem:[%s2 + $0x188] sm:$0xff]
  %v1346 = vld [vmem:[%s2 + $0x190] sm:$0xff]
  %v1347 = vld [vmem:[%s2 + $0x198] sm:$0xff]
  %v1348 = vld [vmem:[%s2 + $0x1a0] sm:$0xff]
  %v1349 = vld [vmem:[%s2 + $0x1a8] sm:$0xff]
  %v1350 = vld [vmem:[%s2 + $0x1b0] sm:$0xff]
  %v1351 = vld [vmem:[%s2 + $0x1b8] sm:$0xff]
  %v1352 = vld [vmem:[%s2 + $0x1c0] sm:$0xff]
  %v1353 = vld [vmem:[%s2 + $0x1c8] sm:$0xff]
  %v1354 = vld [vmem:[%s2 + $0x1d0] sm:$0xff]
  %v1355 = vld [vmem:[%s2 + $0x1d8] sm:$0xff]
  %v1356 = vld [vmem:[%s2 + $0x1e0] sm:$0xff]
  %v1357 = vld [vmem:[%s2 + $0x1e8] sm:$0xff]
  %v1358 = vld [vmem:[%s2 + $0x1f0] sm:$0xff]
  %v1359 = vld [vmem:[%s2 + $0x1f8] sm:$0xff]
  %1360 = vmatprep.subr.mxu0 %v1297
  %1361 = vmatpush1.msra.mxu0 %v1296
  %1362 = vmatprep.subr.mxu0 %v1301
  %1363 = vmatpush1.msra.mxu0 %v1300
  %1364 = vmatprep.subr.mxu0 %v1305
  %1365 = vmatpush1.msra.mxu0 %v1304
  %1366 = vmatprep.subr.mxu0 %v1309
  %1367 = vmatpush1.msra.mxu0 %v1308
  %1368 = vmatprep.subr.mxu0 %v1313
  %1369 = vmatpush1.msra.mxu0 %v1312
  %1370 = vmatprep.subr.mxu0 %v1317
  %1371 = vmatpush1.msra.mxu0 %v1316
  %1372 = vmatprep.subr.mxu0 %v1321
  %1373 = vmatpush1.msra.mxu0 %v1320
  %1374 = vmatprep.subr.mxu0 %v1325
  %1375 = vmatpush1.msra.mxu0 %v1324
  %1376 = vmatprep.subr.mxu0 %v1329
  %1377 = vmatpush1.msra.mxu0 %v1328
  %1378 = vmatprep.subr.mxu0 %v1333
  %1379 = vmatpush1.msra.mxu0 %v1332
  %1380 = vmatprep.subr.mxu0 %v1337
  %1381 = vmatpush1.msra.mxu0 %v1336
  %1382 = vmatprep.subr.mxu0 %v1341
  %1383 = vmatpush1.msra.mxu0 %v1340
  %1384 = vmatprep.subr.mxu0 %v1345
  %1385 = vmatpush1.msra.mxu0 %v1344
  %1386 = vmatprep.subr.mxu0 %v1349
  %1387 = vmatpush1.msra.mxu0 %v1348
  %1388 = vmatprep.subr.mxu0 %v1353
  %1389 = vmatpush1.msra.mxu0 %v1352
  %1390 = vmatprep.subr.mxu0 %v1357
  %1391 = vmatpush1.msra.mxu0 %v1356
  %1392 = vmatprep.subr.mxu0 0.0
  %1393 = vmatpush1.msra.mxu0 0.0
  %1394 = vmatprep.subr.mxu0 0.0
  %1395 = vmatpush1.msra.mxu0 0.0
  %1396 = vmatprep.subr.mxu0 0.0
  %1397 = vmatpush1.msra.mxu0 0.0
  %1398 = vmatprep.subr.mxu0 0.0
  %1399 = vmatpush1.msra.mxu0 0.0
  %1400 = vmatprep.subr.mxu0 0.0
  %1401 = vmatpush1.msra.mxu0 0.0
  %1402 = vmatprep.subr.mxu0 0.0
  %1403 = vmatpush1.msra.mxu0 0.0
  %1404 = vmatprep.subr.mxu0 0.0
  %1405 = vmatpush1.msra.mxu0 0.0
  %1406 = vmatprep.subr.mxu0 0.0
  %1407 = vmatpush1.msra.mxu0 0.0
  %1408 = vmatprep.subr.mxu0 0.0
  %1409 = vmatpush1.msra.mxu0 0.0
  %1410 = vmatprep.subr.mxu0 0.0
  %1411 = vmatpush1.msra.mxu0 0.0
  %1412 = vmatprep.subr.mxu0 0.0
  %1413 = vmatpush1.msra.mxu0 0.0
  %1414 = vmatprep.subr.mxu0 0.0
  %1415 = vmatpush1.msra.mxu0 0.0
  %1416 = vmatprep.subr.mxu0 0.0
  %1417 = vmatpush1.msra.mxu0 0.0
  %1418 = vmatprep.subr.mxu0 0.0
  %1419 = vmatpush1.msra.mxu0 0.0
  %1420 = vmatprep.subr.mxu0 0.0
  %1421 = vmatpush1.msra.mxu0 0.0
  %1422 = vmatprep.subr.mxu0 0.0
  %1423 = vmatpush1.msra.mxu0 0.0
  %1424 = vmatprep.mubr.f32.mxu0 0.0
  %1425 = vmatmul.mubr.f32.gmra.mrb[0].mxu0 %v1288
  %v1426 = vpop.f32.mrb[0].mxu0
  %v1427 = vadd.f32 0.0, %v1426
  %v1428 = vpop.f32.mrb[0].mxu0
  %v1429 = vadd.f32 0.0, %v1428
  %1430 = vdwg.mxu0
  %1431 = vmatprep.subr.mxu0 %v1299
  %1432 = vmatpush1.msra.mxu0 %v1298
  %1433 = vmatprep.subr.mxu0 %v1303
  %1434 = vmatpush1.msra.mxu0 %v1302
  %1435 = vmatprep.subr.mxu0 %v1307
  %1436 = vmatpush1.msra.mxu0 %v1306
  %1437 = vmatprep.subr.mxu0 %v1311
  %1438 = vmatpush1.msra.mxu0 %v1310
  %1439 = vmatprep.subr.mxu0 %v1315
  %1440 = vmatpush1.msra.mxu0 %v1314
  %1441 = vmatprep.subr.mxu0 %v1319
  %1442 = vmatpush1.msra.mxu0 %v1318
  %1443 = vmatprep.subr.mxu0 %v1323
  %1444 = vmatpush1.msra.mxu0 %v1322
  %1445 = vmatprep.subr.mxu0 %v1327
  %1446 = vmatpush1.msra.mxu0 %v1326
  %1447 = vmatprep.subr.mxu0 %v1331
  %1448 = vmatpush1.msra.mxu0 %v1330
  %1449 = vmatprep.subr.mxu0 %v1335
  %1450 = vmatpush1.msra.mxu0 %v1334
  %1451 = vmatprep.subr.mxu0 %v1339
  %1452 = vmatpush1.msra.mxu0 %v1338
  %1453 = vmatprep.subr.mxu0 %v1343
  %1454 = vmatpush1.msra.mxu0 %v1342
  %1455 = vmatprep.subr.mxu0 %v1347
  %1456 = vmatpush1.msra.mxu0 %v1346
  %1457 = vmatprep.subr.mxu0 %v1351
  %1458 = vmatpush1.msra.mxu0 %v1350
  %1459 = vmatprep.subr.mxu0 %v1355
  %1460 = vmatpush1.msra.mxu0 %v1354
  %1461 = vmatprep.subr.mxu0 %v1359
  %1462 = vmatpush1.msra.mxu0 %v1358
  %1463 = vmatprep.subr.mxu0 0.0
  %1464 = vmatpush1.msra.mxu0 0.0
  %1465 = vmatprep.subr.mxu0 0.0
  %1466 = vmatpush1.msra.mxu0 0.0
  %1467 = vmatprep.subr.mxu0 0.0
  %1468 = vmatpush1.msra.mxu0 0.0
  %1469 = vmatprep.subr.mxu0 0.0
  %1470 = vmatpush1.msra.mxu0 0.0
  %1471 = vmatprep.subr.mxu0 0.0
  %1472 = vmatpush1.msra.mxu0 0.0
  %1473 = vmatprep.subr.mxu0 0.0
  %1474 = vmatpush1.msra.mxu0 0.0
  %1475 = vmatprep.subr.mxu0 0.0
  %1476 = vmatpush1.msra.mxu0 0.0
  %1477 = vmatprep.subr.mxu0 0.0
  %1478 = vmatpush1.msra.mxu0 0.0
  %1479 = vmatprep.subr.mxu0 0.0
  %1480 = vmatpush1.msra.mxu0 0.0
  %1481 = vmatprep.subr.mxu0 0.0
  %1482 = vmatpush1.msra.mxu0 0.0
  %1483 = vmatprep.subr.mxu0 0.0
  %1484 = vmatpush1.msra.mxu0 0.0
  %1485 = vmatprep.subr.mxu0 0.0
  %1486 = vmatpush1.msra.mxu0 0.0
  %1487 = vmatprep.subr.mxu0 0.0
  %1488 = vmatpush1.msra.mxu0 0.0
  %1489 = vmatprep.subr.mxu0 0.0
  %1490 = vmatpush1.msra.mxu0 0.0
  %1491 = vmatprep.subr.mxu0 0.0
  %1492 = vmatpush1.msra.mxu0 0.0
  %1493 = vmatprep.subr.mxu0 0.0
  %1494 = vmatpush1.msra.mxu0 0.0
  %1495 = vmatprep.mubr.f32.mxu0 0.0
  %1496 = vmatmul.mubr.f32.gmra.mrb[0].mxu0 %v1288
  %v1497 = vpop.f32.mrb[0].mxu0
  %v1498 = vadd.f32 0.0, %v1497
  %v1499 = vpop.f32.mrb[0].mxu0
  %v1500 = vadd.f32 0.0, %v1499
  %1501 = vdwg.mxu0
  %v1502 = vadd.f32 %v1292, %v1427
  %v1503 = vadd.f32 %v1293, %v1429
  %v1504 = vadd.f32 %v1294, %v1498
  %v1505 = vadd.f32 %v1295, %v1500
  %v1506 = vmul.f32 %v1502, 0.5
  %v1507 = vtanh.pop %v1506
  %v1508 = vmul.f32 %v1507, 0.5
  %v1509 = vadd.f32 %v1508, 0.5
  %v1510 = vmul.f32 %v1503, 0.5
  %v1511 = vtanh.pop %v1510
  %v1512 = vmul.f32 %v1511, 0.5
  %v1513 = vadd.f32 %v1512, 0.5
  %v1514 = vtanh.pop %v1504
  %v1515 = vmul.f32 %v1505, 0.5
  %v1516 = vtanh.pop %v1515
  %v1517 = vmul.f32 %v1516, 0.5
  %v1518 = vadd.f32 %v1517, 0.5
  %v1519 = vmul.f32 %v1513, %v1286
  %v1520 = vmul.f32 %v1509, %v1514
  %v1521 = vadd.f32 %v1519, %v1520
  %v1522 = vtanh.pop %v1521
  %v1523 = vmul.f32 %v1518, %v1522
  %s1524 = scalar_lea.vmem [#allocation3], 32
  %1525 = vst [vmem:[%s1524] sm:$0xff] %v1523
  %s1526 = scalar_lea.vmem [#allocation2], 160
  %v1527 = vld [vmem:[%s1526] sm:$0xff]
  %v1528 = vld [vmem:[%s1526 + $0x8] sm:$0xff]
  %v1529 = vld [vmem:[%s1526 + $0x10] sm:$0xff]
  %v1530 = vld [vmem:[%s1526 + $0x18] sm:$0xff]
  %v1531 = vld [vmem:[%s2] sm:$0xff]
  %v1532 = vld [vmem:[%s2 + $0x8] sm:$0xff]
  %v1533 = vld [vmem:[%s2 + $0x10] sm:$0xff]
  %v1534 = vld [vmem:[%s2 + $0x18] sm:$0xff]
  %v1535 = vld [vmem:[%s2 + $0x20] sm:$0xff]
  %v1536 = vld [vmem:[%s2 + $0x28] sm:$0xff]
  %v1537 = vld [vmem:[%s2 + $0x30] sm:$0xff]
  %v1538 = vld [vmem:[%s2 + $0x38] sm:$0xff]
  %v1539 = vld [vmem:[%s2 + $0x40] sm:$0xff]
  %v1540 = vld [vmem:[%s2 + $0x48] sm:$0xff]
  %v1541 = vld [vmem:[%s2 + $0x50] sm:$0xff]
  %v1542 = vld [vmem:[%s2 + $0x58] sm:$0xff]
  %v1543 = vld [vmem:[%s2 + $0x60] sm:$0xff]
  %v1544 = vld [vmem:[%s2 + $0x68] sm:$0xff]
  %v1545 = vld [vmem:[%s2 + $0x70] sm:$0xff]
  %v1546 = vld [vmem:[%s2 + $0x78] sm:$0xff]
  %v1547 = vld [vmem:[%s2 + $0x80] sm:$0xff]
  %v1548 = vld [vmem:[%s2 + $0x88] sm:$0xff]
  %v1549 = vld [vmem:[%s2 + $0x90] sm:$0xff]
  %v1550 = vld [vmem:[%s2 + $0x98] sm:$0xff]
  %v1551 = vld [vmem:[%s2 + $0xa0] sm:$0xff]
  %v1552 = vld [vmem:[%s2 + $0xa8] sm:$0xff]
  %v1553 = vld [vmem:[%s2 + $0xb0] sm:$0xff]
  %v1554 = vld [vmem:[%s2 + $0xb8] sm:$0xff]
  %v1555 = vld [vmem:[%s2 + $0xc0] sm:$0xff]
  %v1556 = vld [vmem:[%s2 + $0xc8] sm:$0xff]
  %v1557 = vld [vmem:[%s2 + $0xd0] sm:$0xff]
  %v1558 = vld [vmem:[%s2 + $0xd8] sm:$0xff]
  %v1559 = vld [vmem:[%s2 + $0xe0] sm:$0xff]
  %v1560 = vld [vmem:[%s2 + $0xe8] sm:$0xff]
  %v1561 = vld [vmem:[%s2 + $0xf0] sm:$0xff]
  %v1562 = vld [vmem:[%s2 + $0xf8] sm:$0xff]
  %v1563 = vld [vmem:[%s2 + $0x100] sm:$0xff]
  %v1564 = vld [vmem:[%s2 + $0x108] sm:$0xff]
  %v1565 = vld [vmem:[%s2 + $0x110] sm:$0xff]
  %v1566 = vld [vmem:[%s2 + $0x118] sm:$0xff]
  %v1567 = vld [vmem:[%s2 + $0x120] sm:$0xff]
  %v1568 = vld [vmem:[%s2 + $0x128] sm:$0xff]
  %v1569 = vld [vmem:[%s2 + $0x130] sm:$0xff]
  %v1570 = vld [vmem:[%s2 + $0x138] sm:$0xff]
  %v1571 = vld [vmem:[%s2 + $0x140] sm:$0xff]
  %v1572 = vld [vmem:[%s2 + $0x148] sm:$0xff]
  %v1573 = vld [vmem:[%s2 + $0x150] sm:$0xff]
  %v1574 = vld [vmem:[%s2 + $0x158] sm:$0xff]
  %v1575 = vld [vmem:[%s2 + $0x160] sm:$0xff]
  %v1576 = vld [vmem:[%s2 + $0x168] sm:$0xff]
  %v1577 = vld [vmem:[%s2 + $0x170] sm:$0xff]
  %v1578 = vld [vmem:[%s2 + $0x178] sm:$0xff]
  %v1579 = vld [vmem:[%s2 + $0x180] sm:$0xff]
  %v1580 = vld [vmem:[%s2 + $0x188] sm:$0xff]
  %v1581 = vld [vmem:[%s2 + $0x190] sm:$0xff]
  %v1582 = vld [vmem:[%s2 + $0x198] sm:$0xff]
  %v1583 = vld [vmem:[%s2 + $0x1a0] sm:$0xff]
  %v1584 = vld [vmem:[%s2 + $0x1a8] sm:$0xff]
  %v1585 = vld [vmem:[%s2 + $0x1b0] sm:$0xff]
  %v1586 = vld [vmem:[%s2 + $0x1b8] sm:$0xff]
  %v1587 = vld [vmem:[%s2 + $0x1c0] sm:$0xff]
  %v1588 = vld [vmem:[%s2 + $0x1c8] sm:$0xff]
  %v1589 = vld [vmem:[%s2 + $0x1d0] sm:$0xff]
  %v1590 = vld [vmem:[%s2 + $0x1d8] sm:$0xff]
  %v1591 = vld [vmem:[%s2 + $0x1e0] sm:$0xff]
  %v1592 = vld [vmem:[%s2 + $0x1e8] sm:$0xff]
  %v1593 = vld [vmem:[%s2 + $0x1f0] sm:$0xff]
  %v1594 = vld [vmem:[%s2 + $0x1f8] sm:$0xff]
  %1595 = vmatprep.subr.mxu0 %v1532
  %1596 = vmatpush1.msra.mxu0 %v1531
  %1597 = vmatprep.subr.mxu0 %v1536
  %1598 = vmatpush1.msra.mxu0 %v1535
  %1599 = vmatprep.subr.mxu0 %v1540
  %1600 = vmatpush1.msra.mxu0 %v1539
  %1601 = vmatprep.subr.mxu0 %v1544
  %1602 = vmatpush1.msra.mxu0 %v1543
  %1603 = vmatprep.subr.mxu0 %v1548
  %1604 = vmatpush1.msra.mxu0 %v1547
  %1605 = vmatprep.subr.mxu0 %v1552
  %1606 = vmatpush1.msra.mxu0 %v1551
  %1607 = vmatprep.subr.mxu0 %v1556
  %1608 = vmatpush1.msra.mxu0 %v1555
  %1609 = vmatprep.subr.mxu0 %v1560
  %1610 = vmatpush1.msra.mxu0 %v1559
  %1611 = vmatprep.subr.mxu0 %v1564
  %1612 = vmatpush1.msra.mxu0 %v1563
  %1613 = vmatprep.subr.mxu0 %v1568
  %1614 = vmatpush1.msra.mxu0 %v1567
  %1615 = vmatprep.subr.mxu0 %v1572
  %1616 = vmatpush1.msra.mxu0 %v1571
  %1617 = vmatprep.subr.mxu0 %v1576
  %1618 = vmatpush1.msra.mxu0 %v1575
  %1619 = vmatprep.subr.mxu0 %v1580
  %1620 = vmatpush1.msra.mxu0 %v1579
  %1621 = vmatprep.subr.mxu0 %v1584
  %1622 = vmatpush1.msra.mxu0 %v1583
  %1623 = vmatprep.subr.mxu0 %v1588
  %1624 = vmatpush1.msra.mxu0 %v1587
  %1625 = vmatprep.subr.mxu0 %v1592
  %1626 = vmatpush1.msra.mxu0 %v1591
  %1627 = vmatprep.subr.mxu0 0.0
  %1628 = vmatpush1.msra.mxu0 0.0
  %1629 = vmatprep.subr.mxu0 0.0
  %1630 = vmatpush1.msra.mxu0 0.0
  %1631 = vmatprep.subr.mxu0 0.0
  %1632 = vmatpush1.msra.mxu0 0.0
  %1633 = vmatprep.subr.mxu0 0.0
  %1634 = vmatpush1.msra.mxu0 0.0
  %1635 = vmatprep.subr.mxu0 0.0
  %1636 = vmatpush1.msra.mxu0 0.0
  %1637 = vmatprep.subr.mxu0 0.0
  %1638 = vmatpush1.msra.mxu0 0.0
  %1639 = vmatprep.subr.mxu0 0.0
  %1640 = vmatpush1.msra.mxu0 0.0
  %1641 = vmatprep.subr.mxu0 0.0
  %1642 = vmatpush1.msra.mxu0 0.0
  %1643 = vmatprep.subr.mxu0 0.0
  %1644 = vmatpush1.msra.mxu0 0.0
  %1645 = vmatprep.subr.mxu0 0.0
  %1646 = vmatpush1.msra.mxu0 0.0
  %1647 = vmatprep.subr.mxu0 0.0
  %1648 = vmatpush1.msra.mxu0 0.0
  %1649 = vmatprep.subr.mxu0 0.0
  %1650 = vmatpush1.msra.mxu0 0.0
  %1651 = vmatprep.subr.mxu0 0.0
  %1652 = vmatpush1.msra.mxu0 0.0
  %1653 = vmatprep.subr.mxu0 0.0
  %1654 = vmatpush1.msra.mxu0 0.0
  %1655 = vmatprep.subr.mxu0 0.0
  %1656 = vmatpush1.msra.mxu0 0.0
  %1657 = vmatprep.subr.mxu0 0.0
  %1658 = vmatpush1.msra.mxu0 0.0
  %1659 = vmatprep.mubr.f32.mxu0 0.0
  %1660 = vmatmul.mubr.f32.gmra.mrb[0].mxu0 %v1523
  %v1661 = vpop.f32.mrb[0].mxu0
  %v1662 = vadd.f32 0.0, %v1661
  %v1663 = vpop.f32.mrb[0].mxu0
  %v1664 = vadd.f32 0.0, %v1663
  %1665 = vdwg.mxu0
  %1666 = vmatprep.subr.mxu0 %v1534
  %1667 = vmatpush1.msra.mxu0 %v1533
  %1668 = vmatprep.subr.mxu0 %v1538
  %1669 = vmatpush1.msra.mxu0 %v1537
  %1670 = vmatprep.subr.mxu0 %v1542
  %1671 = vmatpush1.msra.mxu0 %v1541
  %1672 = vmatprep.subr.mxu0 %v1546
  %1673 = vmatpush1.msra.mxu0 %v1545
  %1674 = vmatprep.subr.mxu0 %v1550
  %1675 = vmatpush1.msra.mxu0 %v1549
  %1676 = vmatprep.subr.mxu0 %v1554
  %1677 = vmatpush1.msra.mxu0 %v1553
  %1678 = vmatprep.subr.mxu0 %v1558
  %1679 = vmatpush1.msra.mxu0 %v1557
  %1680 = vmatprep.subr.mxu0 %v1562
  %1681 = vmatpush1.msra.mxu0 %v1561
  %1682 = vmatprep.subr.mxu0 %v1566
  %1683 = vmatpush1.msra.mxu0 %v1565
  %1684 = vmatprep.subr.mxu0 %v1570
  %1685 = vmatpush1.msra.mxu0 %v1569
  %1686 = vmatprep.subr.mxu0 %v1574
  %1687 = vmatpush1.msra.mxu0 %v1573
  %1688 = vmatprep.subr.mxu0 %v1578
  %1689 = vmatpush1.msra.mxu0 %v1577
  %1690 = vmatprep.subr.mxu0 %v1582
  %1691 = vmatpush1.msra.mxu0 %v1581
  %1692 = vmatprep.subr.mxu0 %v1586
  %1693 = vmatpush1.msra.mxu0 %v1585
  %1694 = vmatprep.subr.mxu0 %v1590
  %1695 = vmatpush1.msra.mxu0 %v1589
  %1696 = vmatprep.subr.mxu0 %v1594
  %1697 = vmatpush1.msra.mxu0 %v1593
  %1698 = vmatprep.subr.mxu0 0.0
  %1699 = vmatpush1.msra.mxu0 0.0
  %1700 = vmatprep.subr.mxu0 0.0
  %1701 = vmatpush1.msra.mxu0 0.0
  %1702 = vmatprep.subr.mxu0 0.0
  %1703 = vmatpush1.msra.mxu0 0.0
  %1704 = vmatprep.subr.mxu0 0.0
  %1705 = vmatpush1.msra.mxu0 0.0
  %1706 = vmatprep.subr.mxu0 0.0
  %1707 = vmatpush1.msra.mxu0 0.0
  %1708 = vmatprep.subr.mxu0 0.0
  %1709 = vmatpush1.msra.mxu0 0.0
  %1710 = vmatprep.subr.mxu0 0.0
  %1711 = vmatpush1.msra.mxu0 0.0
  %1712 = vmatprep.subr.mxu0 0.0
  %1713 = vmatpush1.msra.mxu0 0.0
  %1714 = vmatprep.subr.mxu0 0.0
  %1715 = vmatpush1.msra.mxu0 0.0
  %1716 = vmatprep.subr.mxu0 0.0
  %1717 = vmatpush1.msra.mxu0 0.0
  %1718 = vmatprep.subr.mxu0 0.0
  %1719 = vmatpush1.msra.mxu0 0.0
  %1720 = vmatprep.subr.mxu0 0.0
  %1721 = vmatpush1.msra.mxu0 0.0
  %1722 = vmatprep.subr.mxu0 0.0
  %1723 = vmatpush1.msra.mxu0 0.0
  %1724 = vmatprep.subr.mxu0 0.0
  %1725 = vmatpush1.msra.mxu0 0.0
  %1726 = vmatprep.subr.mxu0 0.0
  %1727 = vmatpush1.msra.mxu0 0.0
  %1728 = vmatprep.subr.mxu0 0.0
  %1729 = vmatpush1.msra.mxu0 0.0
  %1730 = vmatprep.mubr.f32.mxu0 0.0
  %1731 = vmatmul.mubr.f32.gmra.mrb[0].mxu0 %v1523
  %v1732 = vpop.f32.mrb[0].mxu0
  %v1733 = vadd.f32 0.0, %v1732
  %v1734 = vpop.f32.mrb[0].mxu0
  %v1735 = vadd.f32 0.0, %v1734
  %1736 = vdwg.mxu0
  %v1737 = vadd.f32 %v1527, %v1662
  %v1738 = vadd.f32 %v1528, %v1664
  %v1739 = vadd.f32 %v1529, %v1733
  %v1740 = vadd.f32 %v1530, %v1735
  %v1741 = vmul.f32 %v1737, 0.5
  %v1742 = vtanh.pop %v1741
  %v1743 = vmul.f32 %v1742, 0.5
  %v1744 = vadd.f32 %v1743, 0.5
  %v1745 = vmul.f32 %v1738, 0.5
  %v1746 = vtanh.pop %v1745
  %v1747 = vmul.f32 %v1746, 0.5
  %v1748 = vadd.f32 %v1747, 0.5
  %v1749 = vtanh.pop %v1739
  %v1750 = vmul.f32 %v1740, 0.5
  %v1751 = vtanh.pop %v1750
  %v1752 = vmul.f32 %v1751, 0.5
  %v1753 = vadd.f32 %v1752, 0.5
  %v1754 = vmul.f32 %v1748, %v1521
  %v1755 = vmul.f32 %v1744, %v1749
  %v1756 = vadd.f32 %v1754, %v1755
  %v1757 = vtanh.pop %v1756
  %v1758 = vmul.f32 %v1753, %v1757
  %s1759 = scalar_lea.vmem [#allocation3], 40
  %1760 = vst [vmem:[%s1759] sm:$0xff] %v1758
  %s1761 = scalar_lea.vmem [#allocation2], 192
  %v1762 = vld [vmem:[%s1761] sm:$0xff]
  %v1763 = vld [vmem:[%s1761 + $0x8] sm:$0xff]
  %v1764 = vld [vmem:[%s1761 + $0x10] sm:$0xff]
  %v1765 = vld [vmem:[%s1761 + $0x18] sm:$0xff]
  %v1766 = vld [vmem:[%s2] sm:$0xff]
  %v1767 = vld [vmem:[%s2 + $0x8] sm:$0xff]
  %v1768 = vld [vmem:[%s2 + $0x10] sm:$0xff]
  %v1769 = vld [vmem:[%s2 + $0x18] sm:$0xff]
  %v1770 = vld [vmem:[%s2 + $0x20] sm:$0xff]
  %v1771 = vld [vmem:[%s2 + $0x28] sm:$0xff]
  %v1772 = vld [vmem:[%s2 + $0x30] sm:$0xff]
  %v1773 = vld [vmem:[%s2 + $0x38] sm:$0xff]
  %v1774 = vld [vmem:[%s2 + $0x40] sm:$0xff]
  %v1775 = vld [vmem:[%s2 + $0x48] sm:$0xff]
  %v1776 = vld [vmem:[%s2 + $0x50] sm:$0xff]
  %v1777 = vld [vmem:[%s2 + $0x58] sm:$0xff]
  %v1778 = vld [vmem:[%s2 + $0x60] sm:$0xff]
  %v1779 = vld [vmem:[%s2 + $0x68] sm:$0xff]
  %v1780 = vld [vmem:[%s2 + $0x70] sm:$0xff]
  %v1781 = vld [vmem:[%s2 + $0x78] sm:$0xff]
  %v1782 = vld [vmem:[%s2 + $0x80] sm:$0xff]
  %v1783 = vld [vmem:[%s2 + $0x88] sm:$0xff]
  %v1784 = vld [vmem:[%s2 + $0x90] sm:$0xff]
  %v1785 = vld [vmem:[%s2 + $0x98] sm:$0xff]
  %v1786 = vld [vmem:[%s2 + $0xa0] sm:$0xff]
  %v1787 = vld [vmem:[%s2 + $0xa8] sm:$0xff]
  %v1788 = vld [vmem:[%s2 + $0xb0] sm:$0xff]
  %v1789 = vld [vmem:[%s2 + $0xb8] sm:$0xff]
  %v1790 = vld [vmem:[%s2 + $0xc0] sm:$0xff]
  %v1791 = vld [vmem:[%s2 + $0xc8] sm:$0xff]
  %v1792 = vld [vmem:[%s2 + $0xd0] sm:$0xff]
  %v1793 = vld [vmem:[%s2 + $0xd8] sm:$0xff]
  %v1794 = vld [vmem:[%s2 + $0xe0] sm:$0xff]
  %v1795 = vld [vmem:[%s2 + $0xe8] sm:$0xff]
  %v1796 = vld [vmem:[%s2 + $0xf0] sm:$0xff]
  %v1797 = vld [vmem:[%s2 + $0xf8] sm:$0xff]
  %v1798 = vld [vmem:[%s2 + $0x100] sm:$0xff]
  %v1799 = vld [vmem:[%s2 + $0x108] sm:$0xff]
  %v1800 = vld [vmem:[%s2 + $0x110] sm:$0xff]
  %v1801 = vld [vmem:[%s2 + $0x118] sm:$0xff]
  %v1802 = vld [vmem:[%s2 + $0x120] sm:$0xff]
  %v1803 = vld [vmem:[%s2 + $0x128] sm:$0xff]
  %v1804 = vld [vmem:[%s2 + $0x130] sm:$0xff]
  %v1805 = vld [vmem:[%s2 + $0x138] sm:$0xff]
  %v1806 = vld [vmem:[%s2 + $0x140] sm:$0xff]
  %v1807 = vld [vmem:[%s2 + $0x148] sm:$0xff]
  %v1808 = vld [vmem:[%s2 + $0x150] sm:$0xff]
  %v1809 = vld [vmem:[%s2 + $0x158] sm:$0xff]
  %v1810 = vld [vmem:[%s2 + $0x160] sm:$0xff]
  %v1811 = vld [vmem:[%s2 + $0x168] sm:$0xff]
  %v1812 = vld [vmem:[%s2 + $0x170] sm:$0xff]
  %v1813 = vld [vmem:[%s2 + $0x178] sm:$0xff]
  %v1814 = vld [vmem:[%s2 + $0x180] sm:$0xff]
  %v1815 = vld [vmem:[%s2 + $0x188] sm:$0xff]
  %v1816 = vld [vmem:[%s2 + $0x190] sm:$0xff]
  %v1817 = vld [vmem:[%s2 + $0x198] sm:$0xff]
  %v1818 = vld [vmem:[%s2 + $0x1a0] sm:$0xff]
  %v1819 = vld [vmem:[%s2 + $0x1a8] sm:$0xff]
  %v1820 = vld [vmem:[%s2 + $0x1b0] sm:$0xff]
  %v1821 = vld [vmem:[%s2 + $0x1b8] sm:$0xff]
  %v1822 = vld [vmem:[%s2 + $0x1c0] sm:$0xff]
  %v1823 = vld [vmem:[%s2 + $0x1c8] sm:$0xff]
  %v1824 = vld [vmem:[%s2 + $0x1d0] sm:$0xff]
  %v1825 = vld [vmem:[%s2 + $0x1d8] sm:$0xff]
  %v1826 = vld [vmem:[%s2 + $0x1e0] sm:$0xff]
  %v1827 = vld [vmem:[%s2 + $0x1e8] sm:$0xff]
  %v1828 = vld [vmem:[%s2 + $0x1f0] sm:$0xff]
  %v1829 = vld [vmem:[%s2 + $0x1f8] sm:$0xff]
  %1830 = vmatprep.subr.mxu0 %v1767
  %1831 = vmatpush1.msra.mxu0 %v1766
  %1832 = vmatprep.subr.mxu0 %v1771
  %1833 = vmatpush1.msra.mxu0 %v1770
  %1834 = vmatprep.subr.mxu0 %v1775
  %1835 = vmatpush1.msra.mxu0 %v1774
  %1836 = vmatprep.subr.mxu0 %v1779
  %1837 = vmatpush1.msra.mxu0 %v1778
  %1838 = vmatprep.subr.mxu0 %v1783
  %1839 = vmatpush1.msra.mxu0 %v1782
  %1840 = vmatprep.subr.mxu0 %v1787
  %1841 = vmatpush1.msra.mxu0 %v1786
  %1842 = vmatprep.subr.mxu0 %v1791
  %1843 = vmatpush1.msra.mxu0 %v1790
  %1844 = vmatprep.subr.mxu0 %v1795
  %1845 = vmatpush1.msra.mxu0 %v1794
  %1846 = vmatprep.subr.mxu0 %v1799
  %1847 = vmatpush1.msra.mxu0 %v1798
  %1848 = vmatprep.subr.mxu0 %v1803
  %1849 = vmatpush1.msra.mxu0 %v1802
  %1850 = vmatprep.subr.mxu0 %v1807
  %1851 = vmatpush1.msra.mxu0 %v1806
  %1852 = vmatprep.subr.mxu0 %v1811
  %1853 = vmatpush1.msra.mxu0 %v1810
  %1854 = vmatprep.subr.mxu0 %v1815
  %1855 = vmatpush1.msra.mxu0 %v1814
  %1856 = vmatprep.subr.mxu0 %v1819
  %1857 = vmatpush1.msra.mxu0 %v1818
  %1858 = vmatprep.subr.mxu0 %v1823
  %1859 = vmatpush1.msra.mxu0 %v1822
  %1860 = vmatprep.subr.mxu0 %v1827
  %1861 = vmatpush1.msra.mxu0 %v1826
  %1862 = vmatprep.subr.mxu0 0.0
  %1863 = vmatpush1.msra.mxu0 0.0
  %1864 = vmatprep.subr.mxu0 0.0
  %1865 = vmatpush1.msra.mxu0 0.0
  %1866 = vmatprep.subr.mxu0 0.0
  %1867 = vmatpush1.msra.mxu0 0.0
  %1868 = vmatprep.subr.mxu0 0.0
  %1869 = vmatpush1.msra.mxu0 0.0
  %1870 = vmatprep.subr.mxu0 0.0
  %1871 = vmatpush1.msra.mxu0 0.0
  %1872 = vmatprep.subr.mxu0 0.0
  %1873 = vmatpush1.msra.mxu0 0.0
  %1874 = vmatprep.subr.mxu0 0.0
  %1875 = vmatpush1.msra.mxu0 0.0
  %1876 = vmatprep.subr.mxu0 0.0
  %1877 = vmatpush1.msra.mxu0 0.0
  %1878 = vmatprep.subr.mxu0 0.0
  %1879 = vmatpush1.msra.mxu0 0.0
  %1880 = vmatprep.subr.mxu0 0.0
  %1881 = vmatpush1.msra.mxu0 0.0
  %1882 = vmatprep.subr.mxu0 0.0
  %1883 = vmatpush1.msra.mxu0 0.0
  %1884 = vmatprep.subr.mxu0 0.0
  %1885 = vmatpush1.msra.mxu0 0.0
  %1886 = vmatprep.subr.mxu0 0.0
  %1887 = vmatpush1.msra.mxu0 0.0
  %1888 = vmatprep.subr.mxu0 0.0
  %1889 = vmatpush1.msra.mxu0 0.0
  %1890 = vmatprep.subr.mxu0 0.0
  %1891 = vmatpush1.msra.mxu0 0.0
  %1892 = vmatprep.subr.mxu0 0.0
  %1893 = vmatpush1.msra.mxu0 0.0
  %1894 = vmatprep.mubr.f32.mxu0 0.0
  %1895 = vmatmul.mubr.f32.gmra.mrb[0].mxu0 %v1758
  %v1896 = vpop.f32.mrb[0].mxu0
  %v1897 = vadd.f32 0.0, %v1896
  %v1898 = vpop.f32.mrb[0].mxu0
  %v1899 = vadd.f32 0.0, %v1898
  %1900 = vdwg.mxu0
  %1901 = vmatprep.subr.mxu0 %v1769
  %1902 = vmatpush1.msra.mxu0 %v1768
  %1903 = vmatprep.subr.mxu0 %v1773
  %1904 = vmatpush1.msra.mxu0 %v1772
  %1905 = vmatprep.subr.mxu0 %v1777
  %1906 = vmatpush1.msra.mxu0 %v1776
  %1907 = vmatprep.subr.mxu0 %v1781
  %1908 = vmatpush1.msra.mxu0 %v1780
  %1909 = vmatprep.subr.mxu0 %v1785
  %1910 = vmatpush1.msra.mxu0 %v1784
  %1911 = vmatprep.subr.mxu0 %v1789
  %1912 = vmatpush1.msra.mxu0 %v1788
  %1913 = vmatprep.subr.mxu0 %v1793
  %1914 = vmatpush1.msra.mxu0 %v1792
  %1915 = vmatprep.subr.mxu0 %v1797
  %1916 = vmatpush1.msra.mxu0 %v1796
  %1917 = vmatprep.subr.mxu0 %v1801
  %1918 = vmatpush1.msra.mxu0 %v1800
  %1919 = vmatprep.subr.mxu0 %v1805
  %1920 = vmatpush1.msra.mxu0 %v1804
  %1921 = vmatprep.subr.mxu0 %v1809
  %1922 = vmatpush1.msra.mxu0 %v1808
  %1923 = vmatprep.subr.mxu0 %v1813
  %1924 = vmatpush1.msra.mxu0 %v1812
  %1925 = vmatprep.subr.mxu0 %v1817
  %1926 = vmatpush1.msra.mxu0 %v1816
  %1927 = vmatprep.subr.mxu0 %v1821
  %1928 = vmatpush1.msra.mxu0 %v1820
  %1929 = vmatprep.subr.mxu0 %v1825
  %1930 = vmatpush1.msra.mxu0 %v1824
  %1931 = vmatprep.subr.mxu0 %v1829
  %1932 = vmatpush1.msra.mxu0 %v1828
  %1933 = vmatprep.subr.mxu0 0.0
  %1934 = vmatpush1.msra.mxu0 0.0
  %1935 = vmatprep.subr.mxu0 0.0
  %1936 = vmatpush1.msra.mxu0 0.0
  %1937 = vmatprep.subr.mxu0 0.0
  %1938 = vmatpush1.msra.mxu0 0.0
  %1939 = vmatprep.subr.mxu0 0.0
  %1940 = vmatpush1.msra.mxu0 0.0
  %1941 = vmatprep.subr.mxu0 0.0
  %1942 = vmatpush1.msra.mxu0 0.0
  %1943 = vmatprep.subr.mxu0 0.0
  %1944 = vmatpush1.msra.mxu0 0.0
  %1945 = vmatprep.subr.mxu0 0.0
  %1946 = vmatpush1.msra.mxu0 0.0
  %1947 = vmatprep.subr.mxu0 0.0
  %1948 = vmatpush1.msra.mxu0 0.0
  %1949 = vmatprep.subr.mxu0 0.0
  %1950 = vmatpush1.msra.mxu0 0.0
  %1951 = vmatprep.subr.mxu0 0.0
  %1952 = vmatpush1.msra.mxu0 0.0
  %1953 = vmatprep.subr.mxu0 0.0
  %1954 = vmatpush1.msra.mxu0 0.0
  %1955 = vmatprep.subr.mxu0 0.0
  %1956 = vmatpush1.msra.mxu0 0.0
  %1957 = vmatprep.subr.mxu0 0.0
  %1958 = vmatpush1.msra.mxu0 0.0
  %1959 = vmatprep.subr.mxu0 0.0
  %1960 = vmatpush1.msra.mxu0 0.0
  %1961 = vmatprep.subr.mxu0 0.0
  %1962 = vmatpush1.msra.mxu0 0.0
  %1963 = vmatprep.subr.mxu0 0.0
  %1964 = vmatpush1.msra.mxu0 0.0
  %1965 = vmatprep.mubr.f32.mxu0 0.0
  %1966 = vmatmul.mubr.f32.gmra.mrb[0].mxu0 %v1758
  %v1967 = vpop.f32.mrb[0].mxu0
  %v1968 = vadd.f32 0.0, %v1967
  %v1969 = vpop.f32.mrb[0].mxu0
  %v1970 = vadd.f32 0.0, %v1969
  %1971 = vdwg.mxu0
  %v1972 = vadd.f32 %v1762, %v1897
  %v1973 = vadd.f32 %v1763, %v1899
  %v1974 = vadd.f32 %v1764, %v1968
  %v1975 = vadd.f32 %v1765, %v1970
  %v1976 = vmul.f32 %v1972, 0.5
  %v1977 = vtanh.pop %v1976
  %v1978 = vmul.f32 %v1977, 0.5
  %v1979 = vadd.f32 %v1978, 0.5
  %v1980 = vmul.f32 %v1973, 0.5
  %v1981 = vtanh.pop %v1980
  %v1982 = vmul.f32 %v1981, 0.5
  %v1983 = vadd.f32 %v1982, 0.5
  %v1984 = vtanh.pop %v1974
  %v1985 = vmul.f32 %v1975, 0.5
  %v1986 = vtanh.pop %v1985
  %v1987 = vmul.f32 %v1986, 0.5
  %v1988 = vadd.f32 %v1987, 0.5
  %v1989 = vmul.f32 %v1983, %v1756
  %v1990 = vmul.f32 %v1979, %v1984
  %v1991 = vadd.f32 %v1989, %v1990
  %v1992 = vtanh.pop %v1991
  %v1993 = vmul.f32 %v1988, %v1992
  %s1994 = scalar_lea.vmem [#allocation3], 48
  %1995 = vst [vmem:[%s1994] sm:$0xff] %v1993
  %s1996 = scalar_lea.vmem [#allocation2], 224
  %v1997 = vld [vmem:[%s1996] sm:$0xff]
  %v1998 = vld [vmem:[%s1996 + $0x8] sm:$0xff]
  %v1999 = vld [vmem:[%s1996 + $0x10] sm:$0xff]
  %v2000 = vld [vmem:[%s1996 + $0x18] sm:$0xff]
  %v2001 = vld [vmem:[%s2] sm:$0xff]
  %v2002 = vld [vmem:[%s2 + $0x8] sm:$0xff]
  %v2003 = vld [vmem:[%s2 + $0x10] sm:$0xff]
  %v2004 = vld [vmem:[%s2 + $0x18] sm:$0xff]
  %v2005 = vld [vmem:[%s2 + $0x20] sm:$0xff]
  %v2006 = vld [vmem:[%s2 + $0x28] sm:$0xff]
  %v2007 = vld [vmem:[%s2 + $0x30] sm:$0xff]
  %v2008 = vld [vmem:[%s2 + $0x38] sm:$0xff]
  %v2009 = vld [vmem:[%s2 + $0x40] sm:$0xff]
  %v2010 = vld [vmem:[%s2 + $0x48] sm:$0xff]
  %v2011 = vld [vmem:[%s2 + $0x50] sm:$0xff]
  %v2012 = vld [vmem:[%s2 + $0x58] sm:$0xff]
  %v2013 = vld [vmem:[%s2 + $0x60] sm:$0xff]
  %v2014 = vld [vmem:[%s2 + $0x68] sm:$0xff]
  %v2015 = vld [vmem:[%s2 + $0x70] sm:$0xff]
  %v2016 = vld [vmem:[%s2 + $0x78] sm:$0xff]
  %v2017 = vld [vmem:[%s2 + $0x80] sm:$0xff]
  %v2018 = vld [vmem:[%s2 + $0x88] sm:$0xff]
  %v2019 = vld [vmem:[%s2 + $0x90] sm:$0xff]
  %v2020 = vld [vmem:[%s2 + $0x98] sm:$0xff]
  %v2021 = vld [vmem:[%s2 + $0xa0] sm:$0xff]
  %v2022 = vld [vmem:[%s2 + $0xa8] sm:$0xff]
  %v2023 = vld [vmem:[%s2 + $0xb0] sm:$0xff]
  %v2024 = vld [vmem:[%s2 + $0xb8] sm:$0xff]
  %v2025 = vld [vmem:[%s2 + $0xc0] sm:$0xff]
  %v2026 = vld [vmem:[%s2 + $0xc8] sm:$0xff]
  %v2027 = vld [vmem:[%s2 + $0xd0] sm:$0xff]
  %v2028 = vld [vmem:[%s2 + $0xd8] sm:$0xff]
  %v2029 = vld [vmem:[%s2 + $0xe0] sm:$0xff]
  %v2030 = vld [vmem:[%s2 + $0xe8] sm:$0xff]
  %v2031 = vld [vmem:[%s2 + $0xf0] sm:$0xff]
  %v2032 = vld [vmem:[%s2 + $0xf8] sm:$0xff]
  %v2033 = vld [vmem:[%s2 + $0x100] sm:$0xff]
  %v2034 = vld [vmem:[%s2 + $0x108] sm:$0xff]
  %v2035 = vld [vmem:[%s2 + $0x110] sm:$0xff]
  %v2036 = vld [vmem:[%s2 + $0x118] sm:$0xff]
  %v2037 = vld [vmem:[%s2 + $0x120] sm:$0xff]
  %v2038 = vld [vmem:[%s2 + $0x128] sm:$0xff]
  %v2039 = vld [vmem:[%s2 + $0x130] sm:$0xff]
  %v2040 = vld [vmem:[%s2 + $0x138] sm:$0xff]
  %v2041 = vld [vmem:[%s2 + $0x140] sm:$0xff]
  %v2042 = vld [vmem:[%s2 + $0x148] sm:$0xff]
  %v2043 = vld [vmem:[%s2 + $0x150] sm:$0xff]
  %v2044 = vld [vmem:[%s2 + $0x158] sm:$0xff]
  %v2045 = vld [vmem:[%s2 + $0x160] sm:$0xff]
  %v2046 = vld [vmem:[%s2 + $0x168] sm:$0xff]
  %v2047 = vld [vmem:[%s2 + $0x170] sm:$0xff]
  %v2048 = vld [vmem:[%s2 + $0x178] sm:$0xff]
  %v2049 = vld [vmem:[%s2 + $0x180] sm:$0xff]
  %v2050 = vld [vmem:[%s2 + $0x188] sm:$0xff]
  %v2051 = vld [vmem:[%s2 + $0x190] sm:$0xff]
  %v2052 = vld [vmem:[%s2 + $0x198] sm:$0xff]
  %v2053 = vld [vmem:[%s2 + $0x1a0] sm:$0xff]
  %v2054 = vld [vmem:[%s2 + $0x1a8] sm:$0xff]
  %v2055 = vld [vmem:[%s2 + $0x1b0] sm:$0xff]
  %v2056 = vld [vmem:[%s2 + $0x1b8] sm:$0xff]
  %v2057 = vld [vmem:[%s2 + $0x1c0] sm:$0xff]
  %v2058 = vld [vmem:[%s2 + $0x1c8] sm:$0xff]
  %v2059 = vld [vmem:[%s2 + $0x1d0] sm:$0xff]
  %v2060 = vld [vmem:[%s2 + $0x1d8] sm:$0xff]
  %v2061 = vld [vmem:[%s2 + $0x1e0] sm:$0xff]
  %v2062 = vld [vmem:[%s2 + $0x1e8] sm:$0xff]
  %v2063 = vld [vmem:[%s2 + $0x1f0] sm:$0xff]
  %v2064 = vld [vmem:[%s2 + $0x1f8] sm:$0xff]
  %2065 = vmatprep.subr.mxu0 %v2002
  %2066 = vmatpush1.msra.mxu0 %v2001
  %2067 = vmatprep.subr.mxu0 %v2006
  %2068 = vmatpush1.msra.mxu0 %v2005
  %2069 = vmatprep.subr.mxu0 %v2010
  %2070 = vmatpush1.msra.mxu0 %v2009
  %2071 = vmatprep.subr.mxu0 %v2014
  %2072 = vmatpush1.msra.mxu0 %v2013
  %2073 = vmatprep.subr.mxu0 %v2018
  %2074 = vmatpush1.msra.mxu0 %v2017
  %2075 = vmatprep.subr.mxu0 %v2022
  %2076 = vmatpush1.msra.mxu0 %v2021
  %2077 = vmatprep.subr.mxu0 %v2026
  %2078 = vmatpush1.msra.mxu0 %v2025
  %2079 = vmatprep.subr.mxu0 %v2030
  %2080 = vmatpush1.msra.mxu0 %v2029
  %2081 = vmatprep.subr.mxu0 %v2034
  %2082 = vmatpush1.msra.mxu0 %v2033
  %2083 = vmatprep.subr.mxu0 %v2038
  %2084 = vmatpush1.msra.mxu0 %v2037
  %2085 = vmatprep.subr.mxu0 %v2042
  %2086 = vmatpush1.msra.mxu0 %v2041
  %2087 = vmatprep.subr.mxu0 %v2046
  %2088 = vmatpush1.msra.mxu0 %v2045
  %2089 = vmatprep.subr.mxu0 %v2050
  %2090 = vmatpush1.msra.mxu0 %v2049
  %2091 = vmatprep.subr.mxu0 %v2054
  %2092 = vmatpush1.msra.mxu0 %v2053
  %2093 = vmatprep.subr.mxu0 %v2058
  %2094 = vmatpush1.msra.mxu0 %v2057
  %2095 = vmatprep.subr.mxu0 %v2062
  %2096 = vmatpush1.msra.mxu0 %v2061
  %2097 = vmatprep.subr.mxu0 0.0
  %2098 = vmatpush1.msra.mxu0 0.0
  %2099 = vmatprep.subr.mxu0 0.0
  %2100 = vmatpush1.msra.mxu0 0.0
  %2101 = vmatprep.subr.mxu0 0.0
  %2102 = vmatpush1.msra.mxu0 0.0
  %2103 = vmatprep.subr.mxu0 0.0
  %2104 = vmatpush1.msra.mxu0 0.0
  %2105 = vmatprep.subr.mxu0 0.0
  %2106 = vmatpush1.msra.mxu0 0.0
  %2107 = vmatprep.subr.mxu0 0.0
  %2108 = vmatpush1.msra.mxu0 0.0
  %2109 = vmatprep.subr.mxu0 0.0
  %2110 = vmatpush1.msra.mxu0 0.0
  %2111 = vmatprep.subr.mxu0 0.0
  %2112 = vmatpush1.msra.mxu0 0.0
  %2113 = vmatprep.subr.mxu0 0.0
  %2114 = vmatpush1.msra.mxu0 0.0
  %2115 = vmatprep.subr.mxu0 0.0
  %2116 = vmatpush1.msra.mxu0 0.0
  %2117 = vmatprep.subr.mxu0 0.0
  %2118 = vmatpush1.msra.mxu0 0.0
  %2119 = vmatprep.subr.mxu0 0.0
  %2120 = vmatpush1.msra.mxu0 0.0
  %2121 = vmatprep.subr.mxu0 0.0
  %2122 = vmatpush1.msra.mxu0 0.0
  %2123 = vmatprep.subr.mxu0 0.0
  %2124 = vmatpush1.msra.mxu0 0.0
  %2125 = vmatprep.subr.mxu0 0.0
  %2126 = vmatpush1.msra.mxu0 0.0
  %2127 = vmatprep.subr.mxu0 0.0
  %2128 = vmatpush1.msra.mxu0 0.0
  %2129 = vmatprep.mubr.f32.mxu0 0.0
  %2130 = vmatmul.mubr.f32.gmra.mrb[0].mxu0 %v1993
  %v2131 = vpop.f32.mrb[0].mxu0
  %v2132 = vadd.f32 0.0, %v2131
  %v2133 = vpop.f32.mrb[0].mxu0
  %v2134 = vadd.f32 0.0, %v2133
  %2135 = vdwg.mxu0
  %2136 = vmatprep.subr.mxu0 %v2004
  %2137 = vmatpush1.msra.mxu0 %v2003
  %2138 = vmatprep.subr.mxu0 %v2008
  %2139 = vmatpush1.msra.mxu0 %v2007
  %2140 = vmatprep.subr.mxu0 %v2012
  %2141 = vmatpush1.msra.mxu0 %v2011
  %2142 = vmatprep.subr.mxu0 %v2016
  %2143 = vmatpush1.msra.mxu0 %v2015
  %2144 = vmatprep.subr.mxu0 %v2020
  %2145 = vmatpush1.msra.mxu0 %v2019
  %2146 = vmatprep.subr.mxu0 %v2024
  %2147 = vmatpush1.msra.mxu0 %v2023
  %2148 = vmatprep.subr.mxu0 %v2028
  %2149 = vmatpush1.msra.mxu0 %v2027
  %2150 = vmatprep.subr.mxu0 %v2032
  %2151 = vmatpush1.msra.mxu0 %v2031
  %2152 = vmatprep.subr.mxu0 %v2036
  %2153 = vmatpush1.msra.mxu0 %v2035
  %2154 = vmatprep.subr.mxu0 %v2040
  %2155 = vmatpush1.msra.mxu0 %v2039
  %2156 = vmatprep.subr.mxu0 %v2044
  %2157 = vmatpush1.msra.mxu0 %v2043
  %2158 = vmatprep.subr.mxu0 %v2048
  %2159 = vmatpush1.msra.mxu0 %v2047
  %2160 = vmatprep.subr.mxu0 %v2052
  %2161 = vmatpush1.msra.mxu0 %v2051
  %2162 = vmatprep.subr.mxu0 %v2056
  %2163 = vmatpush1.msra.mxu0 %v2055
  %2164 = vmatprep.subr.mxu0 %v2060
  %2165 = vmatpush1.msra.mxu0 %v2059
  %2166 = vmatprep.subr.mxu0 %v2064
  %2167 = vmatpush1.msra.mxu0 %v2063
  %2168 = vmatprep.subr.mxu0 0.0
  %2169 = vmatpush1.msra.mxu0 0.0
  %2170 = vmatprep.subr.mxu0 0.0
  %2171 = vmatpush1.msra.mxu0 0.0
  %2172 = vmatprep.subr.mxu0 0.0
  %2173 = vmatpush1.msra.mxu0 0.0
  %2174 = vmatprep.subr.mxu0 0.0
  %2175 = vmatpush1.msra.mxu0 0.0
  %2176 = vmatprep.subr.mxu0 0.0
  %2177 = vmatpush1.msra.mxu0 0.0
  %2178 = vmatprep.subr.mxu0 0.0
  %2179 = vmatpush1.msra.mxu0 0.0
  %2180 = vmatprep.subr.mxu0 0.0
  %2181 = vmatpush1.msra.mxu0 0.0
  %2182 = vmatprep.subr.mxu0 0.0
  %2183 = vmatpush1.msra.mxu0 0.0
  %2184 = vmatprep.subr.mxu0 0.0
  %2185 = vmatpush1.msra.mxu0 0.0
  %2186 = vmatprep.subr.mxu0 0.0
  %2187 = vmatpush1.msra.mxu0 0.0
  %2188 = vmatprep.subr.mxu0 0.0
  %2189 = vmatpush1.msra.mxu0 0.0
  %2190 = vmatprep.subr.mxu0 0.0
  %2191 = vmatpush1.msra.mxu0 0.0
  %2192 = vmatprep.subr.mxu0 0.0
  %2193 = vmatpush1.msra.mxu0 0.0
  %2194 = vmatprep.subr.mxu0 0.0
  %2195 = vmatpush1.msra.mxu0 0.0
  %2196 = vmatprep.subr.mxu0 0.0
  %2197 = vmatpush1.msra.mxu0 0.0
  %2198 = vmatprep.subr.mxu0 0.0
  %2199 = vmatpush1.msra.mxu0 0.0
  %2200 = vmatprep.mubr.f32.mxu0 0.0
  %2201 = vmatmul.mubr.f32.gmra.mrb[0].mxu0 %v1993
  %v2202 = vpop.f32.mrb[0].mxu0
  %v2203 = vadd.f32 0.0, %v2202
  %v2204 = vpop.f32.mrb[0].mxu0
  %v2205 = vadd.f32 0.0, %v2204
  %2206 = vdwg.mxu0
  %v2207 = vadd.f32 %v1997, %v2132
  %v2208 = vadd.f32 %v1998, %v2134
  %v2209 = vadd.f32 %v1999, %v2203
  %v2210 = vadd.f32 %v2000, %v2205
  %v2211 = vmul.f32 %v2207, 0.5
  %v2212 = vtanh.pop %v2211
  %v2213 = vmul.f32 %v2212, 0.5
  %v2214 = vadd.f32 %v2213, 0.5
  %v2215 = vmul.f32 %v2208, 0.5
  %v2216 = vtanh.pop %v2215
  %v2217 = vmul.f32 %v2216, 0.5
  %v2218 = vadd.f32 %v2217, 0.5
  %v2219 = vtanh.pop %v2209
  %v2220 = vmul.f32 %v2210, 0.5
  %v2221 = vtanh.pop %v2220
  %v2222 = vmul.f32 %v2221, 0.5
  %v2223 = vadd.f32 %v2222, 0.5
  %v2224 = vmul.f32 %v2218, %v1991
  %v2225 = vmul.f32 %v2214, %v2219
  %v2226 = vadd.f32 %v2224, %v2225
  %v2227 = vtanh.pop %v2226
  %v2228 = vmul.f32 %v2223, %v2227
  %s2229 = scalar_lea.vmem [#allocation3], 56
  %2230 = vst [vmem:[%s2229] sm:$0xff] %v2228
  %v2231 = vld [vmem:[#allocation3] sm:$0xff]
  %v2232 = vld [vmem:[#allocation3 + $0x8] sm:$0xff]
  %v2233 = vld [vmem:[#allocation3 + $0x10] sm:$0xff]
  %v2234 = vld [vmem:[#allocation3 + $0x18] sm:$0xff]
  %v2235 = vld [vmem:[#allocation3 + $0x20] sm:$0xff]
  %v2236 = vld [vmem:[#allocation3 + $0x28] sm:$0xff]
  %v2237 = vld [vmem:[#allocation3 + $0x30] sm:$0xff]
  %v2238 = vld [vmem:[#allocation3 + $0x38] sm:$0xff]
  %v2239 = vld [vmem:[%s4] sm:$0xff]
  %v2240 = vld [vmem:[%s4 + $0x8] sm:$0xff]
  %v2241 = vld [vmem:[%s4 + $0x10] sm:$0xff]
  %v2242 = vld [vmem:[%s4 + $0x18] sm:$0xff]
  %v2243 = vld [vmem:[%s4 + $0x20] sm:$0xff]
  %v2244 = vld [vmem:[%s4 + $0x28] sm:$0xff]
  %v2245 = vld [vmem:[%s4 + $0x30] sm:$0xff]
  %v2246 = vld [vmem:[%s4 + $0x38] sm:$0xff]
  %v2247 = vld [vmem:[%s4 + $0x40] sm:$0xff]
  %v2248 = vld [vmem:[%s4 + $0x48] sm:$0xff]
  %v2249 = vld [vmem:[%s4 + $0x50] sm:$0xff]
  %v2250 = vld [vmem:[%s4 + $0x58] sm:$0xff]
  %v2251 = vld [vmem:[%s4 + $0x60] sm:$0xff]
  %v2252 = vld [vmem:[%s4 + $0x68] sm:$0xff]
  %v2253 = vld [vmem:[%s4 + $0x70] sm:$0xff]
  %v2254 = vld [vmem:[%s4 + $0x78] sm:$0xff]
  %v2255 = vld [vmem:[%s4 + $0x80] sm:$0xff]
  %v2256 = vld [vmem:[%s4 + $0x88] sm:$0xff]
  %v2257 = vld [vmem:[%s4 + $0x90] sm:$0xff]
  %v2258 = vld [vmem:[%s4 + $0x98] sm:$0xff]
  %v2259 = vld [vmem:[%s4 + $0xa0] sm:$0xff]
  %v2260 = vld [vmem:[%s4 + $0xa8] sm:$0xff]
  %v2261 = vld [vmem:[%s4 + $0xb0] sm:$0xff]
  %v2262 = vld [vmem:[%s4 + $0xb8] sm:$0xff]
  %v2263 = vld [vmem:[%s4 + $0xc0] sm:$0xff]
  %v2264 = vld [vmem:[%s4 + $0xc8] sm:$0xff]
  %v2265 = vld [vmem:[%s4 + $0xd0] sm:$0xff]
  %v2266 = vld [vmem:[%s4 + $0xd8] sm:$0xff]
  %v2267 = vld [vmem:[%s4 + $0xe0] sm:$0xff]
  %v2268 = vld [vmem:[%s4 + $0xe8] sm:$0xff]
  %v2269 = vld [vmem:[%s4 + $0xf0] sm:$0xff]
  %v2270 = vld [vmem:[%s4 + $0xf8] sm:$0xff]
  %v2271 = vld [vmem:[%s4 + $0x100] sm:$0xff]
  %v2272 = vld [vmem:[%s4 + $0x108] sm:$0xff]
  %v2273 = vld [vmem:[%s4 + $0x110] sm:$0xff]
  %v2274 = vld [vmem:[%s4 + $0x118] sm:$0xff]
  %v2275 = vld [vmem:[%s4 + $0x120] sm:$0xff]
  %v2276 = vld [vmem:[%s4 + $0x128] sm:$0xff]
  %v2277 = vld [vmem:[%s4 + $0x130] sm:$0xff]
  %v2278 = vld [vmem:[%s4 + $0x138] sm:$0xff]
  %v2279 = vld [vmem:[%s4 + $0x140] sm:$0xff]
  %v2280 = vld [vmem:[%s4 + $0x148] sm:$0xff]
  %v2281 = vld [vmem:[%s4 + $0x150] sm:$0xff]
  %v2282 = vld [vmem:[%s4 + $0x158] sm:$0xff]
  %v2283 = vld [vmem:[%s4 + $0x160] sm:$0xff]
  %v2284 = vld [vmem:[%s4 + $0x168] sm:$0xff]
  %v2285 = vld [vmem:[%s4 + $0x170] sm:$0xff]
  %v2286 = vld [vmem:[%s4 + $0x178] sm:$0xff]
  %v2287 = vld [vmem:[%s4 + $0x180] sm:$0xff]
  %v2288 = vld [vmem:[%s4 + $0x188] sm:$0xff]
  %v2289 = vld [vmem:[%s4 + $0x190] sm:$0xff]
  %v2290 = vld [vmem:[%s4 + $0x198] sm:$0xff]
  %v2291 = vld [vmem:[%s4 + $0x1a0] sm:$0xff]
  %v2292 = vld [vmem:[%s4 + $0x1a8] sm:$0xff]
  %v2293 = vld [vmem:[%s4 + $0x1b0] sm:$0xff]
  %v2294 = vld [vmem:[%s4 + $0x1b8] sm:$0xff]
  %v2295 = vld [vmem:[%s4 + $0x1c0] sm:$0xff]
  %v2296 = vld [vmem:[%s4 + $0x1c8] sm:$0xff]
  %v2297 = vld [vmem:[%s4 + $0x1d0] sm:$0xff]
  %v2298 = vld [vmem:[%s4 + $0x1d8] sm:$0xff]
  %v2299 = vld [vmem:[%s4 + $0x1e0] sm:$0xff]
  %v2300 = vld [vmem:[%s4 + $0x1e8] sm:$0xff]
  %v2301 = vld [vmem:[%s4 + $0x1f0] sm:$0xff]
  %v2302 = vld [vmem:[%s4 + $0x1f8] sm:$0xff]
  %v2303 = vld [vmem:[%s6] sm:$0xf]
  %v2305 = vlaneseq
  %v2306 = vshrl.u32 %v2305, 7
  %v2307 = vsub.s32 0, %v2306
  %v2308 = vrot.slane %v2303, %v2307
  %v2309 = vlaneseq
  %v2310 = vshrl.u32 %v2309, 7
  %v2311 = vsub.s32 1, %v2310
  %v2312 = vrot.slane %v2303, %v2311
  %v2313 = vlaneseq
  %v2314 = vshrl.u32 %v2313, 7
  %v2315 = vsub.s32 2, %v2314
  %v2316 = vrot.slane %v2303, %v2315
  %v2317 = vlaneseq
  %v2318 = vshrl.u32 %v2317, 7
  %v2319 = vsub.s32 3, %v2318
  %v2320 = vrot.slane %v2303, %v2319
  %2325 = vmatprep.subr.mxu0 %v2240
  %2326 = vmatpush1.msra.mxu0 %v2239
  %2327 = vmatprep.subr.mxu0 %v2244
  %2328 = vmatpush1.msra.mxu0 %v2243
  %2329 = vmatprep.subr.mxu0 %v2248
  %2330 = vmatpush1.msra.mxu0 %v2247
  %2331 = vmatprep.subr.mxu0 %v2252
  %2332 = vmatpush1.msra.mxu0 %v2251
  %2333 = vmatprep.subr.mxu0 %v2256
  %2334 = vmatpush1.msra.mxu0 %v2255
  %2335 = vmatprep.subr.mxu0 %v2260
  %2336 = vmatpush1.msra.mxu0 %v2259
  %2337 = vmatprep.subr.mxu0 %v2264
  %2338 = vmatpush1.msra.mxu0 %v2263
  %2339 = vmatprep.subr.mxu0 %v2268
  %2340 = vmatpush1.msra.mxu0 %v2267
  %2341 = vmatprep.subr.mxu0 %v2272
  %2342 = vmatpush1.msra.mxu0 %v2271
  %2343 = vmatprep.subr.mxu0 %v2276
  %2344 = vmatpush1.msra.mxu0 %v2275
  %2345 = vmatprep.subr.mxu0 %v2280
  %2346 = vmatpush1.msra.mxu0 %v2279
  %2347 = vmatprep.subr.mxu0 %v2284
  %2348 = vmatpush1.msra.mxu0 %v2283
  %2349 = vmatprep.subr.mxu0 %v2288
  %2350 = vmatpush1.msra.mxu0 %v2287
  %2351 = vmatprep.subr.mxu0 %v2292
  %2352 = vmatpush1.msra.mxu0 %v2291
  %2353 = vmatprep.subr.mxu0 %v2296
  %2354 = vmatpush1.msra.mxu0 %v2295
  %2355 = vmatprep.subr.mxu0 %v2300
  %2356 = vmatpush1.msra.mxu0 %v2299
  %2357 = vmatprep.subr.mxu0 0.0
  %2358 = vmatpush1.msra.mxu0 0.0
  %2359 = vmatprep.subr.mxu0 0.0
  %2360 = vmatpush1.msra.mxu0 0.0
  %2361 = vmatprep.subr.mxu0 0.0
  %2362 = vmatpush1.msra.mxu0 0.0
  %2363 = vmatprep.subr.mxu0 0.0
  %2364 = vmatpush1.msra.mxu0 0.0
  %2365 = vmatprep.subr.mxu0 0.0
  %2366 = vmatpush1.msra.mxu0 0.0
  %2367 = vmatprep.subr.mxu0 0.0
  %2368 = vmatpush1.msra.mxu0 0.0
  %2369 = vmatprep.subr.mxu0 0.0
  %2370 = vmatpush1.msra.mxu0 0.0
  %2371 = vmatprep.subr.mxu0 0.0
  %2372 = vmatpush1.msra.mxu0 0.0
  %2373 = vmatprep.subr.mxu0 0.0
  %2374 = vmatpush1.msra.mxu0 0.0
  %2375 = vmatprep.subr.mxu0 0.0
  %2376 = vmatpush1.msra.mxu0 0.0
  %2377 = vmatprep.subr.mxu0 0.0
  %2378 = vmatpush1.msra.mxu0 0.0
  %2379 = vmatprep.subr.mxu0 0.0
  %2380 = vmatpush1.msra.mxu0 0.0
  %2381 = vmatprep.subr.mxu0 0.0
  %2382 = vmatpush1.msra.mxu0 0.0
  %2383 = vmatprep.subr.mxu0 0.0
  %2384 = vmatpush1.msra.mxu0 0.0
  %2385 = vmatprep.subr.mxu0 0.0
  %2386 = vmatpush1.msra.mxu0 0.0
  %2387 = vmatprep.subr.mxu0 0.0
  %2388 = vmatpush1.msra.mxu0 0.0
  %2389 = vmatprep.mubr.f32.mxu0 0.0
  %2390 = vmatmul.mubr.f32.gmra.mrb[0].mxu0 %v2231
  %v2391 = vpop.f32.mrb[0].mxu0
  %v2392 = vadd.f32 %v2308, %v2391
  %v2393 = vpop.f32.mrb[0].mxu0
  %v2394 = vadd.f32 %v2312, %v2393
  %2395 = vmatprep.mubr.f32.mxu0 0.0
  %2396 = vmatmul.mubr.f32.gmra.mrb[0].mxu0 %v2232
  %v2397 = vpop.f32.mrb[0].mxu0
  %v2398 = vadd.f32 %v2308, %v2397
  %v2399 = vpop.f32.mrb[0].mxu0
  %v2400 = vadd.f32 %v2312, %v2399
  %2401 = vmatprep.mubr.f32.mxu0 0.0
  %2402 = vmatmul.mubr.f32.gmra.mrb[0].mxu0 %v2233
  %v2403 = vpop.f32.mrb[0].mxu0
  %v2404 = vadd.f32 %v2308, %v2403
  %v2405 = vpop.f32.mrb[0].mxu0
  %v2406 = vadd.f32 %v2312, %v2405
  %2407 = vmatprep.mubr.f32.mxu0 0.0
  %2408 = vmatmul.mubr.f32.gmra.mrb[0].mxu0 %v2234
  %v2409 = vpop.f32.mrb[0].mxu0
  %v2410 = vadd.f32 %v2308, %v2409
  %v2411 = vpop.f32.mrb[0].mxu0
  %v2412 = vadd.f32 %v2312, %v2411
  %2413 = vmatprep.mubr.f32.mxu0 0.0
  %2414 = vmatmul.mubr.f32.gmra.mrb[0].mxu0 %v2235
  %v2415 = vpop.f32.mrb[0].mxu0
  %v2416 = vadd.f32 %v2308, %v2415
  %v2417 = vpop.f32.mrb[0].mxu0
  %v2418 = vadd.f32 %v2312, %v2417
  %2419 = vmatprep.mubr.f32.mxu0 0.0
  %2420 = vmatmul.mubr.f32.gmra.mrb[0].mxu0 %v2236
  %v2421 = vpop.f32.mrb[0].mxu0
  %v2422 = vadd.f32 %v2308, %v2421
  %v2423 = vpop.f32.mrb[0].mxu0
  %v2424 = vadd.f32 %v2312, %v2423
  %2425 = vmatprep.mubr.f32.mxu0 0.0
  %2426 = vmatmul.mubr.f32.gmra.mrb[0].mxu0 %v2237
  %v2427 = vpop.f32.mrb[0].mxu0
  %v2428 = vadd.f32 %v2308, %v2427
  %v2429 = vpop.f32.mrb[0].mxu0
  %v2430 = vadd.f32 %v2312, %v2429
  %2431 = vmatprep.mubr.f32.mxu0 0.0
  %2432 = vmatmul.mubr.f32.gmra.mrb[0].mxu0 %v2238
  %v2433 = vpop.f32.mrb[0].mxu0
  %v2434 = vadd.f32 %v2308, %v2433
  %v2435 = vpop.f32.mrb[0].mxu0
  %v2436 = vadd.f32 %v2312, %v2435
  %2437 = vdwg.mxu0
  %2438 = vmatprep.subr.mxu0 %v2242
  %2439 = vmatpush1.msra.mxu0 %v2241
  %2440 = vmatprep.subr.mxu0 %v2246
  %2441 = vmatpush1.msra.mxu0 %v2245
  %2442 = vmatprep.subr.mxu0 %v2250
  %2443 = vmatpush1.msra.mxu0 %v2249
  %2444 = vmatprep.subr.mxu0 %v2254
  %2445 = vmatpush1.msra.mxu0 %v2253
  %2446 = vmatprep.subr.mxu0 %v2258
  %2447 = vmatpush1.msra.mxu0 %v2257
  %2448 = vmatprep.subr.mxu0 %v2262
  %2449 = vmatpush1.msra.mxu0 %v2261
  %2450 = vmatprep.subr.mxu0 %v2266
  %2451 = vmatpush1.msra.mxu0 %v2265
  %2452 = vmatprep.subr.mxu0 %v2270
  %2453 = vmatpush1.msra.mxu0 %v2269
  %2454 = vmatprep.subr.mxu0 %v2274
  %2455 = vmatpush1.msra.mxu0 %v2273
  %2456 = vmatprep.subr.mxu0 %v2278
  %2457 = vmatpush1.msra.mxu0 %v2277
  %2458 = vmatprep.subr.mxu0 %v2282
  %2459 = vmatpush1.msra.mxu0 %v2281
  %2460 = vmatprep.subr.mxu0 %v2286
  %2461 = vmatpush1.msra.mxu0 %v2285
  %2462 = vmatprep.subr.mxu0 %v2290
  %2463 = vmatpush1.msra.mxu0 %v2289
  %2464 = vmatprep.subr.mxu0 %v2294
  %2465 = vmatpush1.msra.mxu0 %v2293
  %2466 = vmatprep.subr.mxu0 %v2298
  %2467 = vmatpush1.msra.mxu0 %v2297
  %2468 = vmatprep.subr.mxu0 %v2302
  %2469 = vmatpush1.msra.mxu0 %v2301
  %2470 = vmatprep.subr.mxu0 0.0
  %2471 = vmatpush1.msra.mxu0 0.0
  %2472 = vmatprep.subr.mxu0 0.0
  %2473 = vmatpush1.msra.mxu0 0.0
  %2474 = vmatprep.subr.mxu0 0.0
  %2475 = vmatpush1.msra.mxu0 0.0
  %2476 = vmatprep.subr.mxu0 0.0
  %2477 = vmatpush1.msra.mxu0 0.0
  %2478 = vmatprep.subr.mxu0 0.0
  %2479 = vmatpush1.msra.mxu0 0.0
  %2480 = vmatprep.subr.mxu0 0.0
  %2481 = vmatpush1.msra.mxu0 0.0
  %2482 = vmatprep.subr.mxu0 0.0
  %2483 = vmatpush1.msra.mxu0 0.0
  %2484 = vmatprep.subr.mxu0 0.0
  %2485 = vmatpush1.msra.mxu0 0.0
  %2486 = vmatprep.subr.mxu0 0.0
  %2487 = vmatpush1.msra.mxu0 0.0
  %2488 = vmatprep.subr.mxu0 0.0
  %2489 = vmatpush1.msra.mxu0 0.0
  %2490 = vmatprep.subr.mxu0 0.0
  %2491 = vmatpush1.msra.mxu0 0.0
  %2492 = vmatprep.subr.mxu0 0.0
  %2493 = vmatpush1.msra.mxu0 0.0
  %2494 = vmatprep.subr.mxu0 0.0
  %2495 = vmatpush1.msra.mxu0 0.0
  %2496 = vmatprep.subr.mxu0 0.0
  %2497 = vmatpush1.msra.mxu0 0.0
  %2498 = vmatprep.subr.mxu0 0.0
  %2499 = vmatpush1.msra.mxu0 0.0
  %2500 = vmatprep.subr.mxu0 0.0
  %2501 = vmatpush1.msra.mxu0 0.0
  %2502 = vmatprep.mubr.f32.mxu0 0.0
  %2503 = vmatmul.mubr.f32.gmra.mrb[0].mxu0 %v2231
  %v2504 = vpop.f32.mrb[0].mxu0
  %v2505 = vadd.f32 %v2316, %v2504
  %v2506 = vpop.f32.mrb[0].mxu0
  %v2507 = vadd.f32 %v2320, %v2506
  %2508 = vmatprep.mubr.f32.mxu0 0.0
  %2509 = vmatmul.mubr.f32.gmra.mrb[0].mxu0 %v2232
  %v2510 = vpop.f32.mrb[0].mxu0
  %v2511 = vadd.f32 %v2316, %v2510
  %v2512 = vpop.f32.mrb[0].mxu0
  %v2513 = vadd.f32 %v2320, %v2512
  %2514 = vmatprep.mubr.f32.mxu0 0.0
  %2515 = vmatmul.mubr.f32.gmra.mrb[0].mxu0 %v2233
  %v2516 = vpop.f32.mrb[0].mxu0
  %v2517 = vadd.f32 %v2316, %v2516
  %v2518 = vpop.f32.mrb[0].mxu0
  %v2519 = vadd.f32 %v2320, %v2518
  %2520 = vmatprep.mubr.f32.mxu0 0.0
  %2521 = vmatmul.mubr.f32.gmra.mrb[0].mxu0 %v2234
  %v2522 = vpop.f32.mrb[0].mxu0
  %v2523 = vadd.f32 %v2316, %v2522
  %v2524 = vpop.f32.mrb[0].mxu0
  %v2525 = vadd.f32 %v2320, %v2524
  %2526 = vmatprep.mubr.f32.mxu0 0.0
  %2527 = vmatmul.mubr.f32.gmra.mrb[0].mxu0 %v2235
  %v2528 = vpop.f32.mrb[0].mxu0
  %v2529 = vadd.f32 %v2316, %v2528
  %v2530 = vpop.f32.mrb[0].mxu0
  %v2531 = vadd.f32 %v2320, %v2530
  %2532 = vmatprep.mubr.f32.mxu0 0.0
  %2533 = vmatmul.mubr.f32.gmra.mrb[0].mxu0 %v2236
  %v2534 = vpop.f32.mrb[0].mxu0
  %v2535 = vadd.f32 %v2316, %v2534
  %v2536 = vpop.f32.mrb[0].mxu0
  %v2537 = vadd.f32 %v2320, %v2536
  %2538 = vmatprep.mubr.f32.mxu0 0.0
  %2539 = vmatmul.mubr.f32.gmra.mrb[0].mxu0 %v2237
  %v2540 = vpop.f32.mrb[0].mxu0
  %v2541 = vadd.f32 %v2316, %v2540
  %v2542 = vpop.f32.mrb[0].mxu0
  %v2543 = vadd.f32 %v2320, %v2542
  %2544 = vmatprep.mubr.f32.mxu0 0.0
  %2545 = vmatmul.mubr.f32.gmra.mrb[0].mxu0 %v2238
  %v2546 = vpop.f32.mrb[0].mxu0
  %v2547 = vadd.f32 %v2316, %v2546
  %v2548 = vpop.f32.mrb[0].mxu0
  %v2549 = vadd.f32 %v2320, %v2548
  %2550 = vdwg.mxu0
  %2551 = vst [vmem:[#allocation2] sm:$0xff] %v2392
  %2552 = vst [vmem:[#allocation2 + $0x8] sm:$0xff] %v2394
  %2553 = vst [vmem:[#allocation2 + $0x10] sm:$0xff] %v2505
  %2554 = vst [vmem:[#allocation2 + $0x18] sm:$0xff] %v2507
  %2555 = vst [vmem:[#allocation2 + $0x20] sm:$0xff] %v2398
  %2556 = vst [vmem:[#allocation2 + $0x28] sm:$0xff] %v2400
  %2557 = vst [vmem:[#allocation2 + $0x30] sm:$0xff] %v2511
  %2558 = vst [vmem:[#allocation2 + $0x38] sm:$0xff] %v2513
  %2559 = vst [vmem:[#allocation2 + $0x40] sm:$0xff] %v2404
  %2560 = vst [vmem:[#allocation2 + $0x48] sm:$0xff] %v2406
  %2561 = vst [vmem:[#allocation2 + $0x50] sm:$0xff] %v2517
  %2562 = vst [vmem:[#allocation2 + $0x58] sm:$0xff] %v2519
  %2563 = vst [vmem:[#allocation2 + $0x60] sm:$0xff] %v2410
  %2564 = vst [vmem:[#allocation2 + $0x68] sm:$0xff] %v2412
  %2565 = vst [vmem:[#allocation2 + $0x70] sm:$0xff] %v2523
  %2566 = vst [vmem:[#allocation2 + $0x78] sm:$0xff] %v2525
  %2567 = vst [vmem:[#allocation2 + $0x80] sm:$0xff] %v2416
  %2568 = vst [vmem:[#allocation2 + $0x88] sm:$0xff] %v2418
  %2569 = vst [vmem:[#allocation2 + $0x90] sm:$0xff] %v2529
  %2570 = vst [vmem:[#allocation2 + $0x98] sm:$0xff] %v2531
  %2571 = vst [vmem:[#allocation2 + $0xa0] sm:$0xff] %v2422
  %2572 = vst [vmem:[#allocation2 + $0xa8] sm:$0xff] %v2424
  %2573 = vst [vmem:[#allocation2 + $0xb0] sm:$0xff] %v2535
  %2574 = vst [vmem:[#allocation2 + $0xb8] sm:$0xff] %v2537
  %2575 = vst [vmem:[#allocation2 + $0xc0] sm:$0xff] %v2428
  %2576 = vst [vmem:[#allocation2 + $0xc8] sm:$0xff] %v2430
  %2577 = vst [vmem:[#allocation2 + $0xd0] sm:$0xff] %v2541
  %2578 = vst [vmem:[#allocation2 + $0xd8] sm:$0xff] %v2543
  %2579 = vst [vmem:[#allocation2 + $0xe0] sm:$0xff] %v2434
  %2580 = vst [vmem:[#allocation2 + $0xe8] sm:$0xff] %v2436
  %2581 = vst [vmem:[#allocation2 + $0xf0] sm:$0xff] %v2547
  %2582 = vst [vmem:[#allocation2 + $0xf8] sm:$0xff] %v2549
  %v2583 = vld [vmem:[#allocation2] sm:$0xff]
  %v2584 = vld [vmem:[#allocation2 + $0x8] sm:$0xff]
  %v2585 = vld [vmem:[#allocation2 + $0x10] sm:$0xff]
  %v2586 = vld [vmem:[#allocation2 + $0x18] sm:$0xff]
  %v2587 = vld [vmem:[%s5] sm:$0xff]
  %v2588 = vld [vmem:[%s5 + $0x8] sm:$0xff]
  %v2589 = vld [vmem:[%s5 + $0x10] sm:$0xff]
  %v2590 = vld [vmem:[%s5 + $0x18] sm:$0xff]
  %v2591 = vld [vmem:[%s5 + $0x20] sm:$0xff]
  %v2592 = vld [vmem:[%s5 + $0x28] sm:$0xff]
  %v2593 = vld [vmem:[%s5 + $0x30] sm:$0xff]
  %v2594 = vld [vmem:[%s5 + $0x38] sm:$0xff]
  %v2595 = vld [vmem:[%s5 + $0x40] sm:$0xff]
  %v2596 = vld [vmem:[%s5 + $0x48] sm:$0xff]
  %v2597 = vld [vmem:[%s5 + $0x50] sm:$0xff]
  %v2598 = vld [vmem:[%s5 + $0x58] sm:$0xff]
  %v2599 = vld [vmem:[%s5 + $0x60] sm:$0xff]
  %v2600 = vld [vmem:[%s5 + $0x68] sm:$0xff]
  %v2601 = vld [vmem:[%s5 + $0x70] sm:$0xff]
  %v2602 = vld [vmem:[%s5 + $0x78] sm:$0xff]
  %v2603 = vld [vmem:[%s5 + $0x80] sm:$0xff]
  %v2604 = vld [vmem:[%s5 + $0x88] sm:$0xff]
  %v2605 = vld [vmem:[%s5 + $0x90] sm:$0xff]
  %v2606 = vld [vmem:[%s5 + $0x98] sm:$0xff]
  %v2607 = vld [vmem:[%s5 + $0xa0] sm:$0xff]
  %v2608 = vld [vmem:[%s5 + $0xa8] sm:$0xff]
  %v2609 = vld [vmem:[%s5 + $0xb0] sm:$0xff]
  %v2610 = vld [vmem:[%s5 + $0xb8] sm:$0xff]
  %v2611 = vld [vmem:[%s5 + $0xc0] sm:$0xff]
  %v2612 = vld [vmem:[%s5 + $0xc8] sm:$0xff]
  %v2613 = vld [vmem:[%s5 + $0xd0] sm:$0xff]
  %v2614 = vld [vmem:[%s5 + $0xd8] sm:$0xff]
  %v2615 = vld [vmem:[%s5 + $0xe0] sm:$0xff]
  %v2616 = vld [vmem:[%s5 + $0xe8] sm:$0xff]
  %v2617 = vld [vmem:[%s5 + $0xf0] sm:$0xff]
  %v2618 = vld [vmem:[%s5 + $0xf8] sm:$0xff]
  %v2619 = vld [vmem:[%s5 + $0x100] sm:$0xff]
  %v2620 = vld [vmem:[%s5 + $0x108] sm:$0xff]
  %v2621 = vld [vmem:[%s5 + $0x110] sm:$0xff]
  %v2622 = vld [vmem:[%s5 + $0x118] sm:$0xff]
  %v2623 = vld [vmem:[%s5 + $0x120] sm:$0xff]
  %v2624 = vld [vmem:[%s5 + $0x128] sm:$0xff]
  %v2625 = vld [vmem:[%s5 + $0x130] sm:$0xff]
  %v2626 = vld [vmem:[%s5 + $0x138] sm:$0xff]
  %v2627 = vld [vmem:[%s5 + $0x140] sm:$0xff]
  %v2628 = vld [vmem:[%s5 + $0x148] sm:$0xff]
  %v2629 = vld [vmem:[%s5 + $0x150] sm:$0xff]
  %v2630 = vld [vmem:[%s5 + $0x158] sm:$0xff]
  %v2631 = vld [vmem:[%s5 + $0x160] sm:$0xff]
  %v2632 = vld [vmem:[%s5 + $0x168] sm:$0xff]
  %v2633 = vld [vmem:[%s5 + $0x170] sm:$0xff]
  %v2634 = vld [vmem:[%s5 + $0x178] sm:$0xff]
  %v2635 = vld [vmem:[%s5 + $0x180] sm:$0xff]
  %v2636 = vld [vmem:[%s5 + $0x188] sm:$0xff]
  %v2637 = vld [vmem:[%s5 + $0x190] sm:$0xff]
  %v2638 = vld [vmem:[%s5 + $0x198] sm:$0xff]
  %v2639 = vld [vmem:[%s5 + $0x1a0] sm:$0xff]
  %v2640 = vld [vmem:[%s5 + $0x1a8] sm:$0xff]
  %v2641 = vld [vmem:[%s5 + $0x1b0] sm:$0xff]
  %v2642 = vld [vmem:[%s5 + $0x1b8] sm:$0xff]
  %v2643 = vld [vmem:[%s5 + $0x1c0] sm:$0xff]
  %v2644 = vld [vmem:[%s5 + $0x1c8] sm:$0xff]
  %v2645 = vld [vmem:[%s5 + $0x1d0] sm:$0xff]
  %v2646 = vld [vmem:[%s5 + $0x1d8] sm:$0xff]
  %v2647 = vld [vmem:[%s5 + $0x1e0] sm:$0xff]
  %v2648 = vld [vmem:[%s5 + $0x1e8] sm:$0xff]
  %v2649 = vld [vmem:[%s5 + $0x1f0] sm:$0xff]
  %v2650 = vld [vmem:[%s5 + $0x1f8] sm:$0xff]
  %2651 = vmatprep.subr.mxu0 %v2588
  %2652 = vmatpush1.msra.mxu0 %v2587
  %2653 = vmatprep.subr.mxu0 %v2592
  %2654 = vmatpush1.msra.mxu0 %v2591
  %2655 = vmatprep.subr.mxu0 %v2596
  %2656 = vmatpush1.msra.mxu0 %v2595
  %2657 = vmatprep.subr.mxu0 %v2600
  %2658 = vmatpush1.msra.mxu0 %v2599
  %2659 = vmatprep.subr.mxu0 %v2604
  %2660 = vmatpush1.msra.mxu0 %v2603
  %2661 = vmatprep.subr.mxu0 %v2608
  %2662 = vmatpush1.msra.mxu0 %v2607
  %2663 = vmatprep.subr.mxu0 %v2612
  %2664 = vmatpush1.msra.mxu0 %v2611
  %2665 = vmatprep.subr.mxu0 %v2616
  %2666 = vmatpush1.msra.mxu0 %v2615
  %2667 = vmatprep.subr.mxu0 %v2620
  %2668 = vmatpush1.msra.mxu0 %v2619
  %2669 = vmatprep.subr.mxu0 %v2624
  %2670 = vmatpush1.msra.mxu0 %v2623
  %2671 = vmatprep.subr.mxu0 %v2628
  %2672 = vmatpush1.msra.mxu0 %v2627
  %2673 = vmatprep.subr.mxu0 %v2632
  %2674 = vmatpush1.msra.mxu0 %v2631
  %2675 = vmatprep.subr.mxu0 %v2636
  %2676 = vmatpush1.msra.mxu0 %v2635
  %2677 = vmatprep.subr.mxu0 %v2640
  %2678 = vmatpush1.msra.mxu0 %v2639
  %2679 = vmatprep.subr.mxu0 %v2644
  %2680 = vmatpush1.msra.mxu0 %v2643
  %2681 = vmatprep.subr.mxu0 %v2648
  %2682 = vmatpush1.msra.mxu0 %v2647
  %2683 = vmatprep.subr.mxu0 0.0
  %2684 = vmatpush1.msra.mxu0 0.0
  %2685 = vmatprep.subr.mxu0 0.0
  %2686 = vmatpush1.msra.mxu0 0.0
  %2687 = vmatprep.subr.mxu0 0.0
  %2688 = vmatpush1.msra.mxu0 0.0
  %2689 = vmatprep.subr.mxu0 0.0
  %2690 = vmatpush1.msra.mxu0 0.0
  %2691 = vmatprep.subr.mxu0 0.0
  %2692 = vmatpush1.msra.mxu0 0.0
  %2693 = vmatprep.subr.mxu0 0.0
  %2694 = vmatpush1.msra.mxu0 0.0
  %2695 = vmatprep.subr.mxu0 0.0
  %2696 = vmatpush1.msra.mxu0 0.0
  %2697 = vmatprep.subr.mxu0 0.0
  %2698 = vmatpush1.msra.mxu0 0.0
  %2699 = vmatprep.subr.mxu0 0.0
  %2700 = vmatpush1.msra.mxu0 0.0
  %2701 = vmatprep.subr.mxu0 0.0
  %2702 = vmatpush1.msra.mxu0 0.0
  %2703 = vmatprep.subr.mxu0 0.0
  %2704 = vmatpush1.msra.mxu0 0.0
  %2705 = vmatprep.subr.mxu0 0.0
  %2706 = vmatpush1.msra.mxu0 0.0
  %2707 = vmatprep.subr.mxu0 0.0
  %2708 = vmatpush1.msra.mxu0 0.0
  %2709 = vmatprep.subr.mxu0 0.0
  %2710 = vmatpush1.msra.mxu0 0.0
  %2711 = vmatprep.subr.mxu0 0.0
  %2712 = vmatpush1.msra.mxu0 0.0
  %2713 = vmatprep.subr.mxu0 0.0
  %2714 = vmatpush1.msra.mxu0 0.0
  %2715 = vmatprep.mubr.f32.mxu0 0.0
  %2716 = vmatmul.mubr.f32.gmra.mrb[0].mxu0 0.0
  %v2717 = vpop.f32.mrb[0].mxu0
  %v2718 = vadd.f32 0.0, %v2717
  %v2719 = vpop.f32.mrb[0].mxu0
  %v2720 = vadd.f32 0.0, %v2719
  %2721 = vdwg.mxu0
  %2722 = vmatprep.subr.mxu0 %v2590
  %2723 = vmatpush1.msra.mxu0 %v2589
  %2724 = vmatprep.subr.mxu0 %v2594
  %2725 = vmatpush1.msra.mxu0 %v2593
  %2726 = vmatprep.subr.mxu0 %v2598
  %2727 = vmatpush1.msra.mxu0 %v2597
  %2728 = vmatprep.subr.mxu0 %v2602
  %2729 = vmatpush1.msra.mxu0 %v2601
  %2730 = vmatprep.subr.mxu0 %v2606
  %2731 = vmatpush1.msra.mxu0 %v2605
  %2732 = vmatprep.subr.mxu0 %v2610
  %2733 = vmatpush1.msra.mxu0 %v2609
  %2734 = vmatprep.subr.mxu0 %v2614
  %2735 = vmatpush1.msra.mxu0 %v2613
  %2736 = vmatprep.subr.mxu0 %v2618
  %2737 = vmatpush1.msra.mxu0 %v2617
  %2738 = vmatprep.subr.mxu0 %v2622
  %2739 = vmatpush1.msra.mxu0 %v2621
  %2740 = vmatprep.subr.mxu0 %v2626
  %2741 = vmatpush1.msra.mxu0 %v2625
  %2742 = vmatprep.subr.mxu0 %v2630
  %2743 = vmatpush1.msra.mxu0 %v2629
  %2744 = vmatprep.subr.mxu0 %v2634
  %2745 = vmatpush1.msra.mxu0 %v2633
  %2746 = vmatprep.subr.mxu0 %v2638
  %2747 = vmatpush1.msra.mxu0 %v2637
  %2748 = vmatprep.subr.mxu0 %v2642
  %2749 = vmatpush1.msra.mxu0 %v2641
  %2750 = vmatprep.subr.mxu0 %v2646
  %2751 = vmatpush1.msra.mxu0 %v2645
  %2752 = vmatprep.subr.mxu0 %v2650
  %2753 = vmatpush1.msra.mxu0 %v2649
  %2754 = vmatprep.subr.mxu0 0.0
  %2755 = vmatpush1.msra.mxu0 0.0
  %2756 = vmatprep.subr.mxu0 0.0
  %2757 = vmatpush1.msra.mxu0 0.0
  %2758 = vmatprep.subr.mxu0 0.0
  %2759 = vmatpush1.msra.mxu0 0.0
  %2760 = vmatprep.subr.mxu0 0.0
  %2761 = vmatpush1.msra.mxu0 0.0
  %2762 = vmatprep.subr.mxu0 0.0
  %2763 = vmatpush1.msra.mxu0 0.0
  %2764 = vmatprep.subr.mxu0 0.0
  %2765 = vmatpush1.msra.mxu0 0.0
  %2766 = vmatprep.subr.mxu0 0.0
  %2767 = vmatpush1.msra.mxu0 0.0
  %2768 = vmatprep.subr.mxu0 0.0
  %2769 = vmatpush1.msra.mxu0 0.0
  %2770 = vmatprep.subr.mxu0 0.0
  %2771 = vmatpush1.msra.mxu0 0.0
  %2772 = vmatprep.subr.mxu0 0.0
  %2773 = vmatpush1.msra.mxu0 0.0
  %2774 = vmatprep.subr.mxu0 0.0
  %2775 = vmatpush1.msra.mxu0 0.0
  %2776 = vmatprep.subr.mxu0 0.0
  %2777 = vmatpush1.msra.mxu0 0.0
  %2778 = vmatprep.subr.mxu0 0.0
  %2779 = vmatpush1.msra.mxu0 0.0
  %2780 = vmatprep.subr.mxu0 0.0
  %2781 = vmatpush1.msra.mxu0 0.0
  %2782 = vmatprep.subr.mxu0 0.0
  %2783 = vmatpush1.msra.mxu0 0.0
  %2784 = vmatprep.subr.mxu0 0.0
  %2785 = vmatpush1.msra.mxu0 0.0
  %2786 = vmatprep.mubr.f32.mxu0 0.0
  %2787 = vmatmul.mubr.f32.gmra.mrb[0].mxu0 0.0
  %v2788 = vpop.f32.mrb[0].mxu0
  %v2789 = vadd.f32 0.0, %v2788
  %v2790 = vpop.f32.mrb[0].mxu0
  %v2791 = vadd.f32 0.0, %v2790
  %2792 = vdwg.mxu0
  %v2793 = vadd.f32 %v2583, %v2718
  %v2794 = vadd.f32 %v2584, %v2720
  %v2795 = vadd.f32 %v2585, %v2789
  %v2796 = vadd.f32 %v2586, %v2791
  %v2797 = vmul.f32 %v2793, 0.5
  %v2798 = vtanh.pop %v2797
  %v2799 = vmul.f32 %v2798, 0.5
  %v2800 = vadd.f32 %v2799, 0.5
  %v2801 = vmul.f32 %v2794, 0.5
  %v2802 = vtanh.pop %v2801
  %v2803 = vmul.f32 %v2802, 0.5
  %v2804 = vadd.f32 %v2803, 0.5
  %v2805 = vtanh.pop %v2795
  %v2806 = vmul.f32 %v2796, 0.5
  %v2807 = vtanh.pop %v2806
  %v2808 = vmul.f32 %v2807, 0.5
  %v2809 = vadd.f32 %v2808, 0.5
  %v2810 = vmul.f32 %v2804, 0.0
  %v2811 = vmul.f32 %v2800, %v2805
  %v2812 = vadd.f32 %v2810, %v2811
  %v2813 = vtanh.pop %v2812
  %v2814 = vmul.f32 %v2809, %v2813
  %v2815 = vld [vmem:[%s586] sm:$0xff]
  %v2816 = vld [vmem:[%s586 + $0x8] sm:$0xff]
  %v2817 = vld [vmem:[%s586 + $0x10] sm:$0xff]
  %v2818 = vld [vmem:[%s586 + $0x18] sm:$0xff]
  %2819 = vmatprep.subr.mxu0 %v2588
  %2820 = vmatpush1.msra.mxu0 %v2587
  %2821 = vmatprep.subr.mxu0 %v2592
  %2822 = vmatpush1.msra.mxu0 %v2591
  %2823 = vmatprep.subr.mxu0 %v2596
  %2824 = vmatpush1.msra.mxu0 %v2595
  %2825 = vmatprep.subr.mxu0 %v2600
  %2826 = vmatpush1.msra.mxu0 %v2599
  %2827 = vmatprep.subr.mxu0 %v2604
  %2828 = vmatpush1.msra.mxu0 %v2603
  %2829 = vmatprep.subr.mxu0 %v2608
  %2830 = vmatpush1.msra.mxu0 %v2607
  %2831 = vmatprep.subr.mxu0 %v2612
  %2832 = vmatpush1.msra.mxu0 %v2611
  %2833 = vmatprep.subr.mxu0 %v2616
  %2834 = vmatpush1.msra.mxu0 %v2615
  %2835 = vmatprep.subr.mxu0 %v2620
  %2836 = vmatpush1.msra.mxu0 %v2619
  %2837 = vmatprep.subr.mxu0 %v2624
  %2838 = vmatpush1.msra.mxu0 %v2623
  %2839 = vmatprep.subr.mxu0 %v2628
  %2840 = vmatpush1.msra.mxu0 %v2627
  %2841 = vmatprep.subr.mxu0 %v2632
  %2842 = vmatpush1.msra.mxu0 %v2631
  %2843 = vmatprep.subr.mxu0 %v2636
  %2844 = vmatpush1.msra.mxu0 %v2635
  %2845 = vmatprep.subr.mxu0 %v2640
  %2846 = vmatpush1.msra.mxu0 %v2639
  %2847 = vmatprep.subr.mxu0 %v2644
  %2848 = vmatpush1.msra.mxu0 %v2643
  %2849 = vmatprep.subr.mxu0 %v2648
  %2850 = vmatpush1.msra.mxu0 %v2647
  %2851 = vmatprep.subr.mxu0 0.0
  %2852 = vmatpush1.msra.mxu0 0.0
  %2853 = vmatprep.subr.mxu0 0.0
  %2854 = vmatpush1.msra.mxu0 0.0
  %2855 = vmatprep.subr.mxu0 0.0
  %2856 = vmatpush1.msra.mxu0 0.0
  %2857 = vmatprep.subr.mxu0 0.0
  %2858 = vmatpush1.msra.mxu0 0.0
  %2859 = vmatprep.subr.mxu0 0.0
  %2860 = vmatpush1.msra.mxu0 0.0
  %2861 = vmatprep.subr.mxu0 0.0
  %2862 = vmatpush1.msra.mxu0 0.0
  %2863 = vmatprep.subr.mxu0 0.0
  %2864 = vmatpush1.msra.mxu0 0.0
  %2865 = vmatprep.subr.mxu0 0.0
  %2866 = vmatpush1.msra.mxu0 0.0
  %2867 = vmatprep.subr.mxu0 0.0
  %2868 = vmatpush1.msra.mxu0 0.0
  %2869 = vmatprep.subr.mxu0 0.0
  %2870 = vmatpush1.msra.mxu0 0.0
  %2871 = vmatprep.subr.mxu0 0.0
  %2872 = vmatpush1.msra.mxu0 0.0
  %2873 = vmatprep.subr.mxu0 0.0
  %2874 = vmatpush1.msra.mxu0 0.0
  %2875 = vmatprep.subr.mxu0 0.0
  %2876 = vmatpush1.msra.mxu0 0.0
  %2877 = vmatprep.subr.mxu0 0.0
  %2878 = vmatpush1.msra.mxu0 0.0
  %2879 = vmatprep.subr.mxu0 0.0
  %2880 = vmatpush1.msra.mxu0 0.0
  %2881 = vmatprep.subr.mxu0 0.0
  %2882 = vmatpush1.msra.mxu0 0.0
  %2883 = vmatprep.mubr.f32.mxu0 0.0
  %2884 = vmatmul.mubr.f32.gmra.mrb[0].mxu0 %v2814
  %v2885 = vpop.f32.mrb[0].mxu0
  %v2886 = vadd.f32 0.0, %v2885
  %v2887 = vpop.f32.mrb[0].mxu0
  %v2888 = vadd.f32 0.0, %v2887
  %2889 = vdwg.mxu0
  %2890 = vmatprep.subr.mxu0 %v2590
  %2891 = vmatpush1.msra.mxu0 %v2589
  %2892 = vmatprep.subr.mxu0 %v2594
  %2893 = vmatpush1.msra.mxu0 %v2593
  %2894 = vmatprep.subr.mxu0 %v2598
  %2895 = vmatpush1.msra.mxu0 %v2597
  %2896 = vmatprep.subr.mxu0 %v2602
  %2897 = vmatpush1.msra.mxu0 %v2601
  %2898 = vmatprep.subr.mxu0 %v2606
  %2899 = vmatpush1.msra.mxu0 %v2605
  %2900 = vmatprep.subr.mxu0 %v2610
  %2901 = vmatpush1.msra.mxu0 %v2609
  %2902 = vmatprep.subr.mxu0 %v2614
  %2903 = vmatpush1.msra.mxu0 %v2613
  %2904 = vmatprep.subr.mxu0 %v2618
  %2905 = vmatpush1.msra.mxu0 %v2617
  %2906 = vmatprep.subr.mxu0 %v2622
  %2907 = vmatpush1.msra.mxu0 %v2621
  %2908 = vmatprep.subr.mxu0 %v2626
  %2909 = vmatpush1.msra.mxu0 %v2625
  %2910 = vmatprep.subr.mxu0 %v2630
  %2911 = vmatpush1.msra.mxu0 %v2629
  %2912 = vmatprep.subr.mxu0 %v2634
  %2913 = vmatpush1.msra.mxu0 %v2633
  %2914 = vmatprep.subr.mxu0 %v2638
  %2915 = vmatpush1.msra.mxu0 %v2637
  %2916 = vmatprep.subr.mxu0 %v2642
  %2917 = vmatpush1.msra.mxu0 %v2641
  %2918 = vmatprep.subr.mxu0 %v2646
  %2919 = vmatpush1.msra.mxu0 %v2645
  %2920 = vmatprep.subr.mxu0 %v2650
  %2921 = vmatpush1.msra.mxu0 %v2649
  %2922 = vmatprep.subr.mxu0 0.0
  %2923 = vmatpush1.msra.mxu0 0.0
  %2924 = vmatprep.subr.mxu0 0.0
  %2925 = vmatpush1.msra.mxu0 0.0
  %2926 = vmatprep.subr.mxu0 0.0
  %2927 = vmatpush1.msra.mxu0 0.0
  %2928 = vmatprep.subr.mxu0 0.0
  %2929 = vmatpush1.msra.mxu0 0.0
  %2930 = vmatprep.subr.mxu0 0.0
  %2931 = vmatpush1.msra.mxu0 0.0
  %2932 = vmatprep.subr.mxu0 0.0
  %2933 = vmatpush1.msra.mxu0 0.0
  %2934 = vmatprep.subr.mxu0 0.0
  %2935 = vmatpush1.msra.mxu0 0.0
  %2936 = vmatprep.subr.mxu0 0.0
  %2937 = vmatpush1.msra.mxu0 0.0
  %2938 = vmatprep.subr.mxu0 0.0
  %2939 = vmatpush1.msra.mxu0 0.0
  %2940 = vmatprep.subr.mxu0 0.0
  %2941 = vmatpush1.msra.mxu0 0.0
  %2942 = vmatprep.subr.mxu0 0.0
  %2943 = vmatpush1.msra.mxu0 0.0
  %2944 = vmatprep.subr.mxu0 0.0
  %2945 = vmatpush1.msra.mxu0 0.0
  %2946 = vmatprep.subr.mxu0 0.0
  %2947 = vmatpush1.msra.mxu0 0.0
  %2948 = vmatprep.subr.mxu0 0.0
  %2949 = vmatpush1.msra.mxu0 0.0
  %2950 = vmatprep.subr.mxu0 0.0
  %2951 = vmatpush1.msra.mxu0 0.0
  %2952 = vmatprep.subr.mxu0 0.0
  %2953 = vmatpush1.msra.mxu0 0.0
  %2954 = vmatprep.mubr.f32.mxu0 0.0
  %2955 = vmatmul.mubr.f32.gmra.mrb[0].mxu0 %v2814
  %v2956 = vpop.f32.mrb[0].mxu0
  %v2957 = vadd.f32 0.0, %v2956
  %v2958 = vpop.f32.mrb[0].mxu0
  %v2959 = vadd.f32 0.0, %v2958
  %2960 = vdwg.mxu0
  %v2961 = vadd.f32 %v2815, %v2886
  %v2962 = vadd.f32 %v2816, %v2888
  %v2963 = vadd.f32 %v2817, %v2957
  %v2964 = vadd.f32 %v2818, %v2959
  %v2965 = vmul.f32 %v2961, 0.5
  %v2966 = vtanh.pop %v2965
  %v2967 = vmul.f32 %v2966, 0.5
  %v2968 = vadd.f32 %v2967, 0.5
  %v2969 = vmul.f32 %v2962, 0.5
  %v2970 = vtanh.pop %v2969
  %v2971 = vmul.f32 %v2970, 0.5
  %v2972 = vadd.f32 %v2971, 0.5
  %v2973 = vtanh.pop %v2963
  %v2974 = vmul.f32 %v2964, 0.5
  %v2975 = vtanh.pop %v2974
  %v2976 = vmul.f32 %v2975, 0.5
  %v2977 = vadd.f32 %v2976, 0.5
  %v2978 = vmul.f32 %v2972, %v2812
  %v2979 = vmul.f32 %v2968, %v2973
  %v2980 = vadd.f32 %v2978, %v2979
  %v2981 = vtanh.pop %v2980
  %v2982 = vmul.f32 %v2977, %v2981
  %v2983 = vld [vmem:[%s821] sm:$0xff]
  %v2984 = vld [vmem:[%s821 + $0x8] sm:$0xff]
  %v2985 = vld [vmem:[%s821 + $0x10] sm:$0xff]
  %v2986 = vld [vmem:[%s821 + $0x18] sm:$0xff]
  %2987 = vmatprep.subr.mxu0 %v2588
  %2988 = vmatpush1.msra.mxu0 %v2587
  %2989 = vmatprep.subr.mxu0 %v2592
  %2990 = vmatpush1.msra.mxu0 %v2591
  %2991 = vmatprep.subr.mxu0 %v2596
  %2992 = vmatpush1.msra.mxu0 %v2595
  %2993 = vmatprep.subr.mxu0 %v2600
  %2994 = vmatpush1.msra.mxu0 %v2599
  %2995 = vmatprep.subr.mxu0 %v2604
  %2996 = vmatpush1.msra.mxu0 %v2603
  %2997 = vmatprep.subr.mxu0 %v2608
  %2998 = vmatpush1.msra.mxu0 %v2607
  %2999 = vmatprep.subr.mxu0 %v2612
  %3000 = vmatpush1.msra.mxu0 %v2611
  %3001 = vmatprep.subr.mxu0 %v2616
  %3002 = vmatpush1.msra.mxu0 %v2615
  %3003 = vmatprep.subr.mxu0 %v2620
  %3004 = vmatpush1.msra.mxu0 %v2619
  %3005 = vmatprep.subr.mxu0 %v2624
  %3006 = vmatpush1.msra.mxu0 %v2623
  %3007 = vmatprep.subr.mxu0 %v2628
  %3008 = vmatpush1.msra.mxu0 %v2627
  %3009 = vmatprep.subr.mxu0 %v2632
  %3010 = vmatpush1.msra.mxu0 %v2631
  %3011 = vmatprep.subr.mxu0 %v2636
  %3012 = vmatpush1.msra.mxu0 %v2635
  %3013 = vmatprep.subr.mxu0 %v2640
  %3014 = vmatpush1.msra.mxu0 %v2639
  %3015 = vmatprep.subr.mxu0 %v2644
  %3016 = vmatpush1.msra.mxu0 %v2643
  %3017 = vmatprep.subr.mxu0 %v2648
  %3018 = vmatpush1.msra.mxu0 %v2647
  %3019 = vmatprep.subr.mxu0 0.0
  %3020 = vmatpush1.msra.mxu0 0.0
  %3021 = vmatprep.subr.mxu0 0.0
  %3022 = vmatpush1.msra.mxu0 0.0
  %3023 = vmatprep.subr.mxu0 0.0
  %3024 = vmatpush1.msra.mxu0 0.0
  %3025 = vmatprep.subr.mxu0 0.0
  %3026 = vmatpush1.msra.mxu0 0.0
  %3027 = vmatprep.subr.mxu0 0.0
  %3028 = vmatpush1.msra.mxu0 0.0
  %3029 = vmatprep.subr.mxu0 0.0
  %3030 = vmatpush1.msra.mxu0 0.0
  %3031 = vmatprep.subr.mxu0 0.0
  %3032 = vmatpush1.msra.mxu0 0.0
  %3033 = vmatprep.subr.mxu0 0.0
  %3034 = vmatpush1.msra.mxu0 0.0
  %3035 = vmatprep.subr.mxu0 0.0
  %3036 = vmatpush1.msra.mxu0 0.0
  %3037 = vmatprep.subr.mxu0 0.0
  %3038 = vmatpush1.msra.mxu0 0.0
  %3039 = vmatprep.subr.mxu0 0.0
  %3040 = vmatpush1.msra.mxu0 0.0
  %3041 = vmatprep.subr.mxu0 0.0
  %3042 = vmatpush1.msra.mxu0 0.0
  %3043 = vmatprep.subr.mxu0 0.0
  %3044 = vmatpush1.msra.mxu0 0.0
  %3045 = vmatprep.subr.mxu0 0.0
  %3046 = vmatpush1.msra.mxu0 0.0
  %3047 = vmatprep.subr.mxu0 0.0
  %3048 = vmatpush1.msra.mxu0 0.0
  %3049 = vmatprep.subr.mxu0 0.0
  %3050 = vmatpush1.msra.mxu0 0.0
  %3051 = vmatprep.mubr.f32.mxu0 0.0
  %3052 = vmatmul.mubr.f32.gmra.mrb[0].mxu0 %v2982
  %v3053 = vpop.f32.mrb[0].mxu0
  %v3054 = vadd.f32 0.0, %v3053
  %v3055 = vpop.f32.mrb[0].mxu0
  %v3056 = vadd.f32 0.0, %v3055
  %3057 = vdwg.mxu0
  %3058 = vmatprep.subr.mxu0 %v2590
  %3059 = vmatpush1.msra.mxu0 %v2589
  %3060 = vmatprep.subr.mxu0 %v2594
  %3061 = vmatpush1.msra.mxu0 %v2593
  %3062 = vmatprep.subr.mxu0 %v2598
  %3063 = vmatpush1.msra.mxu0 %v2597
  %3064 = vmatprep.subr.mxu0 %v2602
  %3065 = vmatpush1.msra.mxu0 %v2601
  %3066 = vmatprep.subr.mxu0 %v2606
  %3067 = vmatpush1.msra.mxu0 %v2605
  %3068 = vmatprep.subr.mxu0 %v2610
  %3069 = vmatpush1.msra.mxu0 %v2609
  %3070 = vmatprep.subr.mxu0 %v2614
  %3071 = vmatpush1.msra.mxu0 %v2613
  %3072 = vmatprep.subr.mxu0 %v2618
  %3073 = vmatpush1.msra.mxu0 %v2617
  %3074 = vmatprep.subr.mxu0 %v2622
  %3075 = vmatpush1.msra.mxu0 %v2621
  %3076 = vmatprep.subr.mxu0 %v2626
  %3077 = vmatpush1.msra.mxu0 %v2625
  %3078 = vmatprep.subr.mxu0 %v2630
  %3079 = vmatpush1.msra.mxu0 %v2629
  %3080 = vmatprep.subr.mxu0 %v2634
  %3081 = vmatpush1.msra.mxu0 %v2633
  %3082 = vmatprep.subr.mxu0 %v2638
  %3083 = vmatpush1.msra.mxu0 %v2637
  %3084 = vmatprep.subr.mxu0 %v2642
  %3085 = vmatpush1.msra.mxu0 %v2641
  %3086 = vmatprep.subr.mxu0 %v2646
  %3087 = vmatpush1.msra.mxu0 %v2645
  %3088 = vmatprep.subr.mxu0 %v2650
  %3089 = vmatpush1.msra.mxu0 %v2649
  %3090 = vmatprep.subr.mxu0 0.0
  %3091 = vmatpush1.msra.mxu0 0.0
  %3092 = vmatprep.subr.mxu0 0.0
  %3093 = vmatpush1.msra.mxu0 0.0
  %3094 = vmatprep.subr.mxu0 0.0
  %3095 = vmatpush1.msra.mxu0 0.0
  %3096 = vmatprep.subr.mxu0 0.0
  %3097 = vmatpush1.msra.mxu0 0.0
  %3098 = vmatprep.subr.mxu0 0.0
  %3099 = vmatpush1.msra.mxu0 0.0
  %3100 = vmatprep.subr.mxu0 0.0
  %3101 = vmatpush1.msra.mxu0 0.0
  %3102 = vmatprep.subr.mxu0 0.0
  %3103 = vmatpush1.msra.mxu0 0.0
  %3104 = vmatprep.subr.mxu0 0.0
  %3105 = vmatpush1.msra.mxu0 0.0
  %3106 = vmatprep.subr.mxu0 0.0
  %3107 = vmatpush1.msra.mxu0 0.0
  %3108 = vmatprep.subr.mxu0 0.0
  %3109 = vmatpush1.msra.mxu0 0.0
  %3110 = vmatprep.subr.mxu0 0.0
  %3111 = vmatpush1.msra.mxu0 0.0
  %3112 = vmatprep.subr.mxu0 0.0
  %3113 = vmatpush1.msra.mxu0 0.0
  %3114 = vmatprep.subr.mxu0 0.0
  %3115 = vmatpush1.msra.mxu0 0.0
  %3116 = vmatprep.subr.mxu0 0.0
  %3117 = vmatpush1.msra.mxu0 0.0
  %3118 = vmatprep.subr.mxu0 0.0
  %3119 = vmatpush1.msra.mxu0 0.0
  %3120 = vmatprep.subr.mxu0 0.0
  %3121 = vmatpush1.msra.mxu0 0.0
  %3122 = vmatprep.mubr.f32.mxu0 0.0
  %3123 = vmatmul.mubr.f32.gmra.mrb[0].mxu0 %v2982
  %v3124 = vpop.f32.mrb[0].mxu0
  %v3125 = vadd.f32 0.0, %v3124
  %v3126 = vpop.f32.mrb[0].mxu0
  %v3127 = vadd.f32 0.0, %v3126
  %3128 = vdwg.mxu0
  %v3129 = vadd.f32 %v2983, %v3054
  %v3130 = vadd.f32 %v2984, %v3056
  %v3131 = vadd.f32 %v2985, %v3125
  %v3132 = vadd.f32 %v2986, %v3127
  %v3133 = vmul.f32 %v3129, 0.5
  %v3134 = vtanh.pop %v3133
  %v3135 = vmul.f32 %v3134, 0.5
  %v3136 = vadd.f32 %v3135, 0.5
  %v3137 = vmul.f32 %v3130, 0.5
  %v3138 = vtanh.pop %v3137
  %v3139 = vmul.f32 %v3138, 0.5
  %v3140 = vadd.f32 %v3139, 0.5
  %v3141 = vtanh.pop %v3131
  %v3142 = vmul.f32 %v3132, 0.5
  %v3143 = vtanh.pop %v3142
  %v3144 = vmul.f32 %v3143, 0.5
  %v3145 = vadd.f32 %v3144, 0.5
  %v3146 = vmul.f32 %v3140, %v2980
  %v3147 = vmul.f32 %v3136, %v3141
  %v3148 = vadd.f32 %v3146, %v3147
  %v3149 = vtanh.pop %v3148
  %v3150 = vmul.f32 %v3145, %v3149
  %v3151 = vld [vmem:[%s1056] sm:$0xff]
  %v3152 = vld [vmem:[%s1056 + $0x8] sm:$0xff]
  %v3153 = vld [vmem:[%s1056 + $0x10] sm:$0xff]
  %v3154 = vld [vmem:[%s1056 + $0x18] sm:$0xff]
  %3155 = vmatprep.subr.mxu0 %v2588
  %3156 = vmatpush1.msra.mxu0 %v2587
  %3157 = vmatprep.subr.mxu0 %v2592
  %3158 = vmatpush1.msra.mxu0 %v2591
  %3159 = vmatprep.subr.mxu0 %v2596
  %3160 = vmatpush1.msra.mxu0 %v2595
  %3161 = vmatprep.subr.mxu0 %v2600
  %3162 = vmatpush1.msra.mxu0 %v2599
  %3163 = vmatprep.subr.mxu0 %v2604
  %3164 = vmatpush1.msra.mxu0 %v2603
  %3165 = vmatprep.subr.mxu0 %v2608
  %3166 = vmatpush1.msra.mxu0 %v2607
  %3167 = vmatprep.subr.mxu0 %v2612
  %3168 = vmatpush1.msra.mxu0 %v2611
  %3169 = vmatprep.subr.mxu0 %v2616
  %3170 = vmatpush1.msra.mxu0 %v2615
  %3171 = vmatprep.subr.mxu0 %v2620
  %3172 = vmatpush1.msra.mxu0 %v2619
  %3173 = vmatprep.subr.mxu0 %v2624
  %3174 = vmatpush1.msra.mxu0 %v2623
  %3175 = vmatprep.subr.mxu0 %v2628
  %3176 = vmatpush1.msra.mxu0 %v2627
  %3177 = vmatprep.subr.mxu0 %v2632
  %3178 = vmatpush1.msra.mxu0 %v2631
  %3179 = vmatprep.subr.mxu0 %v2636
  %3180 = vmatpush1.msra.mxu0 %v2635
  %3181 = vmatprep.subr.mxu0 %v2640
  %3182 = vmatpush1.msra.mxu0 %v2639
  %3183 = vmatprep.subr.mxu0 %v2644
  %3184 = vmatpush1.msra.mxu0 %v2643
  %3185 = vmatprep.subr.mxu0 %v2648
  %3186 = vmatpush1.msra.mxu0 %v2647
  %3187 = vmatprep.subr.mxu0 0.0
  %3188 = vmatpush1.msra.mxu0 0.0
  %3189 = vmatprep.subr.mxu0 0.0
  %3190 = vmatpush1.msra.mxu0 0.0
  %3191 = vmatprep.subr.mxu0 0.0
  %3192 = vmatpush1.msra.mxu0 0.0
  %3193 = vmatprep.subr.mxu0 0.0
  %3194 = vmatpush1.msra.mxu0 0.0
  %3195 = vmatprep.subr.mxu0 0.0
  %3196 = vmatpush1.msra.mxu0 0.0
  %3197 = vmatprep.subr.mxu0 0.0
  %3198 = vmatpush1.msra.mxu0 0.0
  %3199 = vmatprep.subr.mxu0 0.0
  %3200 = vmatpush1.msra.mxu0 0.0
  %3201 = vmatprep.subr.mxu0 0.0
  %3202 = vmatpush1.msra.mxu0 0.0
  %3203 = vmatprep.subr.mxu0 0.0
  %3204 = vmatpush1.msra.mxu0 0.0
  %3205 = vmatprep.subr.mxu0 0.0
  %3206 = vmatpush1.msra.mxu0 0.0
  %3207 = vmatprep.subr.mxu0 0.0
  %3208 = vmatpush1.msra.mxu0 0.0
  %3209 = vmatprep.subr.mxu0 0.0
  %3210 = vmatpush1.msra.mxu0 0.0
  %3211 = vmatprep.subr.mxu0 0.0
  %3212 = vmatpush1.msra.mxu0 0.0
  %3213 = vmatprep.subr.mxu0 0.0
  %3214 = vmatpush1.msra.mxu0 0.0
  %3215 = vmatprep.subr.mxu0 0.0
  %3216 = vmatpush1.msra.mxu0 0.0
  %3217 = vmatprep.subr.mxu0 0.0
  %3218 = vmatpush1.msra.mxu0 0.0
  %3219 = vmatprep.mubr.f32.mxu0 0.0
  %3220 = vmatmul.mubr.f32.gmra.mrb[0].mxu0 %v3150
  %v3221 = vpop.f32.mrb[0].mxu0
  %v3222 = vadd.f32 0.0, %v3221
  %v3223 = vpop.f32.mrb[0].mxu0
  %v3224 = vadd.f32 0.0, %v3223
  %3225 = vdwg.mxu0
  %3226 = vmatprep.subr.mxu0 %v2590
  %3227 = vmatpush1.msra.mxu0 %v2589
  %3228 = vmatprep.subr.mxu0 %v2594
  %3229 = vmatpush1.msra.mxu0 %v2593
  %3230 = vmatprep.subr.mxu0 %v2598
  %3231 = vmatpush1.msra.mxu0 %v2597
  %3232 = vmatprep.subr.mxu0 %v2602
  %3233 = vmatpush1.msra.mxu0 %v2601
  %3234 = vmatprep.subr.mxu0 %v2606
  %3235 = vmatpush1.msra.mxu0 %v2605
  %3236 = vmatprep.subr.mxu0 %v2610
  %3237 = vmatpush1.msra.mxu0 %v2609
  %3238 = vmatprep.subr.mxu0 %v2614
  %3239 = vmatpush1.msra.mxu0 %v2613
  %3240 = vmatprep.subr.mxu0 %v2618
  %3241 = vmatpush1.msra.mxu0 %v2617
  %3242 = vmatprep.subr.mxu0 %v2622
  %3243 = vmatpush1.msra.mxu0 %v2621
  %3244 = vmatprep.subr.mxu0 %v2626
  %3245 = vmatpush1.msra.mxu0 %v2625
  %3246 = vmatprep.subr.mxu0 %v2630
  %3247 = vmatpush1.msra.mxu0 %v2629
  %3248 = vmatprep.subr.mxu0 %v2634
  %3249 = vmatpush1.msra.mxu0 %v2633
  %3250 = vmatprep.subr.mxu0 %v2638
  %3251 = vmatpush1.msra.mxu0 %v2637
  %3252 = vmatprep.subr.mxu0 %v2642
  %3253 = vmatpush1.msra.mxu0 %v2641
  %3254 = vmatprep.subr.mxu0 %v2646
  %3255 = vmatpush1.msra.mxu0 %v2645
  %3256 = vmatprep.subr.mxu0 %v2650
  %3257 = vmatpush1.msra.mxu0 %v2649
  %3258 = vmatprep.subr.mxu0 0.0
  %3259 = vmatpush1.msra.mxu0 0.0
  %3260 = vmatprep.subr.mxu0 0.0
  %3261 = vmatpush1.msra.mxu0 0.0
  %3262 = vmatprep.subr.mxu0 0.0
  %3263 = vmatpush1.msra.mxu0 0.0
  %3264 = vmatprep.subr.mxu0 0.0
  %3265 = vmatpush1.msra.mxu0 0.0
  %3266 = vmatprep.subr.mxu0 0.0
  %3267 = vmatpush1.msra.mxu0 0.0
  %3268 = vmatprep.subr.mxu0 0.0
  %3269 = vmatpush1.msra.mxu0 0.0
  %3270 = vmatprep.subr.mxu0 0.0
  %3271 = vmatpush1.msra.mxu0 0.0
  %3272 = vmatprep.subr.mxu0 0.0
  %3273 = vmatpush1.msra.mxu0 0.0
  %3274 = vmatprep.subr.mxu0 0.0
  %3275 = vmatpush1.msra.mxu0 0.0
  %3276 = vmatprep.subr.mxu0 0.0
  %3277 = vmatpush1.msra.mxu0 0.0
  %3278 = vmatprep.subr.mxu0 0.0
  %3279 = vmatpush1.msra.mxu0 0.0
  %3280 = vmatprep.subr.mxu0 0.0
  %3281 = vmatpush1.msra.mxu0 0.0
  %3282 = vmatprep.subr.mxu0 0.0
  %3283 = vmatpush1.msra.mxu0 0.0
  %3284 = vmatprep.subr.mxu0 0.0
  %3285 = vmatpush1.msra.mxu0 0.0
  %3286 = vmatprep.subr.mxu0 0.0
  %3287 = vmatpush1.msra.mxu0 0.0
  %3288 = vmatprep.subr.mxu0 0.0
  %3289 = vmatpush1.msra.mxu0 0.0
  %3290 = vmatprep.mubr.f32.mxu0 0.0
  %3291 = vmatmul.mubr.f32.gmra.mrb[0].mxu0 %v3150
  %v3292 = vpop.f32.mrb[0].mxu0
  %v3293 = vadd.f32 0.0, %v3292
  %v3294 = vpop.f32.mrb[0].mxu0
  %v3295 = vadd.f32 0.0, %v3294
  %3296 = vdwg.mxu0
  %v3297 = vadd.f32 %v3151, %v3222
  %v3298 = vadd.f32 %v3152, %v3224
  %v3299 = vadd.f32 %v3153, %v3293
  %v3300 = vadd.f32 %v3154, %v3295
  %v3301 = vmul.f32 %v3297, 0.5
  %v3302 = vtanh.pop %v3301
  %v3303 = vmul.f32 %v3302, 0.5
  %v3304 = vadd.f32 %v3303, 0.5
  %v3305 = vmul.f32 %v3298, 0.5
  %v3306 = vtanh.pop %v3305
  %v3307 = vmul.f32 %v3306, 0.5
  %v3308 = vadd.f32 %v3307, 0.5
  %v3309 = vtanh.pop %v3299
  %v3310 = vmul.f32 %v3300, 0.5
  %v3311 = vtanh.pop %v3310
  %v3312 = vmul.f32 %v3311, 0.5
  %v3313 = vadd.f32 %v3312, 0.5
  %v3314 = vmul.f32 %v3308, %v3148
  %v3315 = vmul.f32 %v3304, %v3309
  %v3316 = vadd.f32 %v3314, %v3315
  %v3317 = vtanh.pop %v3316
  %v3318 = vmul.f32 %v3313, %v3317
  %v3319 = vld [vmem:[%s1291] sm:$0xff]
  %v3320 = vld [vmem:[%s1291 + $0x8] sm:$0xff]
  %v3321 = vld [vmem:[%s1291 + $0x10] sm:$0xff]
  %v3322 = vld [vmem:[%s1291 + $0x18] sm:$0xff]
  %3323 = vmatprep.subr.mxu0 %v2588
  %3324 = vmatpush1.msra.mxu0 %v2587
  %3325 = vmatprep.subr.mxu0 %v2592
  %3326 = vmatpush1.msra.mxu0 %v2591
  %3327 = vmatprep.subr.mxu0 %v2596
  %3328 = vmatpush1.msra.mxu0 %v2595
  %3329 = vmatprep.subr.mxu0 %v2600
  %3330 = vmatpush1.msra.mxu0 %v2599
  %3331 = vmatprep.subr.mxu0 %v2604
  %3332 = vmatpush1.msra.mxu0 %v2603
  %3333 = vmatprep.subr.mxu0 %v2608
  %3334 = vmatpush1.msra.mxu0 %v2607
  %3335 = vmatprep.subr.mxu0 %v2612
  %3336 = vmatpush1.msra.mxu0 %v2611
  %3337 = vmatprep.subr.mxu0 %v2616
  %3338 = vmatpush1.msra.mxu0 %v2615
  %3339 = vmatprep.subr.mxu0 %v2620
  %3340 = vmatpush1.msra.mxu0 %v2619
  %3341 = vmatprep.subr.mxu0 %v2624
  %3342 = vmatpush1.msra.mxu0 %v2623
  %3343 = vmatprep.subr.mxu0 %v2628
  %3344 = vmatpush1.msra.mxu0 %v2627
  %3345 = vmatprep.subr.mxu0 %v2632
  %3346 = vmatpush1.msra.mxu0 %v2631
  %3347 = vmatprep.subr.mxu0 %v2636
  %3348 = vmatpush1.msra.mxu0 %v2635
  %3349 = vmatprep.subr.mxu0 %v2640
  %3350 = vmatpush1.msra.mxu0 %v2639
  %3351 = vmatprep.subr.mxu0 %v2644
  %3352 = vmatpush1.msra.mxu0 %v2643
  %3353 = vmatprep.subr.mxu0 %v2648
  %3354 = vmatpush1.msra.mxu0 %v2647
  %3355 = vmatprep.subr.mxu0 0.0
  %3356 = vmatpush1.msra.mxu0 0.0
  %3357 = vmatprep.subr.mxu0 0.0
  %3358 = vmatpush1.msra.mxu0 0.0
  %3359 = vmatprep.subr.mxu0 0.0
  %3360 = vmatpush1.msra.mxu0 0.0
  %3361 = vmatprep.subr.mxu0 0.0
  %3362 = vmatpush1.msra.mxu0 0.0
  %3363 = vmatprep.subr.mxu0 0.0
  %3364 = vmatpush1.msra.mxu0 0.0
  %3365 = vmatprep.subr.mxu0 0.0
  %3366 = vmatpush1.msra.mxu0 0.0
  %3367 = vmatprep.subr.mxu0 0.0
  %3368 = vmatpush1.msra.mxu0 0.0
  %3369 = vmatprep.subr.mxu0 0.0
  %3370 = vmatpush1.msra.mxu0 0.0
  %3371 = vmatprep.subr.mxu0 0.0
  %3372 = vmatpush1.msra.mxu0 0.0
  %3373 = vmatprep.subr.mxu0 0.0
  %3374 = vmatpush1.msra.mxu0 0.0
  %3375 = vmatprep.subr.mxu0 0.0
  %3376 = vmatpush1.msra.mxu0 0.0
  %3377 = vmatprep.subr.mxu0 0.0
  %3378 = vmatpush1.msra.mxu0 0.0
  %3379 = vmatprep.subr.mxu0 0.0
  %3380 = vmatpush1.msra.mxu0 0.0
  %3381 = vmatprep.subr.mxu0 0.0
  %3382 = vmatpush1.msra.mxu0 0.0
  %3383 = vmatprep.subr.mxu0 0.0
  %3384 = vmatpush1.msra.mxu0 0.0
  %3385 = vmatprep.subr.mxu0 0.0
  %3386 = vmatpush1.msra.mxu0 0.0
  %3387 = vmatprep.mubr.f32.mxu0 0.0
  %3388 = vmatmul.mubr.f32.gmra.mrb[0].mxu0 %v3318
  %v3389 = vpop.f32.mrb[0].mxu0
  %v3390 = vadd.f32 0.0, %v3389
  %v3391 = vpop.f32.mrb[0].mxu0
  %v3392 = vadd.f32 0.0, %v3391
  %3393 = vdwg.mxu0
  %3394 = vmatprep.subr.mxu0 %v2590
  %3395 = vmatpush1.msra.mxu0 %v2589
  %3396 = vmatprep.subr.mxu0 %v2594
  %3397 = vmatpush1.msra.mxu0 %v2593
  %3398 = vmatprep.subr.mxu0 %v2598
  %3399 = vmatpush1.msra.mxu0 %v2597
  %3400 = vmatprep.subr.mxu0 %v2602
  %3401 = vmatpush1.msra.mxu0 %v2601
  %3402 = vmatprep.subr.mxu0 %v2606
  %3403 = vmatpush1.msra.mxu0 %v2605
  %3404 = vmatprep.subr.mxu0 %v2610
  %3405 = vmatpush1.msra.mxu0 %v2609
  %3406 = vmatprep.subr.mxu0 %v2614
  %3407 = vmatpush1.msra.mxu0 %v2613
  %3408 = vmatprep.subr.mxu0 %v2618
  %3409 = vmatpush1.msra.mxu0 %v2617
  %3410 = vmatprep.subr.mxu0 %v2622
  %3411 = vmatpush1.msra.mxu0 %v2621
  %3412 = vmatprep.subr.mxu0 %v2626
  %3413 = vmatpush1.msra.mxu0 %v2625
  %3414 = vmatprep.subr.mxu0 %v2630
  %3415 = vmatpush1.msra.mxu0 %v2629
  %3416 = vmatprep.subr.mxu0 %v2634
  %3417 = vmatpush1.msra.mxu0 %v2633
  %3418 = vmatprep.subr.mxu0 %v2638
  %3419 = vmatpush1.msra.mxu0 %v2637
  %3420 = vmatprep.subr.mxu0 %v2642
  %3421 = vmatpush1.msra.mxu0 %v2641
  %3422 = vmatprep.subr.mxu0 %v2646
  %3423 = vmatpush1.msra.mxu0 %v2645
  %3424 = vmatprep.subr.mxu0 %v2650
  %3425 = vmatpush1.msra.mxu0 %v2649
  %3426 = vmatprep.subr.mxu0 0.0
  %3427 = vmatpush1.msra.mxu0 0.0
  %3428 = vmatprep.subr.mxu0 0.0
  %3429 = vmatpush1.msra.mxu0 0.0
  %3430 = vmatprep.subr.mxu0 0.0
  %3431 = vmatpush1.msra.mxu0 0.0
  %3432 = vmatprep.subr.mxu0 0.0
  %3433 = vmatpush1.msra.mxu0 0.0
  %3434 = vmatprep.subr.mxu0 0.0
  %3435 = vmatpush1.msra.mxu0 0.0
  %3436 = vmatprep.subr.mxu0 0.0
  %3437 = vmatpush1.msra.mxu0 0.0
  %3438 = vmatprep.subr.mxu0 0.0
  %3439 = vmatpush1.msra.mxu0 0.0
  %3440 = vmatprep.subr.mxu0 0.0
  %3441 = vmatpush1.msra.mxu0 0.0
  %3442 = vmatprep.subr.mxu0 0.0
  %3443 = vmatpush1.msra.mxu0 0.0
  %3444 = vmatprep.subr.mxu0 0.0
  %3445 = vmatpush1.msra.mxu0 0.0
  %3446 = vmatprep.subr.mxu0 0.0
  %3447 = vmatpush1.msra.mxu0 0.0
  %3448 = vmatprep.subr.mxu0 0.0
  %3449 = vmatpush1.msra.mxu0 0.0
  %3450 = vmatprep.subr.mxu0 0.0
  %3451 = vmatpush1.msra.mxu0 0.0
  %3452 = vmatprep.subr.mxu0 0.0
  %3453 = vmatpush1.msra.mxu0 0.0
  %3454 = vmatprep.subr.mxu0 0.0
  %3455 = vmatpush1.msra.mxu0 0.0
  %3456 = vmatprep.subr.mxu0 0.0
  %3457 = vmatpush1.msra.mxu0 0.0
  %3458 = vmatprep.mubr.f32.mxu0 0.0
  %3459 = vmatmul.mubr.f32.gmra.mrb[0].mxu0 %v3318
  %v3460 = vpop.f32.mrb[0].mxu0
  %v3461 = vadd.f32 0.0, %v3460
  %v3462 = vpop.f32.mrb[0].mxu0
  %v3463 = vadd.f32 0.0, %v3462
  %3464 = vdwg.mxu0
  %v3465 = vadd.f32 %v3319, %v3390
  %v3466 = vadd.f32 %v3320, %v3392
  %v3467 = vadd.f32 %v3321, %v3461
  %v3468 = vadd.f32 %v3322, %v3463
  %v3469 = vmul.f32 %v3465, 0.5
  %v3470 = vtanh.pop %v3469
  %v3471 = vmul.f32 %v3470, 0.5
  %v3472 = vadd.f32 %v3471, 0.5
  %v3473 = vmul.f32 %v3466, 0.5
  %v3474 = vtanh.pop %v3473
  %v3475 = vmul.f32 %v3474, 0.5
  %v3476 = vadd.f32 %v3475, 0.5
  %v3477 = vtanh.pop %v3467
  %v3478 = vmul.f32 %v3468, 0.5
  %v3479 = vtanh.pop %v3478
  %v3480 = vmul.f32 %v3479, 0.5
  %v3481 = vadd.f32 %v3480, 0.5
  %v3482 = vmul.f32 %v3476, %v3316
  %v3483 = vmul.f32 %v3472, %v3477
  %v3484 = vadd.f32 %v3482, %v3483
  %v3485 = vtanh.pop %v3484
  %v3486 = vmul.f32 %v3481, %v3485
  %v3487 = vld [vmem:[%s1526] sm:$0xff]
  %v3488 = vld [vmem:[%s1526 + $0x8] sm:$0xff]
  %v3489 = vld [vmem:[%s1526 + $0x10] sm:$0xff]
  %v3490 = vld [vmem:[%s1526 + $0x18] sm:$0xff]
  %3491 = vmatprep.subr.mxu0 %v2588
  %3492 = vmatpush1.msra.mxu0 %v2587
  %3493 = vmatprep.subr.mxu0 %v2592
  %3494 = vmatpush1.msra.mxu0 %v2591
  %3495 = vmatprep.subr.mxu0 %v2596
  %3496 = vmatpush1.msra.mxu0 %v2595
  %3497 = vmatprep.subr.mxu0 %v2600
  %3498 = vmatpush1.msra.mxu0 %v2599
  %3499 = vmatprep.subr.mxu0 %v2604
  %3500 = vmatpush1.msra.mxu0 %v2603
  %3501 = vmatprep.subr.mxu0 %v2608
  %3502 = vmatpush1.msra.mxu0 %v2607
  %3503 = vmatprep.subr.mxu0 %v2612
  %3504 = vmatpush1.msra.mxu0 %v2611
  %3505 = vmatprep.subr.mxu0 %v2616
  %3506 = vmatpush1.msra.mxu0 %v2615
  %3507 = vmatprep.subr.mxu0 %v2620
  %3508 = vmatpush1.msra.mxu0 %v2619
  %3509 = vmatprep.subr.mxu0 %v2624
  %3510 = vmatpush1.msra.mxu0 %v2623
  %3511 = vmatprep.subr.mxu0 %v2628
  %3512 = vmatpush1.msra.mxu0 %v2627
  %3513 = vmatprep.subr.mxu0 %v2632
  %3514 = vmatpush1.msra.mxu0 %v2631
  %3515 = vmatprep.subr.mxu0 %v2636
  %3516 = vmatpush1.msra.mxu0 %v2635
  %3517 = vmatprep.subr.mxu0 %v2640
  %3518 = vmatpush1.msra.mxu0 %v2639
  %3519 = vmatprep.subr.mxu0 %v2644
  %3520 = vmatpush1.msra.mxu0 %v2643
  %3521 = vmatprep.subr.mxu0 %v2648
  %3522 = vmatpush1.msra.mxu0 %v2647
  %3523 = vmatprep.subr.mxu0 0.0
  %3524 = vmatpush1.msra.mxu0 0.0
  %3525 = vmatprep.subr.mxu0 0.0
  %3526 = vmatpush1.msra.mxu0 0.0
  %3527 = vmatprep.subr.mxu0 0.0
  %3528 = vmatpush1.msra.mxu0 0.0
  %3529 = vmatprep.subr.mxu0 0.0
  %3530 = vmatpush1.msra.mxu0 0.0
  %3531 = vmatprep.subr.mxu0 0.0
  %3532 = vmatpush1.msra.mxu0 0.0
  %3533 = vmatprep.subr.mxu0 0.0
  %3534 = vmatpush1.msra.mxu0 0.0
  %3535 = vmatprep.subr.mxu0 0.0
  %3536 = vmatpush1.msra.mxu0 0.0
  %3537 = vmatprep.subr.mxu0 0.0
  %3538 = vmatpush1.msra.mxu0 0.0
  %3539 = vmatprep.subr.mxu0 0.0
  %3540 = vmatpush1.msra.mxu0 0.0
  %3541 = vmatprep.subr.mxu0 0.0
  %3542 = vmatpush1.msra.mxu0 0.0
  %3543 = vmatprep.subr.mxu0 0.0
  %3544 = vmatpush1.msra.mxu0 0.0
  %3545 = vmatprep.subr.mxu0 0.0
  %3546 = vmatpush1.msra.mxu0 0.0
  %3547 = vmatprep.subr.mxu0 0.0
  %3548 = vmatpush1.msra.mxu0 0.0
  %3549 = vmatprep.subr.mxu0 0.0
  %3550 = vmatpush1.msra.mxu0 0.0
  %3551 = vmatprep.subr.mxu0 0.0
  %3552 = vmatpush1.msra.mxu0 0.0
  %3553 = vmatprep.subr.mxu0 0.0
  %3554 = vmatpush1.msra.mxu0 0.0
  %3555 = vmatprep.mubr.f32.mxu0 0.0
  %3556 = vmatmul.mubr.f32.gmra.mrb[0].mxu0 %v3486
  %v3557 = vpop.f32.mrb[0].mxu0
  %v3558 = vadd.f32 0.0, %v3557
  %v3559 = vpop.f32.mrb[0].mxu0
  %v3560 = vadd.f32 0.0, %v3559
  %3561 = vdwg.mxu0
  %3562 = vmatprep.subr.mxu0 %v2590
  %3563 = vmatpush1.msra.mxu0 %v2589
  %3564 = vmatprep.subr.mxu0 %v2594
  %3565 = vmatpush1.msra.mxu0 %v2593
  %3566 = vmatprep.subr.mxu0 %v2598
  %3567 = vmatpush1.msra.mxu0 %v2597
  %3568 = vmatprep.subr.mxu0 %v2602
  %3569 = vmatpush1.msra.mxu0 %v2601
  %3570 = vmatprep.subr.mxu0 %v2606
  %3571 = vmatpush1.msra.mxu0 %v2605
  %3572 = vmatprep.subr.mxu0 %v2610
  %3573 = vmatpush1.msra.mxu0 %v2609
  %3574 = vmatprep.subr.mxu0 %v2614
  %3575 = vmatpush1.msra.mxu0 %v2613
  %3576 = vmatprep.subr.mxu0 %v2618
  %3577 = vmatpush1.msra.mxu0 %v2617
  %3578 = vmatprep.subr.mxu0 %v2622
  %3579 = vmatpush1.msra.mxu0 %v2621
  %3580 = vmatprep.subr.mxu0 %v2626
  %3581 = vmatpush1.msra.mxu0 %v2625
  %3582 = vmatprep.subr.mxu0 %v2630
  %3583 = vmatpush1.msra.mxu0 %v2629
  %3584 = vmatprep.subr.mxu0 %v2634
  %3585 = vmatpush1.msra.mxu0 %v2633
  %3586 = vmatprep.subr.mxu0 %v2638
  %3587 = vmatpush1.msra.mxu0 %v2637
  %3588 = vmatprep.subr.mxu0 %v2642
  %3589 = vmatpush1.msra.mxu0 %v2641
  %3590 = vmatprep.subr.mxu0 %v2646
  %3591 = vmatpush1.msra.mxu0 %v2645
  %3592 = vmatprep.subr.mxu0 %v2650
  %3593 = vmatpush1.msra.mxu0 %v2649
  %3594 = vmatprep.subr.mxu0 0.0
  %3595 = vmatpush1.msra.mxu0 0.0
  %3596 = vmatprep.subr.mxu0 0.0
  %3597 = vmatpush1.msra.mxu0 0.0
  %3598 = vmatprep.subr.mxu0 0.0
  %3599 = vmatpush1.msra.mxu0 0.0
  %3600 = vmatprep.subr.mxu0 0.0
  %3601 = vmatpush1.msra.mxu0 0.0
  %3602 = vmatprep.subr.mxu0 0.0
  %3603 = vmatpush1.msra.mxu0 0.0
  %3604 = vmatprep.subr.mxu0 0.0
  %3605 = vmatpush1.msra.mxu0 0.0
  %3606 = vmatprep.subr.mxu0 0.0
  %3607 = vmatpush1.msra.mxu0 0.0
  %3608 = vmatprep.subr.mxu0 0.0
  %3609 = vmatpush1.msra.mxu0 0.0
  %3610 = vmatprep.subr.mxu0 0.0
  %3611 = vmatpush1.msra.mxu0 0.0
  %3612 = vmatprep.subr.mxu0 0.0
  %3613 = vmatpush1.msra.mxu0 0.0
  %3614 = vmatprep.subr.mxu0 0.0
  %3615 = vmatpush1.msra.mxu0 0.0
  %3616 = vmatprep.subr.mxu0 0.0
  %3617 = vmatpush1.msra.mxu0 0.0
  %3618 = vmatprep.subr.mxu0 0.0
  %3619 = vmatpush1.msra.mxu0 0.0
  %3620 = vmatprep.subr.mxu0 0.0
  %3621 = vmatpush1.msra.mxu0 0.0
  %3622 = vmatprep.subr.mxu0 0.0
  %3623 = vmatpush1.msra.mxu0 0.0
  %3624 = vmatprep.subr.mxu0 0.0
  %3625 = vmatpush1.msra.mxu0 0.0
  %3626 = vmatprep.mubr.f32.mxu0 0.0
  %3627 = vmatmul.mubr.f32.gmra.mrb[0].mxu0 %v3486
  %v3628 = vpop.f32.mrb[0].mxu0
  %v3629 = vadd.f32 0.0, %v3628
  %v3630 = vpop.f32.mrb[0].mxu0
  %v3631 = vadd.f32 0.0, %v3630
  %3632 = vdwg.mxu0
  %v3633 = vadd.f32 %v3487, %v3558
  %v3634 = vadd.f32 %v3488, %v3560
  %v3635 = vadd.f32 %v3489, %v3629
  %v3636 = vadd.f32 %v3490, %v3631
  %v3637 = vmul.f32 %v3633, 0.5
  %v3638 = vtanh.pop %v3637
  %v3639 = vmul.f32 %v3638, 0.5
  %v3640 = vadd.f32 %v3639, 0.5
  %v3641 = vmul.f32 %v3634, 0.5
  %v3642 = vtanh.pop %v3641
  %v3643 = vmul.f32 %v3642, 0.5
  %v3644 = vadd.f32 %v3643, 0.5
  %v3645 = vtanh.pop %v3635
  %v3646 = vmul.f32 %v3636, 0.5
  %v3647 = vtanh.pop %v3646
  %v3648 = vmul.f32 %v3647, 0.5
  %v3649 = vadd.f32 %v3648, 0.5
  %v3650 = vmul.f32 %v3644, %v3484
  %v3651 = vmul.f32 %v3640, %v3645
  %v3652 = vadd.f32 %v3650, %v3651
  %v3653 = vtanh.pop %v3652
  %v3654 = vmul.f32 %v3649, %v3653
  %v3655 = vld [vmem:[%s1761] sm:$0xff]
  %v3656 = vld [vmem:[%s1761 + $0x8] sm:$0xff]
  %v3657 = vld [vmem:[%s1761 + $0x10] sm:$0xff]
  %v3658 = vld [vmem:[%s1761 + $0x18] sm:$0xff]
  %3659 = vmatprep.subr.mxu0 %v2588
  %3660 = vmatpush1.msra.mxu0 %v2587
  %3661 = vmatprep.subr.mxu0 %v2592
  %3662 = vmatpush1.msra.mxu0 %v2591
  %3663 = vmatprep.subr.mxu0 %v2596
  %3664 = vmatpush1.msra.mxu0 %v2595
  %3665 = vmatprep.subr.mxu0 %v2600
  %3666 = vmatpush1.msra.mxu0 %v2599
  %3667 = vmatprep.subr.mxu0 %v2604
  %3668 = vmatpush1.msra.mxu0 %v2603
  %3669 = vmatprep.subr.mxu0 %v2608
  %3670 = vmatpush1.msra.mxu0 %v2607
  %3671 = vmatprep.subr.mxu0 %v2612
  %3672 = vmatpush1.msra.mxu0 %v2611
  %3673 = vmatprep.subr.mxu0 %v2616
  %3674 = vmatpush1.msra.mxu0 %v2615
  %3675 = vmatprep.subr.mxu0 %v2620
  %3676 = vmatpush1.msra.mxu0 %v2619
  %3677 = vmatprep.subr.mxu0 %v2624
  %3678 = vmatpush1.msra.mxu0 %v2623
  %3679 = vmatprep.subr.mxu0 %v2628
  %3680 = vmatpush1.msra.mxu0 %v2627
  %3681 = vmatprep.subr.mxu0 %v2632
  %3682 = vmatpush1.msra.mxu0 %v2631
  %3683 = vmatprep.subr.mxu0 %v2636
  %3684 = vmatpush1.msra.mxu0 %v2635
  %3685 = vmatprep.subr.mxu0 %v2640
  %3686 = vmatpush1.msra.mxu0 %v2639
  %3687 = vmatprep.subr.mxu0 %v2644
  %3688 = vmatpush1.msra.mxu0 %v2643
  %3689 = vmatprep.subr.mxu0 %v2648
  %3690 = vmatpush1.msra.mxu0 %v2647
  %3691 = vmatprep.subr.mxu0 0.0
  %3692 = vmatpush1.msra.mxu0 0.0
  %3693 = vmatprep.subr.mxu0 0.0
  %3694 = vmatpush1.msra.mxu0 0.0
  %3695 = vmatprep.subr.mxu0 0.0
  %3696 = vmatpush1.msra.mxu0 0.0
  %3697 = vmatprep.subr.mxu0 0.0
  %3698 = vmatpush1.msra.mxu0 0.0
  %3699 = vmatprep.subr.mxu0 0.0
  %3700 = vmatpush1.msra.mxu0 0.0
  %3701 = vmatprep.subr.mxu0 0.0
  %3702 = vmatpush1.msra.mxu0 0.0
  %3703 = vmatprep.subr.mxu0 0.0
  %3704 = vmatpush1.msra.mxu0 0.0
  %3705 = vmatprep.subr.mxu0 0.0
  %3706 = vmatpush1.msra.mxu0 0.0
  %3707 = vmatprep.subr.mxu0 0.0
  %3708 = vmatpush1.msra.mxu0 0.0
  %3709 = vmatprep.subr.mxu0 0.0
  %3710 = vmatpush1.msra.mxu0 0.0
  %3711 = vmatprep.subr.mxu0 0.0
  %3712 = vmatpush1.msra.mxu0 0.0
  %3713 = vmatprep.subr.mxu0 0.0
  %3714 = vmatpush1.msra.mxu0 0.0
  %3715 = vmatprep.subr.mxu0 0.0
  %3716 = vmatpush1.msra.mxu0 0.0
  %3717 = vmatprep.subr.mxu0 0.0
  %3718 = vmatpush1.msra.mxu0 0.0
  %3719 = vmatprep.subr.mxu0 0.0
  %3720 = vmatpush1.msra.mxu0 0.0
  %3721 = vmatprep.subr.mxu0 0.0
  %3722 = vmatpush1.msra.mxu0 0.0
  %3723 = vmatprep.mubr.f32.mxu0 0.0
  %3724 = vmatmul.mubr.f32.gmra.mrb[0].mxu0 %v3654
  %v3725 = vpop.f32.mrb[0].mxu0
  %v3726 = vadd.f32 0.0, %v3725
  %v3727 = vpop.f32.mrb[0].mxu0
  %v3728 = vadd.f32 0.0, %v3727
  %3729 = vdwg.mxu0
  %3730 = vmatprep.subr.mxu0 %v2590
  %3731 = vmatpush1.msra.mxu0 %v2589
  %3732 = vmatprep.subr.mxu0 %v2594
  %3733 = vmatpush1.msra.mxu0 %v2593
  %3734 = vmatprep.subr.mxu0 %v2598
  %3735 = vmatpush1.msra.mxu0 %v2597
  %3736 = vmatprep.subr.mxu0 %v2602
  %3737 = vmatpush1.msra.mxu0 %v2601
  %3738 = vmatprep.subr.mxu0 %v2606
  %3739 = vmatpush1.msra.mxu0 %v2605
  %3740 = vmatprep.subr.mxu0 %v2610
  %3741 = vmatpush1.msra.mxu0 %v2609
  %3742 = vmatprep.subr.mxu0 %v2614
  %3743 = vmatpush1.msra.mxu0 %v2613
  %3744 = vmatprep.subr.mxu0 %v2618
  %3745 = vmatpush1.msra.mxu0 %v2617
  %3746 = vmatprep.subr.mxu0 %v2622
  %3747 = vmatpush1.msra.mxu0 %v2621
  %3748 = vmatprep.subr.mxu0 %v2626
  %3749 = vmatpush1.msra.mxu0 %v2625
  %3750 = vmatprep.subr.mxu0 %v2630
  %3751 = vmatpush1.msra.mxu0 %v2629
  %3752 = vmatprep.subr.mxu0 %v2634
  %3753 = vmatpush1.msra.mxu0 %v2633
  %3754 = vmatprep.subr.mxu0 %v2638
  %3755 = vmatpush1.msra.mxu0 %v2637
  %3756 = vmatprep.subr.mxu0 %v2642
  %3757 = vmatpush1.msra.mxu0 %v2641
  %3758 = vmatprep.subr.mxu0 %v2646
  %3759 = vmatpush1.msra.mxu0 %v2645
  %3760 = vmatprep.subr.mxu0 %v2650
  %3761 = vmatpush1.msra.mxu0 %v2649
  %3762 = vmatprep.subr.mxu0 0.0
  %3763 = vmatpush1.msra.mxu0 0.0
  %3764 = vmatprep.subr.mxu0 0.0
  %3765 = vmatpush1.msra.mxu0 0.0
  %3766 = vmatprep.subr.mxu0 0.0
  %3767 = vmatpush1.msra.mxu0 0.0
  %3768 = vmatprep.subr.mxu0 0.0
  %3769 = vmatpush1.msra.mxu0 0.0
  %3770 = vmatprep.subr.mxu0 0.0
  %3771 = vmatpush1.msra.mxu0 0.0
  %3772 = vmatprep.subr.mxu0 0.0
  %3773 = vmatpush1.msra.mxu0 0.0
  %3774 = vmatprep.subr.mxu0 0.0
  %3775 = vmatpush1.msra.mxu0 0.0
  %3776 = vmatprep.subr.mxu0 0.0
  %3777 = vmatpush1.msra.mxu0 0.0
  %3778 = vmatprep.subr.mxu0 0.0
  %3779 = vmatpush1.msra.mxu0 0.0
  %3780 = vmatprep.subr.mxu0 0.0
  %3781 = vmatpush1.msra.mxu0 0.0
  %3782 = vmatprep.subr.mxu0 0.0
  %3783 = vmatpush1.msra.mxu0 0.0
  %3784 = vmatprep.subr.mxu0 0.0
  %3785 = vmatpush1.msra.mxu0 0.0
  %3786 = vmatprep.subr.mxu0 0.0
  %3787 = vmatpush1.msra.mxu0 0.0
  %3788 = vmatprep.subr.mxu0 0.0
  %3789 = vmatpush1.msra.mxu0 0.0
  %3790 = vmatprep.subr.mxu0 0.0
  %3791 = vmatpush1.msra.mxu0 0.0
  %3792 = vmatprep.subr.mxu0 0.0
  %3793 = vmatpush1.msra.mxu0 0.0
  %3794 = vmatprep.mubr.f32.mxu0 0.0
  %3795 = vmatmul.mubr.f32.gmra.mrb[0].mxu0 %v3654
  %v3796 = vpop.f32.mrb[0].mxu0
  %v3797 = vadd.f32 0.0, %v3796
  %v3798 = vpop.f32.mrb[0].mxu0
  %v3799 = vadd.f32 0.0, %v3798
  %3800 = vdwg.mxu0
  %v3801 = vadd.f32 %v3655, %v3726
  %v3802 = vadd.f32 %v3656, %v3728
  %v3803 = vadd.f32 %v3657, %v3797
  %v3804 = vadd.f32 %v3658, %v3799
  %v3805 = vmul.f32 %v3801, 0.5
  %v3806 = vtanh.pop %v3805
  %v3807 = vmul.f32 %v3806, 0.5
  %v3808 = vadd.f32 %v3807, 0.5
  %v3809 = vmul.f32 %v3802, 0.5
  %v3810 = vtanh.pop %v3809
  %v3811 = vmul.f32 %v3810, 0.5
  %v3812 = vadd.f32 %v3811, 0.5
  %v3813 = vtanh.pop %v3803
  %v3814 = vmul.f32 %v3804, 0.5
  %v3815 = vtanh.pop %v3814
  %v3816 = vmul.f32 %v3815, 0.5
  %v3817 = vadd.f32 %v3816, 0.5
  %v3818 = vmul.f32 %v3812, %v3652
  %v3819 = vmul.f32 %v3808, %v3813
  %v3820 = vadd.f32 %v3818, %v3819
  %v3821 = vtanh.pop %v3820
  %v3822 = vmul.f32 %v3817, %v3821
  %v3823 = vld [vmem:[%s1996] sm:$0xff]
  %v3824 = vld [vmem:[%s1996 + $0x8] sm:$0xff]
  %v3825 = vld [vmem:[%s1996 + $0x10] sm:$0xff]
  %v3826 = vld [vmem:[%s1996 + $0x18] sm:$0xff]
  %3827 = vmatprep.subr.mxu0 %v2588
  %3828 = vmatpush1.msra.mxu0 %v2587
  %3829 = vmatprep.subr.mxu0 %v2592
  %3830 = vmatpush1.msra.mxu0 %v2591
  %3831 = vmatprep.subr.mxu0 %v2596
  %3832 = vmatpush1.msra.mxu0 %v2595
  %3833 = vmatprep.subr.mxu0 %v2600
  %3834 = vmatpush1.msra.mxu0 %v2599
  %3835 = vmatprep.subr.mxu0 %v2604
  %3836 = vmatpush1.msra.mxu0 %v2603
  %3837 = vmatprep.subr.mxu0 %v2608
  %3838 = vmatpush1.msra.mxu0 %v2607
  %3839 = vmatprep.subr.mxu0 %v2612
  %3840 = vmatpush1.msra.mxu0 %v2611
  %3841 = vmatprep.subr.mxu0 %v2616
  %3842 = vmatpush1.msra.mxu0 %v2615
  %3843 = vmatprep.subr.mxu0 %v2620
  %3844 = vmatpush1.msra.mxu0 %v2619
  %3845 = vmatprep.subr.mxu0 %v2624
  %3846 = vmatpush1.msra.mxu0 %v2623
  %3847 = vmatprep.subr.mxu0 %v2628
  %3848 = vmatpush1.msra.mxu0 %v2627
  %3849 = vmatprep.subr.mxu0 %v2632
  %3850 = vmatpush1.msra.mxu0 %v2631
  %3851 = vmatprep.subr.mxu0 %v2636
  %3852 = vmatpush1.msra.mxu0 %v2635
  %3853 = vmatprep.subr.mxu0 %v2640
  %3854 = vmatpush1.msra.mxu0 %v2639
  %3855 = vmatprep.subr.mxu0 %v2644
  %3856 = vmatpush1.msra.mxu0 %v2643
  %3857 = vmatprep.subr.mxu0 %v2648
  %3858 = vmatpush1.msra.mxu0 %v2647
  %3859 = vmatprep.subr.mxu0 0.0
  %3860 = vmatpush1.msra.mxu0 0.0
  %3861 = vmatprep.subr.mxu0 0.0
  %3862 = vmatpush1.msra.mxu0 0.0
  %3863 = vmatprep.subr.mxu0 0.0
  %3864 = vmatpush1.msra.mxu0 0.0
  %3865 = vmatprep.subr.mxu0 0.0
  %3866 = vmatpush1.msra.mxu0 0.0
  %3867 = vmatprep.subr.mxu0 0.0
  %3868 = vmatpush1.msra.mxu0 0.0
  %3869 = vmatprep.subr.mxu0 0.0
  %3870 = vmatpush1.msra.mxu0 0.0
  %3871 = vmatprep.subr.mxu0 0.0
  %3872 = vmatpush1.msra.mxu0 0.0
  %3873 = vmatprep.subr.mxu0 0.0
  %3874 = vmatpush1.msra.mxu0 0.0
  %3875 = vmatprep.subr.mxu0 0.0
  %3876 = vmatpush1.msra.mxu0 0.0
  %3877 = vmatprep.subr.mxu0 0.0
  %3878 = vmatpush1.msra.mxu0 0.0
  %3879 = vmatprep.subr.mxu0 0.0
  %3880 = vmatpush1.msra.mxu0 0.0
  %3881 = vmatprep.subr.mxu0 0.0
  %3882 = vmatpush1.msra.mxu0 0.0
  %3883 = vmatprep.subr.mxu0 0.0
  %3884 = vmatpush1.msra.mxu0 0.0
  %3885 = vmatprep.subr.mxu0 0.0
  %3886 = vmatpush1.msra.mxu0 0.0
  %3887 = vmatprep.subr.mxu0 0.0
  %3888 = vmatpush1.msra.mxu0 0.0
  %3889 = vmatprep.subr.mxu0 0.0
  %3890 = vmatpush1.msra.mxu0 0.0
  %3891 = vmatprep.mubr.f32.mxu0 0.0
  %3892 = vmatmul.mubr.f32.gmra.mrb[0].mxu0 %v3822
  %v3893 = vpop.f32.mrb[0].mxu0
  %v3894 = vadd.f32 0.0, %v3893
  %v3895 = vpop.f32.mrb[0].mxu0
  %v3896 = vadd.f32 0.0, %v3895
  %3897 = vdwg.mxu0
  %3898 = vmatprep.subr.mxu0 %v2590
  %3899 = vmatpush1.msra.mxu0 %v2589
  %3900 = vmatprep.subr.mxu0 %v2594
  %3901 = vmatpush1.msra.mxu0 %v2593
  %3902 = vmatprep.subr.mxu0 %v2598
  %3903 = vmatpush1.msra.mxu0 %v2597
  %3904 = vmatprep.subr.mxu0 %v2602
  %3905 = vmatpush1.msra.mxu0 %v2601
  %3906 = vmatprep.subr.mxu0 %v2606
  %3907 = vmatpush1.msra.mxu0 %v2605
  %3908 = vmatprep.subr.mxu0 %v2610
  %3909 = vmatpush1.msra.mxu0 %v2609
  %3910 = vmatprep.subr.mxu0 %v2614
  %3911 = vmatpush1.msra.mxu0 %v2613
  %3912 = vmatprep.subr.mxu0 %v2618
  %3913 = vmatpush1.msra.mxu0 %v2617
  %3914 = vmatprep.subr.mxu0 %v2622
  %3915 = vmatpush1.msra.mxu0 %v2621
  %3916 = vmatprep.subr.mxu0 %v2626
  %3917 = vmatpush1.msra.mxu0 %v2625
  %3918 = vmatprep.subr.mxu0 %v2630
  %3919 = vmatpush1.msra.mxu0 %v2629
  %3920 = vmatprep.subr.mxu0 %v2634
  %3921 = vmatpush1.msra.mxu0 %v2633
  %3922 = vmatprep.subr.mxu0 %v2638
  %3923 = vmatpush1.msra.mxu0 %v2637
  %3924 = vmatprep.subr.mxu0 %v2642
  %3925 = vmatpush1.msra.mxu0 %v2641
  %3926 = vmatprep.subr.mxu0 %v2646
  %3927 = vmatpush1.msra.mxu0 %v2645
  %3928 = vmatprep.subr.mxu0 %v2650
  %3929 = vmatpush1.msra.mxu0 %v2649
  %3930 = vmatprep.subr.mxu0 0.0
  %3931 = vmatpush1.msra.mxu0 0.0
  %3932 = vmatprep.subr.mxu0 0.0
  %3933 = vmatpush1.msra.mxu0 0.0
  %3934 = vmatprep.subr.mxu0 0.0
  %3935 = vmatpush1.msra.mxu0 0.0
  %3936 = vmatprep.subr.mxu0 0.0
  %3937 = vmatpush1.msra.mxu0 0.0
  %3938 = vmatprep.subr.mxu0 0.0
  %3939 = vmatpush1.msra.mxu0 0.0
  %3940 = vmatprep.subr.mxu0 0.0
  %3941 = vmatpush1.msra.mxu0 0.0
  %3942 = vmatprep.subr.mxu0 0.0
  %3943 = vmatpush1.msra.mxu0 0.0
  %3944 = vmatprep.subr.mxu0 0.0
  %3945 = vmatpush1.msra.mxu0 0.0
  %3946 = vmatprep.subr.mxu0 0.0
  %3947 = vmatpush1.msra.mxu0 0.0
  %3948 = vmatprep.subr.mxu0 0.0
  %3949 = vmatpush1.msra.mxu0 0.0
  %3950 = vmatprep.subr.mxu0 0.0
  %3951 = vmatpush1.msra.mxu0 0.0
  %3952 = vmatprep.subr.mxu0 0.0
  %3953 = vmatpush1.msra.mxu0 0.0
  %3954 = vmatprep.subr.mxu0 0.0
  %3955 = vmatpush1.msra.mxu0 0.0
  %3956 = vmatprep.subr.mxu0 0.0
  %3957 = vmatpush1.msra.mxu0 0.0
  %3958 = vmatprep.subr.mxu0 0.0
  %3959 = vmatpush1.msra.mxu0 0.0
  %3960 = vmatprep.subr.mxu0 0.0
  %3961 = vmatpush1.msra.mxu0 0.0
  %3962 = vmatprep.mubr.f32.mxu0 0.0
  %3963 = vmatmul.mubr.f32.gmra.mrb[0].mxu0 %v3822
  %v3964 = vpop.f32.mrb[0].mxu0
  %v3965 = vadd.f32 0.0, %v3964
  %v3966 = vpop.f32.mrb[0].mxu0
  %v3967 = vadd.f32 0.0, %v3966
  %3968 = vdwg.mxu0
  %v3969 = vadd.f32 %v3823, %v3894
  %v3970 = vadd.f32 %v3824, %v3896
  %v3971 = vadd.f32 %v3825, %v3965
  %v3972 = vadd.f32 %v3826, %v3967
  %v3973 = vmul.f32 %v3969, 0.5
  %v3974 = vtanh.pop %v3973
  %v3975 = vmul.f32 %v3974, 0.5
  %v3976 = vadd.f32 %v3975, 0.5
  %v3977 = vmul.f32 %v3970, 0.5
  %v3978 = vtanh.pop %v3977
  %v3979 = vmul.f32 %v3978, 0.5
  %v3980 = vadd.f32 %v3979, 0.5
  %v3981 = vtanh.pop %v3971
  %v3982 = vmul.f32 %v3972, 0.5
  %v3983 = vtanh.pop %v3982
  %v3984 = vmul.f32 %v3983, 0.5
  %v3985 = vadd.f32 %v3984, 0.5
  %v3986 = vmul.f32 %v3980, %v3820
  %v3987 = vmul.f32 %v3976, %v3981
  %v3988 = vadd.f32 %v3986, %v3987
  %v3989 = vtanh.pop %v3988
  %v3990 = vmul.f32 %v3985, %v3989
  %v3991 = vld [vmem:[%s7] sm:$0xff]
  %v3992 = vld [vmem:[%s7 + $0x8] sm:$0xff]
  %v3993 = vld [vmem:[%s7 + $0x10] sm:$0xff]
  %v3994 = vld [vmem:[%s7 + $0x18] sm:$0xff]
  %v3995 = vld [vmem:[%s7 + $0x20] sm:$0xff]
  %v3996 = vld [vmem:[%s7 + $0x28] sm:$0xff]
  %v3997 = vld [vmem:[%s7 + $0x30] sm:$0xff]
  %v3998 = vld [vmem:[%s7 + $0x38] sm:$0xff]
  %v3999 = vld [vmem:[%s7 + $0x40] sm:$0xff]
  %v4000 = vld [vmem:[%s7 + $0x48] sm:$0xff]
  %v4001 = vld [vmem:[%s7 + $0x50] sm:$0xff]
  %v4002 = vld [vmem:[%s7 + $0x58] sm:$0xff]
  %v4003 = vld [vmem:[%s7 + $0x60] sm:$0xff]
  %v4004 = vld [vmem:[%s7 + $0x68] sm:$0xff]
  %v4005 = vld [vmem:[%s7 + $0x70] sm:$0xff]
  %v4006 = vld [vmem:[%s7 + $0x78] sm:$0xff]
  %v4007 = vld [vmem:[%s8] sm:$0x1]
  %v4009 = vlaneseq
  %v4010 = vshrl.u32 %v4009, 7
  %v4011 = vsub.s32 0, %v4010
  %v4012 = vrot.slane %v4007, %v4011
  %4014 = vmatprep.subr.mxu0 0.0
  %4015 = vmatpush1.msra.mxu0 %v3991
  %4016 = vmatprep.subr.mxu0 0.0
  %4017 = vmatpush1.msra.mxu0 %v3992
  %4018 = vmatprep.subr.mxu0 0.0
  %4019 = vmatpush1.msra.mxu0 %v3993
  %4020 = vmatprep.subr.mxu0 0.0
  %4021 = vmatpush1.msra.mxu0 %v3994
  %4022 = vmatprep.subr.mxu0 0.0
  %4023 = vmatpush1.msra.mxu0 %v3995
  %4024 = vmatprep.subr.mxu0 0.0
  %4025 = vmatpush1.msra.mxu0 %v3996
  %4026 = vmatprep.subr.mxu0 0.0
  %4027 = vmatpush1.msra.mxu0 %v3997
  %4028 = vmatprep.subr.mxu0 0.0
  %4029 = vmatpush1.msra.mxu0 %v3998
  %4030 = vmatprep.subr.mxu0 0.0
  %4031 = vmatpush1.msra.mxu0 %v3999
  %4032 = vmatprep.subr.mxu0 0.0
  %4033 = vmatpush1.msra.mxu0 %v4000
  %4034 = vmatprep.subr.mxu0 0.0
  %4035 = vmatpush1.msra.mxu0 %v4001
  %4036 = vmatprep.subr.mxu0 0.0
  %4037 = vmatpush1.msra.mxu0 %v4002
  %4038 = vmatprep.subr.mxu0 0.0
  %4039 = vmatpush1.msra.mxu0 %v4003
  %4040 = vmatprep.subr.mxu0 0.0
  %4041 = vmatpush1.msra.mxu0 %v4004
  %4042 = vmatprep.subr.mxu0 0.0
  %4043 = vmatpush1.msra.mxu0 %v4005
  %4044 = vmatprep.subr.mxu0 0.0
  %4045 = vmatpush1.msra.mxu0 %v4006
  %4046 = vmatprep.subr.mxu0 0.0
  %4047 = vmatpush1.msra.mxu0 0.0
  %4048 = vmatprep.subr.mxu0 0.0
  %4049 = vmatpush1.msra.mxu0 0.0
  %4050 = vmatprep.subr.mxu0 0.0
  %4051 = vmatpush1.msra.mxu0 0.0
  %4052 = vmatprep.subr.mxu0 0.0
  %4053 = vmatpush1.msra.mxu0 0.0
  %4054 = vmatprep.subr.mxu0 0.0
  %4055 = vmatpush1.msra.mxu0 0.0
  %4056 = vmatprep.subr.mxu0 0.0
  %4057 = vmatpush1.msra.mxu0 0.0
  %4058 = vmatprep.subr.mxu0 0.0
  %4059 = vmatpush1.msra.mxu0 0.0
  %4060 = vmatprep.subr.mxu0 0.0
  %4061 = vmatpush1.msra.mxu0 0.0
  %4062 = vmatprep.subr.mxu0 0.0
  %4063 = vmatpush1.msra.mxu0 0.0
  %4064 = vmatprep.subr.mxu0 0.0
  %4065 = vmatpush1.msra.mxu0 0.0
  %4066 = vmatprep.subr.mxu0 0.0
  %4067 = vmatpush1.msra.mxu0 0.0
  %4068 = vmatprep.subr.mxu0 0.0
  %4069 = vmatpush1.msra.mxu0 0.0
  %4070 = vmatprep.subr.mxu0 0.0
  %4071 = vmatpush1.msra.mxu0 0.0
  %4072 = vmatprep.subr.mxu0 0.0
  %4073 = vmatpush1.msra.mxu0 0.0
  %4074 = vmatprep.subr.mxu0 0.0
  %4075 = vmatpush1.msra.mxu0 0.0
  %4076 = vmatprep.subr.mxu0 0.0
  %4077 = vmatpush1.msra.mxu0 0.0
  %4078 = vmatprep.mubr.f32.mxu0 0.0
  %4079 = vmatmul.mubr.f32.gmra.mrb[0].mxu0 %v3990
  %v4080 = vpop.f32.mrb[0].mxu0
  %v4081 = vadd.f32 %v4012, %v4080
  %v4082 = vpop.f32.mrb[0].mxu0
  %4083 = vdwg.mxu0
  %4084 = vst [vmem:[%s9] sm:$0xff] %v4081
  // Predicated region
  $region38: #{lstm_classifier_forward.1} parent=0 // pred_check
    _
  $region39: #{lstm_classifier_forward.1} parent=0 // pred_check_branch
    %4086 = sbr.rel (0) target = $region41
  $region40: #{lstm_classifier_forward.1} parent=0 // pred_region
    _
  $region41: #{lstm_classifier_forward.1} parent=0 // pred_fallthru
    _
  // Predicated region
  $region42: #{lstm_classifier_forward.1} parent=0 // pred_check
    _
  $region43: #{lstm_classifier_forward.1} parent=0 // pred_check_branch
    %4088 = sbr.rel (0) target = $region45
  $region44: #{lstm_classifier_forward.1} parent=0 // pred_region
    _
  $region45: #{lstm_classifier_forward.1} parent=0 // pred_fallthru
    _

</llo_original>
